<compile_context>
chip_gen: v6e
topology: v6e:2x2x1
jax: 0.10.0
libtpu: 0.0.40
codegen_flags: <defaults>
</compile_context>

<pallas_src>
import math

import jax
import jax.numpy as jnp
from jax.experimental import pallas as pl
from jax.experimental.pallas import tpu as pltpu

TIME_EMB_DIMS = 128
TIME_EMB_DIMS_EXP = 512
TOTAL_TIME_STEPS = 1000

_HALF = TIME_EMB_DIMS // 2
_SCALE = math.log(10000.0) / (_HALF - 1)
_TM = 128  # timestep rows per grid step in the one-time table build


def _table_build_kernel(w1_ref, b1_ref, w2_ref, b2_ref, table_ref):
    """table[t] = W2 @ SiLU(W1 @ emb(t) + b1) + b2 for one block of _TM timesteps."""
    i = pl.program_id(0)
    t0 = (i * _TM).astype(jnp.float32)

    # Timestep column for this block: (TM, 1).
    t = jax.lax.broadcasted_iota(jnp.int32, (_TM, 1), 0).astype(jnp.float32) + t0

    # Frequencies generated in-kernel: lane k holds f_{k mod 64} = exp(-(k mod 64)*scale).
    k = jax.lax.broadcasted_iota(jnp.int32, (1, TIME_EMB_DIMS), 1)       # (1, 128)
    kf = jnp.where(k < _HALF, k, k - _HALF).astype(jnp.float32)
    freqs = jnp.exp(kf * (-_SCALE))                                       # (1, 128)

    args = t * freqs                                                      # (TM, 128)
    emb = jnp.where(k < _HALF, jnp.sin(args), jnp.cos(args))              # [sin | cos]

    # Linear 1 (bf16 MXU inputs, f32 accumulation) + bias + SiLU in f32.
    h = jnp.dot(emb.astype(jnp.bfloat16), w1_ref[...],
                preferred_element_type=jnp.float32) + b1_ref[...]
    h = h * jax.nn.sigmoid(h)

    # Linear 2 (bf16 MXU inputs, f32 accumulation) + bias.
    out = jnp.dot(h.astype(jnp.bfloat16), w2_ref[...],
                  preferred_element_type=jnp.float32) + b2_ref[...]
    table_ref[...] = out.astype(table_ref.dtype)


def build_time_embedding_table(w1, b1, w2, b2, total_time_steps=TOTAL_TIME_STEPS):
    """One-time ("module init"): build the full (T_pad, 512) f32 output table.

    w1: (128, 512), w2: (512, 512) — PyTorch Linear weights transposed to (in, out)."""
    t_pad = ((total_time_steps + _TM - 1) // _TM) * _TM
    # bf16 weight cast happens exactly once here, never in the per-step path.
    w1_bf16 = w1.astype(jnp.bfloat16)
    w2_bf16 = w2.astype(jnp.bfloat16)
    b1r = b1.reshape(1, TIME_EMB_DIMS_EXP).astype(jnp.float32)
    b2r = b2.reshape(1, TIME_EMB_DIMS_EXP).astype(jnp.float32)

    return pl.pallas_call(
        _table_build_kernel,
        out_shape=jax.ShapeDtypeStruct((t_pad, TIME_EMB_DIMS_EXP), jnp.float32),
        grid=(t_pad // _TM,),
        in_specs=[
            pl.BlockSpec((TIME_EMB_DIMS, TIME_EMB_DIMS_EXP), lambda i: (0, 0)),
            pl.BlockSpec((1, TIME_EMB_DIMS_EXP), lambda i: (0, 0)),
            pl.BlockSpec((TIME_EMB_DIMS_EXP, TIME_EMB_DIMS_EXP), lambda i: (0, 0)),
            pl.BlockSpec((1, TIME_EMB_DIMS_EXP), lambda i: (0, 0)),
        ],
        out_specs=pl.BlockSpec((_TM, TIME_EMB_DIMS_EXP), lambda i: (i, 0)),
        compiler_params=pltpu.CompilerParams(dimension_semantics=("arbitrary",)),
    )(w1_bf16, b1r, w2_bf16, b2r)


def _gather_rows_kernel(ids_ref, table_ref, out_ref, sem):
    """Per-step forward: copy table[ids[b]] -> out[b], one row DMA per batch element.

    ids_ref: SMEM (B_pad,) int32; table_ref: HBM (T_pad, 512) f32 (pl.ANY);
    out_ref: VMEM (B_pad, 512) f32."""
    n_rows = out_ref.shape[0]
    copies = []
    for b in range(n_rows):            # static, fully unrolled (B_pad is small)
        row = ids_ref[b]
        cp = pltpu.make_async_copy(
            table_ref.at[pl.ds(row, 1), :],
            out_ref.at[pl.ds(b, 1), :],
            sem.at[b],
        )
        cp.start()
        copies.append(cp)
    for cp in copies:                  # all row DMAs in flight, then drain
        cp.wait()


def sinusoidal_position_embeddings(time, table):
    """Per-step forward: time (B,) int -> (B, 512) f32 via a B-row gather kernel."""
    b = time.shape[0]
    b_pad = ((b + 7) // 8) * 8
    ids = time.astype(jnp.int32)
    if b_pad != b:
        ids = jnp.pad(ids, (0, b_pad - b))     # padded rows gather row 0, sliced off

    out = pl.pallas_call(
        _gather_rows_kernel,
        out_shape=jax.ShapeDtypeStruct((b_pad, TIME_EMB_DIMS_EXP), jnp.float32),
        in_specs=[
            pl.BlockSpec(memory_space=pltpu.MemorySpace.SMEM),   # timestep ids
            pl.BlockSpec(memory_space=pl.ANY),                   # table stays in HBM
        ],
        out_specs=pl.BlockSpec(memory_space=pltpu.MemorySpace.VMEM),
        scratch_shapes=[pltpu.SemaphoreType.DMA((b_pad,))],
    )(ids, table)
    return out[:b]


def _reference(time, w1, b1, w2, b2):
    """Pure-JAX reference mirroring the table build's bf16 MXU inputs / f32 accumulation."""
    freqs = jnp.exp(jnp.arange(_HALF, dtype=jnp.float32) * -_SCALE)
    args = time.astype(jnp.float32)[:, None] * freqs[None, :]
    emb = jnp.concatenate([jnp.sin(args), jnp.cos(args)], axis=-1)
    q = lambda x: x.astype(jnp.bfloat16).astype(jnp.float32)
    h = q(emb) @ q(w1) + b1
    h = jax.nn.silu(h)
    return q(h) @ q(w2) + b2


if __name__ == "__main__":
    key = jax.random.PRNGKey(0)
    k1, k2, k3, k4, k5 = jax.random.split(key, 5)

    # PyTorch Linear weights are (out, in); stored transposed as (in, out) for x @ W.
    w1 = (jax.random.normal(k1, (TIME_EMB_DIMS, TIME_EMB_DIMS_EXP), jnp.float32)
          * (1.0 / math.sqrt(TIME_EMB_DIMS)))
    b1 = jax.random.normal(k2, (TIME_EMB_DIMS_EXP,), jnp.float32) * 0.01
    w2 = (jax.random.normal(k3, (TIME_EMB_DIMS_EXP, TIME_EMB_DIMS_EXP), jnp.float32)
          * (1.0 / math.sqrt(TIME_EMB_DIMS_EXP)))
    b2 = jax.random.normal(k4, (TIME_EMB_DIMS_EXP,), jnp.float32) * 0.01

    # Example input: batch of 8 integer timesteps in [0, total_time_steps).
    B = 8
    time = jax.random.randint(k5, (B,), 0, TOTAL_TIME_STEPS, dtype=jnp.int32)

    # One-time table build ("module init"), then the per-step forward is a row gather.
    table = jax.block_until_ready(build_time_embedding_table(w1, b1, w2, b2))
    out = jax.block_until_ready(sinusoidal_position_embeddings(time, table))

    ref = _reference(time, w1, b1, w2, b2)
    assert out.shape == (B, TIME_EMB_DIMS_EXP), out.shape
    assert jnp.allclose(out, ref, rtol=1e-3, atol=1e-3), "mismatch vs reference"
    print("KERNEL_OK")
</pallas_src>

<mosaic_0001>
module attributes {stable_mosaic.version = 11 : i64} {
  func.func @_table_build_kernel(%arg0: i32, %arg1: memref<128x512xbf16, #tpu.memory_space<vmem>>, %arg2: memref<1x512xf32, #tpu.memory_space<vmem>>, %arg3: memref<512x512xbf16, #tpu.memory_space<vmem>>, %arg4: memref<1x512xf32, #tpu.memory_space<vmem>>, %arg5: memref<128x512xf32, #tpu.memory_space<vmem>>) attributes {dimension_semantics = [#tpu.dimension_semantics<arbitrary>], iteration_bounds = array<i64: 8>, scalar_prefetch = 0 : i64, scratch_operands = 0 : i64, tpu.core_type = #tpu.core_type<tc>, window_params = [{pipeline_mode = #tpu.pipeline_mode<synchronous>, transform_indices = @transform_0, window_bounds = array<i64: 128, 512>}, {pipeline_mode = #tpu.pipeline_mode<synchronous>, transform_indices = @transform_1, window_bounds = array<i64: 1, 512>}, {pipeline_mode = #tpu.pipeline_mode<synchronous>, transform_indices = @transform_2, window_bounds = array<i64: 512, 512>}, {pipeline_mode = #tpu.pipeline_mode<synchronous>, transform_indices = @transform_3, window_bounds = array<i64: 1, 512>}, {transform_indices = @transform_4, window_bounds = array<i64: 128, 512>}]} {
    %c128_i32 = arith.constant 128 : i32
    %0 = arith.muli %arg0, %c128_i32 : i32
    %1 = arith.sitofp %0 : i32 to f32
    %2 = tpu.iota {dimensions = array<i32: 0>} : vector<128x1xi32>
    %3 = arith.sitofp %2 : vector<128x1xi32> to vector<128x1xf32>
    %4 = vector.broadcast %1 : f32 to vector<128x1xf32>
    %5 = arith.addf %3, %4 : vector<128x1xf32>
    %6 = tpu.iota {dimensions = array<i32: 1>} : vector<1x128xi32>
    %c64_i32 = arith.constant 64 : i32
    %7 = vector.broadcast %c64_i32 : i32 to vector<1x128xi32>
    %8 = arith.cmpi slt, %6, %7 : vector<1x128xi32>
    %c64_i32_0 = arith.constant 64 : i32
    %9 = vector.broadcast %c64_i32_0 : i32 to vector<1x128xi32>
    %10 = arith.subi %6, %9 : vector<1x128xi32>
    %11 = arith.select %8, %6, %10 : vector<1x128xi1>, vector<1x128xi32>
    %12 = arith.sitofp %11 : vector<1x128xi32> to vector<1x128xf32>
    %cst = arith.constant -0.146195874 : f32
    %13 = vector.broadcast %cst : f32 to vector<1x128xf32>
    %14 = arith.mulf %12, %13 : vector<1x128xf32>
    %15 = math.exp %14 : vector<1x128xf32>
    %16 = vector.broadcast %5 : vector<128x1xf32> to vector<128x128xf32>
    %17 = vector.broadcast %15 : vector<1x128xf32> to vector<128x128xf32>
    %18 = arith.mulf %16, %17 : vector<128x128xf32>
    %c64_i32_1 = arith.constant 64 : i32
    %19 = vector.broadcast %c64_i32_1 : i32 to vector<1x128xi32>
    %20 = arith.cmpi slt, %6, %19 : vector<1x128xi32>
    %21 = math.sin %18 : vector<128x128xf32>
    %22 = math.cos %18 : vector<128x128xf32>
    %23 = vector.shape_cast %20 : vector<1x128xi1> to vector<1x128xi1>
    %24 = vector.broadcast %23 : vector<1x128xi1> to vector<128x128xi1>
    %25 = arith.select %24, %21, %22 : vector<128x128xi1>, vector<128x128xf32>
    %26 = arith.truncf %25 : vector<128x128xf32> to vector<128x128xbf16>
    %c0 = arith.constant 0 : index
    %c0_2 = arith.constant 0 : index
    %27 = vector.load %arg1[%c0, %c0_2] : memref<128x512xbf16, #tpu.memory_space<vmem>>, vector<128x512xbf16>
    %cst_3 = arith.constant dense<0.000000e+00> : vector<128x512xf32>
    %28 = tpu.matmul %26, %27, %cst_3 {dimension_numbers = #tpu.dot_dimension_numbers<[1], [0], [0], [1], [0, 0, 1, 1], [], []>} : vector<128x128xbf16>, vector<128x512xbf16>, vector<128x512xf32> -> vector<128x512xf32>
    %c0_4 = arith.constant 0 : index
    %c0_5 = arith.constant 0 : index
    %29 = vector.load %arg2[%c0_4, %c0_5] : memref<1x512xf32, #tpu.memory_space<vmem>>, vector<1x512xf32>
    %30 = vector.broadcast %29 : vector<1x512xf32> to vector<128x512xf32>
    %31 = arith.addf %28, %30 : vector<128x512xf32>
    %32 = arith.negf %31 : vector<128x512xf32>
    %33 = math.exp %32 : vector<128x512xf32>
    %cst_6 = arith.constant 1.000000e+00 : f32
    %34 = vector.broadcast %cst_6 : f32 to vector<128x512xf32>
    %35 = arith.addf %34, %33 : vector<128x512xf32>
    %36 = arith.divf %34, %35 : vector<128x512xf32>
    %37 = arith.mulf %31, %36 : vector<128x512xf32>
    %38 = arith.truncf %37 : vector<128x512xf32> to vector<128x512xbf16>
    %c0_7 = arith.constant 0 : index
    %c0_8 = arith.constant 0 : index
    %39 = vector.load %arg3[%c0_7, %c0_8] : memref<512x512xbf16, #tpu.memory_space<vmem>>, vector<512x512xbf16>
    %cst_9 = arith.constant dense<0.000000e+00> : vector<128x512xf32>
    %40 = tpu.matmul %38, %39, %cst_9 {dimension_numbers = #tpu.dot_dimension_numbers<[1], [0], [0], [1], [0, 0, 1, 1], [], []>} : vector<128x512xbf16>, vector<512x512xbf16>, vector<128x512xf32> -> vector<128x512xf32>
    %c0_10 = arith.constant 0 : index
    %c0_11 = arith.constant 0 : index
    %41 = vector.load %arg4[%c0_10, %c0_11] : memref<1x512xf32, #tpu.memory_space<vmem>>, vector<1x512xf32>
    %42 = vector.broadcast %41 : vector<1x512xf32> to vector<128x512xf32>
    %43 = arith.addf %40, %42 : vector<128x512xf32>
    %c0_12 = arith.constant 0 : index
    %c0_13 = arith.constant 0 : index
    %44 = vector.load %arg5[%c0_12, %c0_13] : memref<128x512xf32, #tpu.memory_space<vmem>>, vector<128x512xf32>
    tpu.vector_store %arg5[%c0_12, %c0_13], %43 {strides = array<i32>} : memref<128x512xf32, #tpu.memory_space<vmem>>, vector<128x512xf32>,
    return
  }
  func.func @transform_0(%arg0: i32) -> (i32, i32) {
    %c0_i32 = arith.constant 0 : i32
    %c0_i32_0 = arith.constant 0 : i32
    %c0_i32_1 = arith.constant 0 : i32
    return %c0_i32, %c0_i32_0 : i32, i32
  }
  func.func @transform_1(%arg0: i32) -> (i32, i32) {
    %c0_i32 = arith.constant 0 : i32
    %c0_i32_0 = arith.constant 0 : i32
    %c0_i32_1 = arith.constant 0 : i32
    return %c0_i32, %c0_i32_0 : i32, i32
  }
  func.func @transform_2(%arg0: i32) -> (i32, i32) {
    %c0_i32 = arith.constant 0 : i32
    %c0_i32_0 = arith.constant 0 : i32
    %c0_i32_1 = arith.constant 0 : i32
    return %c0_i32, %c0_i32_0 : i32, i32
  }
  func.func @transform_3(%arg0: i32) -> (i32, i32) {
    %c0_i32 = arith.constant 0 : i32
    %c0_i32_0 = arith.constant 0 : i32
    %c0_i32_1 = arith.constant 0 : i32
    return %c0_i32, %c0_i32_0 : i32, i32
  }
  func.func @transform_4(%arg0: i32) -> (i32, i32) {
    %c0_i32 = arith.constant 0 : i32
    %c0_i32_0 = arith.constant 0 : i32
    return %arg0, %c0_i32 : i32, i32
  }
}

</mosaic_0001>

<llo_original>
// kernel: tpu_custom_call.1
$region0: #{tpu_custom_call.1}
  #allocation0 [shape = 'u32[]', space=smem, size = 0x4, offset = 0x4, fixed_abs, tag = 'smem constant byte address 0x4 - core index']
  #allocation1 [shape = 'u32[144,128]{1,0:T(1,128)}', space=vmem, size = 0x12000, scoped, tag = 'internal scratch']
  %s0 = inlined_call_operand.hbm [shape: bf16[128,512], index: 0, kind: input, shape index: {}]
  %s1 = inlined_call_operand.hbm [shape: f32[1,512], index: 1, kind: input, shape index: {}]
  %s2 = inlined_call_operand.hbm [shape: bf16[512,512], index: 2, kind: input, shape index: {}]
  %s3 = inlined_call_operand.hbm [shape: f32[1,512], index: 3, kind: input, shape index: {}]
  %s4 = inlined_call_operand.hbm [shape: f32[1024,512], index: 4, kind: output, shape index: {}]
  %s5 = sld [smem:[#allocation0]]
  $region65: #{tpu_custom_call.1} parent=0
    _
  %s7 = ssub.s32 1, %s5
  %s8 = scalar_select 0, %s7, %s5
  $region1: #{tpu_custom_call.1} parent=0
    #allocation2 [shape = 'u8[131072]{0}', space=vmem, size = 0x20000, scoped, tag = 'input window, operand 0, single buffered']
    #allocation3 [shape = 's32[2]{0}', space=sflag, size = 0x8, scoped, tag = 'scoped memory for tpu_custom_call.1']
    #allocation4 [shape = 's32[2]{0}', space=sflag, size = 0x8, scoped, tag = 'scoped memory for tpu_custom_call.1']
    #allocation5 [shape = 'u8[2048]{0}', space=vmem, size = 0x800, scoped, tag = 'input window, operand 1, single buffered']
    #allocation6 [shape = 's32[1]{0}', space=sflag, size = 0x4, scoped, tag = 'scoped memory for tpu_custom_call.1']
    #allocation7 [shape = 'u8[524288]{0}', space=vmem, size = 0x80000, scoped, tag = 'input window, operand 2, single buffered']
    #allocation8 [shape = 'u8[2048]{0}', space=vmem, size = 0x800, scoped, tag = 'input window, operand 3, single buffered']
    #allocation9 [shape = 's32[1]{0}', space=sflag, size = 0x4, scoped, tag = 'scoped memory for tpu_custom_call.1']
    #allocation10 [shape = 'u8[524288]{0}', space=vmem, size = 0x80000, scoped, tag = 'output window, operand 0']
    %9 = vsyncpa [#allocation3], 0
    %10 = vsyncpa [#allocation6], 0
    %11 = vsyncpa [#allocation9], 0
    %12 = vsyncpa [#allocation4], 0
    %s13 = scalar_lea.sflag [#allocation4], 1
    %14 = vsyncpa %s13, 0
    loop: start=0, step=1, limit=10
    $region2: #{tpu_custom_call.1} parent=1 // loop_pre_header
      _
    $region3: #{tpu_custom_call.1} parent=1 // loop_header
      %s16 = sphi 0, %s20
      %p17 = scmp.ge.s32.totalorder %s16, 10
      %s24 = sphi 0, %s24
      %s26 = sphi 0, %s24
      %s27 = sphi 0, %s26
      %s41 = sphi 0, %s27
      %s45 = sphi 0, %s45
      %s47 = sphi 0, %s45
      %s48 = sphi 0, %s47
      %s62 = sphi 0, %s48
      %s66 = sphi 0, %s66
      %s68 = sphi 0, %s66
      %s69 = sphi 0, %s68
      %s83 = sphi 0, %s69
      %s87 = sphi 0, %s87
      %s89 = sphi 0, %s87
      %s90 = sphi 0, %s89
      %s104 = sphi 0, %s90
      %s110 = sphi 0, %s112
      %s113 = sphi 0, %s110
      %s114 = sphi 0, %s113
      %s130 = sphi 0, %s114
    $region4: #{tpu_custom_call.1} parent=1 // loop_header_branch
      %19 = sbr.rel (%p17) target = $region8
    $region5: #{tpu_custom_call.1} parent=1 // loop_body
      %s21 = ssub.s32 %s16, 1
      %s22 = ssub.s32 %s16, 2
      %s23 = sadd.s32 %s16, 1
      %s25 = sadd.s32 %s24, 1
      %p28 = scmp.eq.s32.totalorder %s16, 7
      %p29 = scmp.ne.s32.totalorder %s24, %s26
      %p30 = scmp.eq.s32.totalorder %s16, 0
      %p31 = por %p29, %p30
      %p32 = scmp.ne.s32.totalorder %s24, %s26
      %p33 = scmp.eq.s32.totalorder %s21, 7
      %p34 = por %p32, %p33
      %p35 = scmp.ne.s32.totalorder %s26, %s27
      %p36 = scmp.eq.s32.totalorder %s21, 0
      %p37 = por %p35, %p36
      %p38 = scmp.ne.s32.totalorder %s26, %s27
      %p39 = scmp.eq.s32.totalorder %s22, 7
      %p40 = por %p38, %p39
      %p42 = scmp.ne.s32.totalorder %s27, %s41
      %p43 = scmp.eq.s32.totalorder %s22, 0
      %p44 = por %p42, %p43
      %s46 = sadd.s32 %s45, 1
      %p49 = scmp.eq.s32.totalorder %s16, 7
      %p50 = scmp.ne.s32.totalorder %s45, %s47
      %p51 = scmp.eq.s32.totalorder %s16, 0
      %p52 = por %p50, %p51
      %p53 = scmp.ne.s32.totalorder %s45, %s47
      %p54 = scmp.eq.s32.totalorder %s21, 7
      %p55 = por %p53, %p54
      %p56 = scmp.ne.s32.totalorder %s47, %s48
      %p57 = scmp.eq.s32.totalorder %s21, 0
      %p58 = por %p56, %p57
      %p59 = scmp.ne.s32.totalorder %s47, %s48
      %p60 = scmp.eq.s32.totalorder %s22, 7
      %p61 = por %p59, %p60
      %p63 = scmp.ne.s32.totalorder %s48, %s62
      %p64 = scmp.eq.s32.totalorder %s22, 0
      %p65 = por %p63, %p64
      %s67 = sadd.s32 %s66, 1
      %p70 = scmp.eq.s32.totalorder %s16, 7
      %p71 = scmp.ne.s32.totalorder %s66, %s68
      %p72 = scmp.eq.s32.totalorder %s16, 0
      %p73 = por %p71, %p72
      %p74 = scmp.ne.s32.totalorder %s66, %s68
      %p75 = scmp.eq.s32.totalorder %s21, 7
      %p76 = por %p74, %p75
      %p77 = scmp.ne.s32.totalorder %s68, %s69
      %p78 = scmp.eq.s32.totalorder %s21, 0
      %p79 = por %p77, %p78
      %p80 = scmp.ne.s32.totalorder %s68, %s69
      %p81 = scmp.eq.s32.totalorder %s22, 7
      %p82 = por %p80, %p81
      %p84 = scmp.ne.s32.totalorder %s69, %s83
      %p85 = scmp.eq.s32.totalorder %s22, 0
      %p86 = por %p84, %p85
      %s88 = sadd.s32 %s87, 1
      %p91 = scmp.eq.s32.totalorder %s16, 7
      %p92 = scmp.ne.s32.totalorder %s87, %s89
      %p93 = scmp.eq.s32.totalorder %s16, 0
      %p94 = por %p92, %p93
      %p95 = scmp.ne.s32.totalorder %s87, %s89
      %p96 = scmp.eq.s32.totalorder %s21, 7
      %p97 = por %p95, %p96
      %p98 = scmp.ne.s32.totalorder %s89, %s90
      %p99 = scmp.eq.s32.totalorder %s21, 0
      %p100 = por %p98, %p99
      %p101 = scmp.ne.s32.totalorder %s89, %s90
      %p102 = scmp.eq.s32.totalorder %s22, 7
      %p103 = por %p101, %p102
      %p105 = scmp.ne.s32.totalorder %s90, %s104
      %p106 = scmp.eq.s32.totalorder %s22, 0
      %p107 = por %p105, %p106
      %s108 = ssub.s32 %s16, %s23
      %p109 = scmp.eq.s32.totalorder %s108, 0
      %s111 = sadd.s32 %s110, 1
      %s112 = scalar_select %p109, %s110, %s111
      %p115 = pneg %p109
      %p116 = scmp.eq.s32.totalorder %s16, 7
      %p117 = por %p115, %p116
      %p118 = scmp.ne.s32.totalorder %s110, %s113
      %p119 = scmp.eq.s32.totalorder %s16, 0
      %p120 = por %p118, %p119
      %p121 = scmp.ne.s32.totalorder %s110, %s113
      %p122 = scmp.eq.s32.totalorder %s21, 7
      %p123 = por %p121, %p122
      %p124 = scmp.ne.s32.totalorder %s113, %s114
      %p125 = scmp.eq.s32.totalorder %s21, 0
      %p126 = por %p124, %p125
      %p127 = scmp.ne.s32.totalorder %s113, %s114
      %p128 = scmp.eq.s32.totalorder %s22, 7
      %p129 = por %p127, %p128
      %p131 = scmp.ne.s32.totalorder %s114, %s130
      %p132 = scmp.eq.s32.totalorder %s22, 0
      %p133 = por %p131, %p132
      %p134 = scmp.le.s32.totalorder 1, %s16
      %p135 = scmp.lt.s32.totalorder %s16, 9
      %p136 = pnand %p134, %p135
      %p137 = pneg %p136
      // Predicated region
      $region9: #{tpu_custom_call.1} parent=5 // pred_check
        _
      $region10: #{tpu_custom_call.1} parent=5 // pred_check_branch
        %139 = sbr.rel (%p136) target = $region12
      $region11: #{tpu_custom_call.1} parent=5 // pred_region
        %s140 = ssub.s32 %s16, 1
        // Predicated region
        $region13: #{tpu_custom_call.1} parent=11 // pred_check
          %p141 = pneg %p37
        $region14: #{tpu_custom_call.1} parent=11 // pred_check_branch
          %143 = sbr.rel (%p141) target = $region16
        $region15: #{tpu_custom_call.1} parent=11 // pred_region
          %s145 = ssub.s32 4096, 4096
          %146 = vsyncadd [#allocation3], %s145
          %s147 = sshll.u32 [#allocation2], 4
          %s148 = int_to_ptr.vmem [resolvable:$true] %s147
          %153 = dma.hbm_to_vmem [thread:$0]  %s0, 4096, %s148, [#allocation3], 256, 256, 16
        $region16: #{tpu_custom_call.1} parent=11 // pred_fallthru
          _
        // Predicated region
        $region17: #{tpu_custom_call.1} parent=11 // pred_check
          %p154 = pneg %p58
        $region18: #{tpu_custom_call.1} parent=11 // pred_check_branch
          %156 = sbr.rel (%p154) target = $region20
        $region19: #{tpu_custom_call.1} parent=11 // pred_region
          %s158 = ssub.s32 64, 64
          %159 = vsyncadd [#allocation6], %s158
          %s161 = sshll.u32 [#allocation5], 4
          %s162 = int_to_ptr.vmem [resolvable:$true] %s161
          %164 = dma.hbm_to_vmem [thread:$0]  %s1, 64, %s162, [#allocation6]
        $region20: #{tpu_custom_call.1} parent=11 // pred_fallthru
          _
        // Predicated region
        $region21: #{tpu_custom_call.1} parent=11 // pred_check
          %p165 = pneg %p79
        $region22: #{tpu_custom_call.1} parent=11 // pred_check_branch
          %167 = sbr.rel (%p165) target = $region24
        $region23: #{tpu_custom_call.1} parent=11 // pred_region
          %s169 = ssub.s32 16384, 16384
          %170 = vsyncadd [#allocation6], %s169
          %s171 = sshll.u32 [#allocation7], 4
          %s172 = int_to_ptr.vmem [resolvable:$true] %s171
          %177 = dma.hbm_to_vmem [thread:$0]  %s2, 16384, %s172, [#allocation6], 256, 256, 16
        $region24: #{tpu_custom_call.1} parent=11 // pred_fallthru
          _
        // Predicated region
        $region25: #{tpu_custom_call.1} parent=11 // pred_check
          %p178 = pneg %p100
        $region26: #{tpu_custom_call.1} parent=11 // pred_check_branch
          %180 = sbr.rel (%p178) target = $region28
        $region27: #{tpu_custom_call.1} parent=11 // pred_region
          %s182 = ssub.s32 64, 64
          %183 = vsyncadd [#allocation9], %s182
          %s185 = sshll.u32 [#allocation8], 4
          %s186 = int_to_ptr.vmem [resolvable:$true] %s185
          %188 = dma.hbm_to_vmem [thread:$0]  %s3, 64, %s186, [#allocation9]
        $region28: #{tpu_custom_call.1} parent=11 // pred_fallthru
          _
      $region12: #{tpu_custom_call.1} parent=5 // pred_fallthru
        _
      %p189 = scmp.lt.s32.totalorder %s16, 8
      // Predicated region
      $region29: #{tpu_custom_call.1} parent=5 // pred_check
        %p190 = pneg %p189
      $region30: #{tpu_custom_call.1} parent=5 // pred_check_branch
        %192 = sbr.rel (%p190) target = $region32
      $region31: #{tpu_custom_call.1} parent=5 // pred_region
        _
      $region32: #{tpu_custom_call.1} parent=5 // pred_fallthru
        _
      %p193 = scmp.le.s32.totalorder 1, %s16
      %p194 = scmp.lt.s32.totalorder %s16, 9
      %p195 = pnand %p193, %p194
      %p196 = pneg %p195
      // Predicated region
      $region33: #{tpu_custom_call.1} parent=5 // pred_check
        _
      $region34: #{tpu_custom_call.1} parent=5 // pred_check_branch
        %198 = sbr.rel (%p195) target = $region36
      $region35: #{tpu_custom_call.1} parent=5 // pred_region
        %s199 = ssub.s32 %s16, 1
        // Predicated region
        $region37: #{tpu_custom_call.1} parent=35 // pred_check
          %p200 = pneg %p37
        $region38: #{tpu_custom_call.1} parent=35 // pred_check_branch
          %202 = sbr.rel (%p200) target = $region40
        $region39: #{tpu_custom_call.1} parent=35 // pred_region
          %203 = dma.done [#allocation3], 4096
        $region40: #{tpu_custom_call.1} parent=35 // pred_fallthru
          _
        // Predicated region
        $region41: #{tpu_custom_call.1} parent=35 // pred_check
          %p204 = pneg %p58
        $region42: #{tpu_custom_call.1} parent=35 // pred_check_branch
          %206 = sbr.rel (%p204) target = $region44
        $region43: #{tpu_custom_call.1} parent=35 // pred_region
          %207 = dma.done [#allocation6], 64
        $region44: #{tpu_custom_call.1} parent=35 // pred_fallthru
          _
        // Predicated region
        $region45: #{tpu_custom_call.1} parent=35 // pred_check
          %p208 = pneg %p79
        $region46: #{tpu_custom_call.1} parent=35 // pred_check_branch
          %210 = sbr.rel (%p208) target = $region48
        $region47: #{tpu_custom_call.1} parent=35 // pred_region
          %211 = dma.done [#allocation6], 16384
        $region48: #{tpu_custom_call.1} parent=35 // pred_fallthru
          _
        // Predicated region
        $region49: #{tpu_custom_call.1} parent=35 // pred_check
          %p212 = pneg %p100
        $region50: #{tpu_custom_call.1} parent=35 // pred_check_branch
          %214 = sbr.rel (%p212) target = $region52
        $region51: #{tpu_custom_call.1} parent=35 // pred_region
          %215 = dma.done [#allocation9], 64
        $region52: #{tpu_custom_call.1} parent=35 // pred_fallthru
          _
        %p216 = pneg %p37
        %p217 = pneg %p34
        %p218 = pneg %p58
        %p219 = pneg %p55
        %p220 = pneg %p79
        %p221 = pneg %p76
        %p222 = pneg %p100
        %p223 = pneg %p97
        %p224 = pneg %p126
        %p225 = pneg %p123
        %s226 = sand.u32 %s113, 1
        %s227 = scalar_lea.sflag [#allocation4], %s226
        %s228 = sand.u32 %s113, 1
        %s229 = smul.addr %s228, 512
        %s230 = scalar_lea.vmem [#allocation10], %s229
        %s231 = smul.u32 16, %s21
        %s233 = smul.u32 %s21, 128
        %s234 = scvt.s32.f32 %s233
        %v235 = vlaneseq
        %v236 = vshrl.u32 %v235, 7
        %v237 = vadd.s32 %v236, 8
        %v238 = vadd.s32 %v236, 16
        %v239 = vadd.s32 %v236, 24
        %v240 = vadd.s32 %v236, 32
        %v241 = vadd.s32 %v236, 40
        %v242 = vadd.s32 %v236, 48
        %v243 = vadd.s32 %v236, 56
        %v244 = vadd.s32 %v236, 64
        %v245 = vadd.s32 %v236, 72
        %v246 = vadd.s32 %v236, 80
        %v247 = vadd.s32 %v236, 88
        %v248 = vadd.s32 %v236, 96
        %v249 = vadd.s32 %v236, 104
        %v250 = vadd.s32 %v236, 112
        %v251 = vadd.s32 %v236, 120
        %v252 = vcvt.s32.f32 %v236
        %v253 = vcvt.s32.f32 %v237
        %v254 = vcvt.s32.f32 %v238
        %v255 = vcvt.s32.f32 %v239
        %v256 = vcvt.s32.f32 %v240
        %v257 = vcvt.s32.f32 %v241
        %v258 = vcvt.s32.f32 %v242
        %v259 = vcvt.s32.f32 %v243
        %v260 = vcvt.s32.f32 %v244
        %v261 = vcvt.s32.f32 %v245
        %v262 = vcvt.s32.f32 %v246
        %v263 = vcvt.s32.f32 %v247
        %v264 = vcvt.s32.f32 %v248
        %v265 = vcvt.s32.f32 %v249
        %v266 = vcvt.s32.f32 %v250
        %v267 = vcvt.s32.f32 %v251
        %v268 = vstv %s234
        %v269 = vadd.f32 %v252, %v268
        %v270 = vadd.f32 %v253, %v268
        %v271 = vadd.f32 %v254, %v268
        %v272 = vadd.f32 %v255, %v268
        %v273 = vadd.f32 %v256, %v268
        %v274 = vadd.f32 %v257, %v268
        %v275 = vadd.f32 %v258, %v268
        %v276 = vadd.f32 %v259, %v268
        %v277 = vadd.f32 %v260, %v268
        %v278 = vadd.f32 %v261, %v268
        %v279 = vadd.f32 %v262, %v268
        %v280 = vadd.f32 %v263, %v268
        %v281 = vadd.f32 %v264, %v268
        %v282 = vadd.f32 %v265, %v268
        %v283 = vadd.f32 %v266, %v268
        %v284 = vadd.f32 %v267, %v268
        %v285 = vlaneseq
        %v286 = vand.u32 %v285, 127
        %vm287 = vcmp.lt.s32.totalorder %v286, 64
        %v288 = vsub.s32 %v286, 64
        %v289 = vsel %vm287, %v286, %v288
        %v290 = vcvt.s32.f32 %v289
        %v291 = vmul.f32 %v290, -0.14619587
        %v292 = vmul.f32 %v291, 1.442695
        %v293 = vpow.pop %v292
        %v294 = vmul.f32 %v269, %v293
        %v295 = vmul.f32 %v270, %v293
        %v296 = vmul.f32 %v271, %v293
        %v297 = vmul.f32 %v272, %v293
        %v298 = vmul.f32 %v273, %v293
        %v299 = vmul.f32 %v274, %v293
        %v300 = vmul.f32 %v275, %v293
        %v301 = vmul.f32 %v276, %v293
        %v302 = vmul.f32 %v277, %v293
        %v303 = vmul.f32 %v278, %v293
        %v304 = vmul.f32 %v279, %v293
        %v305 = vmul.f32 %v280, %v293
        %v306 = vmul.f32 %v281, %v293
        %v307 = vmul.f32 %v282, %v293
        %v308 = vmul.f32 %v283, %v293
        %v309 = vmul.f32 %v284, %v293
        %v310 = vand.u32 2147483647, %v294
        %vm311 = vcmp.le.f32.partialorder %v310, 0.7853982
        %vm312 = vcmp.lt.s32.totalorder %v294, 0
        %v313 = vand.u32 %v294, 2139095040
        %v314 = vshrl.u32 %v313, 23
        %v315 = vsub.s32 %v314, 127
        %v316 = vand.u32 2147483647, %v294
        %v317 = vand.u32 %v316, 8388607
        %v318 = vor.u32 %v317, 8388608
        %v319 = vsub.s32 0, %v318
        %v320 = vadd.s32 %v315, 1
        %vm321 = vcmp.gt.s32.totalorder %v320, 0
        %v322 = vsel %vm321, %v320, 0
        %v323 = vshrl.u32 %v322, 5
        %v324 = vand.u32 %v322, 31
        %v325 = vsub.s32 32, %v324
        %v326 = vshrl.u32 683565275, %v325
        %v327 = vshll.u32 683565275, %v324
        %v328 = vshrl.u32 2475754826, %v325
        %v329 = vor.u32 %v327, %v328
        %v330 = vshll.u32 2475754826, %v324
        %v331 = vshrl.u32 2131351028, %v325
        %v332 = vor.u32 %v330, %v331
        %v333 = vshll.u32 2131351028, %v324
        %v334 = vshrl.u32 2102212464, %v325
        %v335 = vor.u32 %v333, %v334
        %v336 = vshll.u32 2102212464, %v324
        %v337 = vshrl.u32 920167782, %v325
        %v338 = vor.u32 %v336, %v337
        %v339 = vshll.u32 920167782, %v324
        %v340 = vshrl.u32 1326507024, %v325
        %v341 = vor.u32 %v339, %v340
        %vm342 = vcmp.lt.s32.totalorder %v323, 1
        %vm343 = vcmp.lt.s32.totalorder %v323, 2
        %vm344 = vcmp.lt.s32.totalorder %v323, 3
        %vm345 = vcmp.lt.s32.totalorder %v323, 4
        %v346 = vsel %vm342, %v326, %v329
        %v347 = vsel %vm345, %v335, 2102212464
        %v348 = vsel %vm344, %v332, %v347
        %v349 = vsel %vm343, %v346, %v348
        %v350 = vsel %vm342, %v329, %v332
        %v351 = vsel %vm345, %v338, 920167782
        %v352 = vsel %vm344, %v335, %v351
        %v353 = vsel %vm343, %v350, %v352
        %v354 = vsel %vm342, %v332, %v335
        %v355 = vsel %vm345, %v341, 1326507024
        %v356 = vsel %vm344, %v338, %v355
        %v357 = vsel %vm343, %v354, %v356
        %v358 = vshll.u32 %v318, 8
        %v359 = vmul.u32.u64.compose %v358, %v357
        %v360 = vextract.low.u32 %v359
        %v361 = vextract.high.u32 %v359
        %v362 = vmul.u32.u64.compose %v358, %v353
        %v363 = vextract.low.u32 %v362
        %v364 = vextract.high.u32 %v362
        %v365 = vmul.u32 %v358, %v349
        %v366 = vadd.s32 %v361, %v363
        %vm367 = vc.u32 %v361, %v363
        %v368 = vadd.s32 %v364, 1
        %v369 = vsel %vm367, %v368, %v364
        %v370 = vadd.s32 %v365, %v369
        %v371 = vadd.s32 %v370, 536870912
        %v372 = vshrl.u32 %v371, 30
        %v373 = vshll.u32 %v372, 30
        %v374 = vsub.s32 %v370, %v373
        %vm375 = vcmp.lt.s32.totalorder %v374, 0
        %v376 = vsub.s32 0, %v374
        %v377 = vsel %vm375, %v376, %v374
        %v378 = vclz %v377
        %v379 = vsub.s32 %v378, 2
        %vm380 = vcmp.gt.s32.totalorder 0, %v379
        %v381 = vsel %vm380, 0, %v379
        %v382 = vsub.s32 32, %v381
        %v383 = vshll.u32 %v374, %v381
        %v384 = vshrl.u32 %v366, %v382
        %v385 = vor.u32 %v383, %v384
        %v386 = vsub.s32 4294967266, %v381
        %v387 = vadd.s32 %v386, 127
        %v388 = vshll.u32 %v387, 23
        %v389 = vor.u32 4788187, %v388
        %v390 = vand.u32 2147483647, %v389
        %v392 = vcvt.s32.f32 %v385
        %v393 = vmul.f32 %v392, %v390
        %v394 = vxor.u32 %v393, 2147483648
        %v395 = vsel %vm312, %v394, %v393
        %v396 = vsub.s32 4, %v372
        %v397 = vsel %vm312, %v396, %v372
        %v398 = vsel %vm311, %v294, %v395
        %v399 = vsel %vm311, 0, %v397
        %v400 = vcosq.f32.pop %v398
        %v401 = vsinq.f32.pop %v398
        %vm402 = vweird.f32 %v294
        %v403 = vadd.s32 %v399, 3
        %v404 = vand.u32 %v403, 3
        %vm405 = vcmp.lt.s32.totalorder %v404, 2
        %vm406 = vcmp.eq.s32.totalorder %v404, 0
        %v407 = vxor.u32 %v401, 2147483648
        %v408 = vsel %vm406, %v400, %v407
        %vm409 = vcmp.eq.s32.totalorder %v404, 2
        %v410 = vxor.u32 %v400, 2147483648
        %v411 = vsel %vm409, %v410, %v401
        %v412 = vsel %vm405, %v408, %v411
        %v413 = vsel %vm402, nan, %v412
        %v414 = vand.u32 2147483647, %v295
        %vm415 = vcmp.le.f32.partialorder %v414, 0.7853982
        %vm416 = vcmp.lt.s32.totalorder %v295, 0
        %v417 = vand.u32 %v295, 2139095040
        %v418 = vshrl.u32 %v417, 23
        %v419 = vsub.s32 %v418, 127
        %v420 = vand.u32 2147483647, %v295
        %v421 = vand.u32 %v420, 8388607
        %v422 = vor.u32 %v421, 8388608
        %v423 = vsub.s32 0, %v422
        %v424 = vadd.s32 %v419, 1
        %vm425 = vcmp.gt.s32.totalorder %v424, 0
        %v426 = vsel %vm425, %v424, 0
        %v427 = vshrl.u32 %v426, 5
        %v428 = vand.u32 %v426, 31
        %v429 = vsub.s32 32, %v428
        %v430 = vshrl.u32 683565275, %v429
        %v431 = vshll.u32 683565275, %v428
        %v432 = vshrl.u32 2475754826, %v429
        %v433 = vor.u32 %v431, %v432
        %v434 = vshll.u32 2475754826, %v428
        %v435 = vshrl.u32 2131351028, %v429
        %v436 = vor.u32 %v434, %v435
        %v437 = vshll.u32 2131351028, %v428
        %v438 = vshrl.u32 2102212464, %v429
        %v439 = vor.u32 %v437, %v438
        %v440 = vshll.u32 2102212464, %v428
        %v441 = vshrl.u32 920167782, %v429
        %v442 = vor.u32 %v440, %v441
        %v443 = vshll.u32 920167782, %v428
        %v444 = vshrl.u32 1326507024, %v429
        %v445 = vor.u32 %v443, %v444
        %vm446 = vcmp.lt.s32.totalorder %v427, 1
        %vm447 = vcmp.lt.s32.totalorder %v427, 2
        %vm448 = vcmp.lt.s32.totalorder %v427, 3
        %vm449 = vcmp.lt.s32.totalorder %v427, 4
        %v450 = vsel %vm446, %v430, %v433
        %v451 = vsel %vm449, %v439, 2102212464
        %v452 = vsel %vm448, %v436, %v451
        %v453 = vsel %vm447, %v450, %v452
        %v454 = vsel %vm446, %v433, %v436
        %v455 = vsel %vm449, %v442, 920167782
        %v456 = vsel %vm448, %v439, %v455
        %v457 = vsel %vm447, %v454, %v456
        %v458 = vsel %vm446, %v436, %v439
        %v459 = vsel %vm449, %v445, 1326507024
        %v460 = vsel %vm448, %v442, %v459
        %v461 = vsel %vm447, %v458, %v460
        %v462 = vshll.u32 %v422, 8
        %v463 = vmul.u32.u64.compose %v462, %v461
        %v464 = vextract.low.u32 %v463
        %v465 = vextract.high.u32 %v463
        %v466 = vmul.u32.u64.compose %v462, %v457
        %v467 = vextract.low.u32 %v466
        %v468 = vextract.high.u32 %v466
        %v469 = vmul.u32 %v462, %v453
        %v470 = vadd.s32 %v465, %v467
        %vm471 = vc.u32 %v465, %v467
        %v472 = vadd.s32 %v468, 1
        %v473 = vsel %vm471, %v472, %v468
        %v474 = vadd.s32 %v469, %v473
        %v475 = vadd.s32 %v474, 536870912
        %v476 = vshrl.u32 %v475, 30
        %v477 = vshll.u32 %v476, 30
        %v478 = vsub.s32 %v474, %v477
        %vm479 = vcmp.lt.s32.totalorder %v478, 0
        %v480 = vsub.s32 0, %v478
        %v481 = vsel %vm479, %v480, %v478
        %v482 = vclz %v481
        %v483 = vsub.s32 %v482, 2
        %vm484 = vcmp.gt.s32.totalorder 0, %v483
        %v485 = vsel %vm484, 0, %v483
        %v486 = vsub.s32 32, %v485
        %v487 = vshll.u32 %v478, %v485
        %v488 = vshrl.u32 %v470, %v486
        %v489 = vor.u32 %v487, %v488
        %v490 = vsub.s32 4294967266, %v485
        %v491 = vadd.s32 %v490, 127
        %v492 = vshll.u32 %v491, 23
        %v493 = vor.u32 4788187, %v492
        %v494 = vand.u32 2147483647, %v493
        %v496 = vcvt.s32.f32 %v489
        %v497 = vmul.f32 %v496, %v494
        %v498 = vxor.u32 %v497, 2147483648
        %v499 = vsel %vm416, %v498, %v497
        %v500 = vsub.s32 4, %v476
        %v501 = vsel %vm416, %v500, %v476
        %v502 = vsel %vm415, %v295, %v499
        %v503 = vsel %vm415, 0, %v501
        %v504 = vcosq.f32.pop %v502
        %v505 = vsinq.f32.pop %v502
        %vm506 = vweird.f32 %v295
        %v507 = vadd.s32 %v503, 3
        %v508 = vand.u32 %v507, 3
        %vm509 = vcmp.lt.s32.totalorder %v508, 2
        %vm510 = vcmp.eq.s32.totalorder %v508, 0
        %v511 = vxor.u32 %v505, 2147483648
        %v512 = vsel %vm510, %v504, %v511
        %vm513 = vcmp.eq.s32.totalorder %v508, 2
        %v514 = vxor.u32 %v504, 2147483648
        %v515 = vsel %vm513, %v514, %v505
        %v516 = vsel %vm509, %v512, %v515
        %v517 = vsel %vm506, nan, %v516
        %v518 = vand.u32 2147483647, %v296
        %vm519 = vcmp.le.f32.partialorder %v518, 0.7853982
        %vm520 = vcmp.lt.s32.totalorder %v296, 0
        %v521 = vand.u32 %v296, 2139095040
        %v522 = vshrl.u32 %v521, 23
        %v523 = vsub.s32 %v522, 127
        %v524 = vand.u32 2147483647, %v296
        %v525 = vand.u32 %v524, 8388607
        %v526 = vor.u32 %v525, 8388608
        %v527 = vsub.s32 0, %v526
        %v528 = vadd.s32 %v523, 1
        %vm529 = vcmp.gt.s32.totalorder %v528, 0
        %v530 = vsel %vm529, %v528, 0
        %v531 = vshrl.u32 %v530, 5
        %v532 = vand.u32 %v530, 31
        %v533 = vsub.s32 32, %v532
        %v534 = vshrl.u32 683565275, %v533
        %v535 = vshll.u32 683565275, %v532
        %v536 = vshrl.u32 2475754826, %v533
        %v537 = vor.u32 %v535, %v536
        %v538 = vshll.u32 2475754826, %v532
        %v539 = vshrl.u32 2131351028, %v533
        %v540 = vor.u32 %v538, %v539
        %v541 = vshll.u32 2131351028, %v532
        %v542 = vshrl.u32 2102212464, %v533
        %v543 = vor.u32 %v541, %v542
        %v544 = vshll.u32 2102212464, %v532
        %v545 = vshrl.u32 920167782, %v533
        %v546 = vor.u32 %v544, %v545
        %v547 = vshll.u32 920167782, %v532
        %v548 = vshrl.u32 1326507024, %v533
        %v549 = vor.u32 %v547, %v548
        %vm550 = vcmp.lt.s32.totalorder %v531, 1
        %vm551 = vcmp.lt.s32.totalorder %v531, 2
        %vm552 = vcmp.lt.s32.totalorder %v531, 3
        %vm553 = vcmp.lt.s32.totalorder %v531, 4
        %v554 = vsel %vm550, %v534, %v537
        %v555 = vsel %vm553, %v543, 2102212464
        %v556 = vsel %vm552, %v540, %v555
        %v557 = vsel %vm551, %v554, %v556
        %v558 = vsel %vm550, %v537, %v540
        %v559 = vsel %vm553, %v546, 920167782
        %v560 = vsel %vm552, %v543, %v559
        %v561 = vsel %vm551, %v558, %v560
        %v562 = vsel %vm550, %v540, %v543
        %v563 = vsel %vm553, %v549, 1326507024
        %v564 = vsel %vm552, %v546, %v563
        %v565 = vsel %vm551, %v562, %v564
        %v566 = vshll.u32 %v526, 8
        %v567 = vmul.u32.u64.compose %v566, %v565
        %v568 = vextract.low.u32 %v567
        %v569 = vextract.high.u32 %v567
        %v570 = vmul.u32.u64.compose %v566, %v561
        %v571 = vextract.low.u32 %v570
        %v572 = vextract.high.u32 %v570
        %v573 = vmul.u32 %v566, %v557
        %v574 = vadd.s32 %v569, %v571
        %vm575 = vc.u32 %v569, %v571
        %v576 = vadd.s32 %v572, 1
        %v577 = vsel %vm575, %v576, %v572
        %v578 = vadd.s32 %v573, %v577
        %v579 = vadd.s32 %v578, 536870912
        %v580 = vshrl.u32 %v579, 30
        %v581 = vshll.u32 %v580, 30
        %v582 = vsub.s32 %v578, %v581
        %vm583 = vcmp.lt.s32.totalorder %v582, 0
        %v584 = vsub.s32 0, %v582
        %v585 = vsel %vm583, %v584, %v582
        %v586 = vclz %v585
        %v587 = vsub.s32 %v586, 2
        %vm588 = vcmp.gt.s32.totalorder 0, %v587
        %v589 = vsel %vm588, 0, %v587
        %v590 = vsub.s32 32, %v589
        %v591 = vshll.u32 %v582, %v589
        %v592 = vshrl.u32 %v574, %v590
        %v593 = vor.u32 %v591, %v592
        %v594 = vsub.s32 4294967266, %v589
        %v595 = vadd.s32 %v594, 127
        %v596 = vshll.u32 %v595, 23
        %v597 = vor.u32 4788187, %v596
        %v598 = vand.u32 2147483647, %v597
        %v600 = vcvt.s32.f32 %v593
        %v601 = vmul.f32 %v600, %v598
        %v602 = vxor.u32 %v601, 2147483648
        %v603 = vsel %vm520, %v602, %v601
        %v604 = vsub.s32 4, %v580
        %v605 = vsel %vm520, %v604, %v580
        %v606 = vsel %vm519, %v296, %v603
        %v607 = vsel %vm519, 0, %v605
        %v608 = vcosq.f32.pop %v606
        %v609 = vsinq.f32.pop %v606
        %vm610 = vweird.f32 %v296
        %v611 = vadd.s32 %v607, 3
        %v612 = vand.u32 %v611, 3
        %vm613 = vcmp.lt.s32.totalorder %v612, 2
        %vm614 = vcmp.eq.s32.totalorder %v612, 0
        %v615 = vxor.u32 %v609, 2147483648
        %v616 = vsel %vm614, %v608, %v615
        %vm617 = vcmp.eq.s32.totalorder %v612, 2
        %v618 = vxor.u32 %v608, 2147483648
        %v619 = vsel %vm617, %v618, %v609
        %v620 = vsel %vm613, %v616, %v619
        %v621 = vsel %vm610, nan, %v620
        %v622 = vand.u32 2147483647, %v297
        %vm623 = vcmp.le.f32.partialorder %v622, 0.7853982
        %vm624 = vcmp.lt.s32.totalorder %v297, 0
        %v625 = vand.u32 %v297, 2139095040
        %v626 = vshrl.u32 %v625, 23
        %v627 = vsub.s32 %v626, 127
        %v628 = vand.u32 2147483647, %v297
        %v629 = vand.u32 %v628, 8388607
        %v630 = vor.u32 %v629, 8388608
        %v631 = vsub.s32 0, %v630
        %v632 = vadd.s32 %v627, 1
        %vm633 = vcmp.gt.s32.totalorder %v632, 0
        %v634 = vsel %vm633, %v632, 0
        %v635 = vshrl.u32 %v634, 5
        %v636 = vand.u32 %v634, 31
        %v637 = vsub.s32 32, %v636
        %v638 = vshrl.u32 683565275, %v637
        %v639 = vshll.u32 683565275, %v636
        %v640 = vshrl.u32 2475754826, %v637
        %v641 = vor.u32 %v639, %v640
        %v642 = vshll.u32 2475754826, %v636
        %v643 = vshrl.u32 2131351028, %v637
        %v644 = vor.u32 %v642, %v643
        %v645 = vshll.u32 2131351028, %v636
        %v646 = vshrl.u32 2102212464, %v637
        %v647 = vor.u32 %v645, %v646
        %v648 = vshll.u32 2102212464, %v636
        %v649 = vshrl.u32 920167782, %v637
        %v650 = vor.u32 %v648, %v649
        %v651 = vshll.u32 920167782, %v636
        %v652 = vshrl.u32 1326507024, %v637
        %v653 = vor.u32 %v651, %v652
        %vm654 = vcmp.lt.s32.totalorder %v635, 1
        %vm655 = vcmp.lt.s32.totalorder %v635, 2
        %vm656 = vcmp.lt.s32.totalorder %v635, 3
        %vm657 = vcmp.lt.s32.totalorder %v635, 4
        %v658 = vsel %vm654, %v638, %v641
        %v659 = vsel %vm657, %v647, 2102212464
        %v660 = vsel %vm656, %v644, %v659
        %v661 = vsel %vm655, %v658, %v660
        %v662 = vsel %vm654, %v641, %v644
        %v663 = vsel %vm657, %v650, 920167782
        %v664 = vsel %vm656, %v647, %v663
        %v665 = vsel %vm655, %v662, %v664
        %v666 = vsel %vm654, %v644, %v647
        %v667 = vsel %vm657, %v653, 1326507024
        %v668 = vsel %vm656, %v650, %v667
        %v669 = vsel %vm655, %v666, %v668
        %v670 = vshll.u32 %v630, 8
        %v671 = vmul.u32.u64.compose %v670, %v669
        %v672 = vextract.low.u32 %v671
        %v673 = vextract.high.u32 %v671
        %v674 = vmul.u32.u64.compose %v670, %v665
        %v675 = vextract.low.u32 %v674
        %v676 = vextract.high.u32 %v674
        %v677 = vmul.u32 %v670, %v661
        %v678 = vadd.s32 %v673, %v675
        %vm679 = vc.u32 %v673, %v675
        %v680 = vadd.s32 %v676, 1
        %v681 = vsel %vm679, %v680, %v676
        %v682 = vadd.s32 %v677, %v681
        %v683 = vadd.s32 %v682, 536870912
        %v684 = vshrl.u32 %v683, 30
        %v685 = vshll.u32 %v684, 30
        %v686 = vsub.s32 %v682, %v685
        %vm687 = vcmp.lt.s32.totalorder %v686, 0
        %v688 = vsub.s32 0, %v686
        %v689 = vsel %vm687, %v688, %v686
        %v690 = vclz %v689
        %v691 = vsub.s32 %v690, 2
        %vm692 = vcmp.gt.s32.totalorder 0, %v691
        %v693 = vsel %vm692, 0, %v691
        %v694 = vsub.s32 32, %v693
        %v695 = vshll.u32 %v686, %v693
        %v696 = vshrl.u32 %v678, %v694
        %v697 = vor.u32 %v695, %v696
        %v698 = vsub.s32 4294967266, %v693
        %v699 = vadd.s32 %v698, 127
        %v700 = vshll.u32 %v699, 23
        %v701 = vor.u32 4788187, %v700
        %v702 = vand.u32 2147483647, %v701
        %v704 = vcvt.s32.f32 %v697
        %v705 = vmul.f32 %v704, %v702
        %v706 = vxor.u32 %v705, 2147483648
        %v707 = vsel %vm624, %v706, %v705
        %v708 = vsub.s32 4, %v684
        %v709 = vsel %vm624, %v708, %v684
        %v710 = vsel %vm623, %v297, %v707
        %v711 = vsel %vm623, 0, %v709
        %v712 = vcosq.f32.pop %v710
        %v713 = vsinq.f32.pop %v710
        %vm714 = vweird.f32 %v297
        %v715 = vadd.s32 %v711, 3
        %v716 = vand.u32 %v715, 3
        %vm717 = vcmp.lt.s32.totalorder %v716, 2
        %vm718 = vcmp.eq.s32.totalorder %v716, 0
        %v719 = vxor.u32 %v713, 2147483648
        %v720 = vsel %vm718, %v712, %v719
        %vm721 = vcmp.eq.s32.totalorder %v716, 2
        %v722 = vxor.u32 %v712, 2147483648
        %v723 = vsel %vm721, %v722, %v713
        %v724 = vsel %vm717, %v720, %v723
        %v725 = vsel %vm714, nan, %v724
        %v726 = vand.u32 2147483647, %v298
        %vm727 = vcmp.le.f32.partialorder %v726, 0.7853982
        %vm728 = vcmp.lt.s32.totalorder %v298, 0
        %v729 = vand.u32 %v298, 2139095040
        %v730 = vshrl.u32 %v729, 23
        %v731 = vsub.s32 %v730, 127
        %v732 = vand.u32 2147483647, %v298
        %v733 = vand.u32 %v732, 8388607
        %v734 = vor.u32 %v733, 8388608
        %v735 = vsub.s32 0, %v734
        %v736 = vadd.s32 %v731, 1
        %vm737 = vcmp.gt.s32.totalorder %v736, 0
        %v738 = vsel %vm737, %v736, 0
        %v739 = vshrl.u32 %v738, 5
        %v740 = vand.u32 %v738, 31
        %v741 = vsub.s32 32, %v740
        %v742 = vshrl.u32 683565275, %v741
        %v743 = vshll.u32 683565275, %v740
        %v744 = vshrl.u32 2475754826, %v741
        %v745 = vor.u32 %v743, %v744
        %v746 = vshll.u32 2475754826, %v740
        %v747 = vshrl.u32 2131351028, %v741
        %v748 = vor.u32 %v746, %v747
        %v749 = vshll.u32 2131351028, %v740
        %v750 = vshrl.u32 2102212464, %v741
        %v751 = vor.u32 %v749, %v750
        %v752 = vshll.u32 2102212464, %v740
        %v753 = vshrl.u32 920167782, %v741
        %v754 = vor.u32 %v752, %v753
        %v755 = vshll.u32 920167782, %v740
        %v756 = vshrl.u32 1326507024, %v741
        %v757 = vor.u32 %v755, %v756
        %vm758 = vcmp.lt.s32.totalorder %v739, 1
        %vm759 = vcmp.lt.s32.totalorder %v739, 2
        %vm760 = vcmp.lt.s32.totalorder %v739, 3
        %vm761 = vcmp.lt.s32.totalorder %v739, 4
        %v762 = vsel %vm758, %v742, %v745
        %v763 = vsel %vm761, %v751, 2102212464
        %v764 = vsel %vm760, %v748, %v763
        %v765 = vsel %vm759, %v762, %v764
        %v766 = vsel %vm758, %v745, %v748
        %v767 = vsel %vm761, %v754, 920167782
        %v768 = vsel %vm760, %v751, %v767
        %v769 = vsel %vm759, %v766, %v768
        %v770 = vsel %vm758, %v748, %v751
        %v771 = vsel %vm761, %v757, 1326507024
        %v772 = vsel %vm760, %v754, %v771
        %v773 = vsel %vm759, %v770, %v772
        %v774 = vshll.u32 %v734, 8
        %v775 = vmul.u32.u64.compose %v774, %v773
        %v776 = vextract.low.u32 %v775
        %v777 = vextract.high.u32 %v775
        %v778 = vmul.u32.u64.compose %v774, %v769
        %v779 = vextract.low.u32 %v778
        %v780 = vextract.high.u32 %v778
        %v781 = vmul.u32 %v774, %v765
        %v782 = vadd.s32 %v777, %v779
        %vm783 = vc.u32 %v777, %v779
        %v784 = vadd.s32 %v780, 1
        %v785 = vsel %vm783, %v784, %v780
        %v786 = vadd.s32 %v781, %v785
        %v787 = vadd.s32 %v786, 536870912
        %v788 = vshrl.u32 %v787, 30
        %v789 = vshll.u32 %v788, 30
        %v790 = vsub.s32 %v786, %v789
        %vm791 = vcmp.lt.s32.totalorder %v790, 0
        %v792 = vsub.s32 0, %v790
        %v793 = vsel %vm791, %v792, %v790
        %v794 = vclz %v793
        %v795 = vsub.s32 %v794, 2
        %vm796 = vcmp.gt.s32.totalorder 0, %v795
        %v797 = vsel %vm796, 0, %v795
        %v798 = vsub.s32 32, %v797
        %v799 = vshll.u32 %v790, %v797
        %v800 = vshrl.u32 %v782, %v798
        %v801 = vor.u32 %v799, %v800
        %v802 = vsub.s32 4294967266, %v797
        %v803 = vadd.s32 %v802, 127
        %v804 = vshll.u32 %v803, 23
        %v805 = vor.u32 4788187, %v804
        %v806 = vand.u32 2147483647, %v805
        %v808 = vcvt.s32.f32 %v801
        %v809 = vmul.f32 %v808, %v806
        %v810 = vxor.u32 %v809, 2147483648
        %v811 = vsel %vm728, %v810, %v809
        %v812 = vsub.s32 4, %v788
        %v813 = vsel %vm728, %v812, %v788
        %v814 = vsel %vm727, %v298, %v811
        %v815 = vsel %vm727, 0, %v813
        %v816 = vcosq.f32.pop %v814
        %v817 = vsinq.f32.pop %v814
        %vm818 = vweird.f32 %v298
        %v819 = vadd.s32 %v815, 3
        %v820 = vand.u32 %v819, 3
        %vm821 = vcmp.lt.s32.totalorder %v820, 2
        %vm822 = vcmp.eq.s32.totalorder %v820, 0
        %v823 = vxor.u32 %v817, 2147483648
        %v824 = vsel %vm822, %v816, %v823
        %vm825 = vcmp.eq.s32.totalorder %v820, 2
        %v826 = vxor.u32 %v816, 2147483648
        %v827 = vsel %vm825, %v826, %v817
        %v828 = vsel %vm821, %v824, %v827
        %v829 = vsel %vm818, nan, %v828
        %v830 = vand.u32 2147483647, %v299
        %vm831 = vcmp.le.f32.partialorder %v830, 0.7853982
        %vm832 = vcmp.lt.s32.totalorder %v299, 0
        %v833 = vand.u32 %v299, 2139095040
        %v834 = vshrl.u32 %v833, 23
        %v835 = vsub.s32 %v834, 127
        %v836 = vand.u32 2147483647, %v299
        %v837 = vand.u32 %v836, 8388607
        %v838 = vor.u32 %v837, 8388608
        %v839 = vsub.s32 0, %v838
        %v840 = vadd.s32 %v835, 1
        %vm841 = vcmp.gt.s32.totalorder %v840, 0
        %v842 = vsel %vm841, %v840, 0
        %v843 = vshrl.u32 %v842, 5
        %v844 = vand.u32 %v842, 31
        %v845 = vsub.s32 32, %v844
        %v846 = vshrl.u32 683565275, %v845
        %v847 = vshll.u32 683565275, %v844
        %v848 = vshrl.u32 2475754826, %v845
        %v849 = vor.u32 %v847, %v848
        %v850 = vshll.u32 2475754826, %v844
        %v851 = vshrl.u32 2131351028, %v845
        %v852 = vor.u32 %v850, %v851
        %v853 = vshll.u32 2131351028, %v844
        %v854 = vshrl.u32 2102212464, %v845
        %v855 = vor.u32 %v853, %v854
        %v856 = vshll.u32 2102212464, %v844
        %v857 = vshrl.u32 920167782, %v845
        %v858 = vor.u32 %v856, %v857
        %v859 = vshll.u32 920167782, %v844
        %v860 = vshrl.u32 1326507024, %v845
        %v861 = vor.u32 %v859, %v860
        %vm862 = vcmp.lt.s32.totalorder %v843, 1
        %vm863 = vcmp.lt.s32.totalorder %v843, 2
        %vm864 = vcmp.lt.s32.totalorder %v843, 3
        %vm865 = vcmp.lt.s32.totalorder %v843, 4
        %v866 = vsel %vm862, %v846, %v849
        %v867 = vsel %vm865, %v855, 2102212464
        %v868 = vsel %vm864, %v852, %v867
        %v869 = vsel %vm863, %v866, %v868
        %v870 = vsel %vm862, %v849, %v852
        %v871 = vsel %vm865, %v858, 920167782
        %v872 = vsel %vm864, %v855, %v871
        %v873 = vsel %vm863, %v870, %v872
        %v874 = vsel %vm862, %v852, %v855
        %v875 = vsel %vm865, %v861, 1326507024
        %v876 = vsel %vm864, %v858, %v875
        %v877 = vsel %vm863, %v874, %v876
        %v878 = vshll.u32 %v838, 8
        %v879 = vmul.u32.u64.compose %v878, %v877
        %v880 = vextract.low.u32 %v879
        %v881 = vextract.high.u32 %v879
        %v882 = vmul.u32.u64.compose %v878, %v873
        %v883 = vextract.low.u32 %v882
        %v884 = vextract.high.u32 %v882
        %v885 = vmul.u32 %v878, %v869
        %v886 = vadd.s32 %v881, %v883
        %vm887 = vc.u32 %v881, %v883
        %v888 = vadd.s32 %v884, 1
        %v889 = vsel %vm887, %v888, %v884
        %v890 = vadd.s32 %v885, %v889
        %v891 = vadd.s32 %v890, 536870912
        %v892 = vshrl.u32 %v891, 30
        %v893 = vshll.u32 %v892, 30
        %v894 = vsub.s32 %v890, %v893
        %vm895 = vcmp.lt.s32.totalorder %v894, 0
        %v896 = vsub.s32 0, %v894
        %v897 = vsel %vm895, %v896, %v894
        %v898 = vclz %v897
        %v899 = vsub.s32 %v898, 2
        %vm900 = vcmp.gt.s32.totalorder 0, %v899
        %v901 = vsel %vm900, 0, %v899
        %v902 = vsub.s32 32, %v901
        %v903 = vshll.u32 %v894, %v901
        %v904 = vshrl.u32 %v886, %v902
        %v905 = vor.u32 %v903, %v904
        %v906 = vsub.s32 4294967266, %v901
        %v907 = vadd.s32 %v906, 127
        %v908 = vshll.u32 %v907, 23
        %v909 = vor.u32 4788187, %v908
        %v910 = vand.u32 2147483647, %v909
        %v912 = vcvt.s32.f32 %v905
        %v913 = vmul.f32 %v912, %v910
        %v914 = vxor.u32 %v913, 2147483648
        %v915 = vsel %vm832, %v914, %v913
        %v916 = vsub.s32 4, %v892
        %v917 = vsel %vm832, %v916, %v892
        %v918 = vsel %vm831, %v299, %v915
        %v919 = vsel %vm831, 0, %v917
        %v920 = vcosq.f32.pop %v918
        %v921 = vsinq.f32.pop %v918
        %vm922 = vweird.f32 %v299
        %v923 = vadd.s32 %v919, 3
        %v924 = vand.u32 %v923, 3
        %vm925 = vcmp.lt.s32.totalorder %v924, 2
        %vm926 = vcmp.eq.s32.totalorder %v924, 0
        %v927 = vxor.u32 %v921, 2147483648
        %v928 = vsel %vm926, %v920, %v927
        %vm929 = vcmp.eq.s32.totalorder %v924, 2
        %v930 = vxor.u32 %v920, 2147483648
        %v931 = vsel %vm929, %v930, %v921
        %v932 = vsel %vm925, %v928, %v931
        %v933 = vsel %vm922, nan, %v932
        %v934 = vand.u32 2147483647, %v300
        %vm935 = vcmp.le.f32.partialorder %v934, 0.7853982
        %vm936 = vcmp.lt.s32.totalorder %v300, 0
        %v937 = vand.u32 %v300, 2139095040
        %v938 = vshrl.u32 %v937, 23
        %v939 = vsub.s32 %v938, 127
        %v940 = vand.u32 2147483647, %v300
        %v941 = vand.u32 %v940, 8388607
        %v942 = vor.u32 %v941, 8388608
        %v943 = vsub.s32 0, %v942
        %v944 = vadd.s32 %v939, 1
        %vm945 = vcmp.gt.s32.totalorder %v944, 0
        %v946 = vsel %vm945, %v944, 0
        %v947 = vshrl.u32 %v946, 5
        %v948 = vand.u32 %v946, 31
        %v949 = vsub.s32 32, %v948
        %v950 = vshrl.u32 683565275, %v949
        %v951 = vshll.u32 683565275, %v948
        %v952 = vshrl.u32 2475754826, %v949
        %v953 = vor.u32 %v951, %v952
        %v954 = vshll.u32 2475754826, %v948
        %v955 = vshrl.u32 2131351028, %v949
        %v956 = vor.u32 %v954, %v955
        %v957 = vshll.u32 2131351028, %v948
        %v958 = vshrl.u32 2102212464, %v949
        %v959 = vor.u32 %v957, %v958
        %v960 = vshll.u32 2102212464, %v948
        %v961 = vshrl.u32 920167782, %v949
        %v962 = vor.u32 %v960, %v961
        %v963 = vshll.u32 920167782, %v948
        %v964 = vshrl.u32 1326507024, %v949
        %v965 = vor.u32 %v963, %v964
        %vm966 = vcmp.lt.s32.totalorder %v947, 1
        %vm967 = vcmp.lt.s32.totalorder %v947, 2
        %vm968 = vcmp.lt.s32.totalorder %v947, 3
        %vm969 = vcmp.lt.s32.totalorder %v947, 4
        %v970 = vsel %vm966, %v950, %v953
        %v971 = vsel %vm969, %v959, 2102212464
        %v972 = vsel %vm968, %v956, %v971
        %v973 = vsel %vm967, %v970, %v972
        %v974 = vsel %vm966, %v953, %v956
        %v975 = vsel %vm969, %v962, 920167782
        %v976 = vsel %vm968, %v959, %v975
        %v977 = vsel %vm967, %v974, %v976
        %v978 = vsel %vm966, %v956, %v959
        %v979 = vsel %vm969, %v965, 1326507024
        %v980 = vsel %vm968, %v962, %v979
        %v981 = vsel %vm967, %v978, %v980
        %v982 = vshll.u32 %v942, 8
        %v983 = vmul.u32.u64.compose %v982, %v981
        %v984 = vextract.low.u32 %v983
        %v985 = vextract.high.u32 %v983
        %v986 = vmul.u32.u64.compose %v982, %v977
        %v987 = vextract.low.u32 %v986
        %v988 = vextract.high.u32 %v986
        %v989 = vmul.u32 %v982, %v973
        %v990 = vadd.s32 %v985, %v987
        %vm991 = vc.u32 %v985, %v987
        %v992 = vadd.s32 %v988, 1
        %v993 = vsel %vm991, %v992, %v988
        %v994 = vadd.s32 %v989, %v993
        %v995 = vadd.s32 %v994, 536870912
        %v996 = vshrl.u32 %v995, 30
        %v997 = vshll.u32 %v996, 30
        %v998 = vsub.s32 %v994, %v997
        %vm999 = vcmp.lt.s32.totalorder %v998, 0
        %v1000 = vsub.s32 0, %v998
        %v1001 = vsel %vm999, %v1000, %v998
        %v1002 = vclz %v1001
        %v1003 = vsub.s32 %v1002, 2
        %vm1004 = vcmp.gt.s32.totalorder 0, %v1003
        %v1005 = vsel %vm1004, 0, %v1003
        %v1006 = vsub.s32 32, %v1005
        %v1007 = vshll.u32 %v998, %v1005
        %v1008 = vshrl.u32 %v990, %v1006
        %v1009 = vor.u32 %v1007, %v1008
        %v1010 = vsub.s32 4294967266, %v1005
        %v1011 = vadd.s32 %v1010, 127
        %v1012 = vshll.u32 %v1011, 23
        %v1013 = vor.u32 4788187, %v1012
        %v1014 = vand.u32 2147483647, %v1013
        %v1016 = vcvt.s32.f32 %v1009
        %v1017 = vmul.f32 %v1016, %v1014
        %v1018 = vxor.u32 %v1017, 2147483648
        %v1019 = vsel %vm936, %v1018, %v1017
        %v1020 = vsub.s32 4, %v996
        %v1021 = vsel %vm936, %v1020, %v996
        %v1022 = vsel %vm935, %v300, %v1019
        %v1023 = vsel %vm935, 0, %v1021
        %v1024 = vcosq.f32.pop %v1022
        %v1025 = vsinq.f32.pop %v1022
        %vm1026 = vweird.f32 %v300
        %v1027 = vadd.s32 %v1023, 3
        %v1028 = vand.u32 %v1027, 3
        %vm1029 = vcmp.lt.s32.totalorder %v1028, 2
        %vm1030 = vcmp.eq.s32.totalorder %v1028, 0
        %v1031 = vxor.u32 %v1025, 2147483648
        %v1032 = vsel %vm1030, %v1024, %v1031
        %vm1033 = vcmp.eq.s32.totalorder %v1028, 2
        %v1034 = vxor.u32 %v1024, 2147483648
        %v1035 = vsel %vm1033, %v1034, %v1025
        %v1036 = vsel %vm1029, %v1032, %v1035
        %v1037 = vsel %vm1026, nan, %v1036
        %v1038 = vand.u32 2147483647, %v301
        %vm1039 = vcmp.le.f32.partialorder %v1038, 0.7853982
        %vm1040 = vcmp.lt.s32.totalorder %v301, 0
        %v1041 = vand.u32 %v301, 2139095040
        %v1042 = vshrl.u32 %v1041, 23
        %v1043 = vsub.s32 %v1042, 127
        %v1044 = vand.u32 2147483647, %v301
        %v1045 = vand.u32 %v1044, 8388607
        %v1046 = vor.u32 %v1045, 8388608
        %v1047 = vsub.s32 0, %v1046
        %v1048 = vadd.s32 %v1043, 1
        %vm1049 = vcmp.gt.s32.totalorder %v1048, 0
        %v1050 = vsel %vm1049, %v1048, 0
        %v1051 = vshrl.u32 %v1050, 5
        %v1052 = vand.u32 %v1050, 31
        %v1053 = vsub.s32 32, %v1052
        %v1054 = vshrl.u32 683565275, %v1053
        %v1055 = vshll.u32 683565275, %v1052
        %v1056 = vshrl.u32 2475754826, %v1053
        %v1057 = vor.u32 %v1055, %v1056
        %v1058 = vshll.u32 2475754826, %v1052
        %v1059 = vshrl.u32 2131351028, %v1053
        %v1060 = vor.u32 %v1058, %v1059
        %v1061 = vshll.u32 2131351028, %v1052
        %v1062 = vshrl.u32 2102212464, %v1053
        %v1063 = vor.u32 %v1061, %v1062
        %v1064 = vshll.u32 2102212464, %v1052
        %v1065 = vshrl.u32 920167782, %v1053
        %v1066 = vor.u32 %v1064, %v1065
        %v1067 = vshll.u32 920167782, %v1052
        %v1068 = vshrl.u32 1326507024, %v1053
        %v1069 = vor.u32 %v1067, %v1068
        %vm1070 = vcmp.lt.s32.totalorder %v1051, 1
        %vm1071 = vcmp.lt.s32.totalorder %v1051, 2
        %vm1072 = vcmp.lt.s32.totalorder %v1051, 3
        %vm1073 = vcmp.lt.s32.totalorder %v1051, 4
        %v1074 = vsel %vm1070, %v1054, %v1057
        %v1075 = vsel %vm1073, %v1063, 2102212464
        %v1076 = vsel %vm1072, %v1060, %v1075
        %v1077 = vsel %vm1071, %v1074, %v1076
        %v1078 = vsel %vm1070, %v1057, %v1060
        %v1079 = vsel %vm1073, %v1066, 920167782
        %v1080 = vsel %vm1072, %v1063, %v1079
        %v1081 = vsel %vm1071, %v1078, %v1080
        %v1082 = vsel %vm1070, %v1060, %v1063
        %v1083 = vsel %vm1073, %v1069, 1326507024
        %v1084 = vsel %vm1072, %v1066, %v1083
        %v1085 = vsel %vm1071, %v1082, %v1084
        %v1086 = vshll.u32 %v1046, 8
        %v1087 = vmul.u32.u64.compose %v1086, %v1085
        %v1088 = vextract.low.u32 %v1087
        %v1089 = vextract.high.u32 %v1087
        %v1090 = vmul.u32.u64.compose %v1086, %v1081
        %v1091 = vextract.low.u32 %v1090
        %v1092 = vextract.high.u32 %v1090
        %v1093 = vmul.u32 %v1086, %v1077
        %v1094 = vadd.s32 %v1089, %v1091
        %vm1095 = vc.u32 %v1089, %v1091
        %v1096 = vadd.s32 %v1092, 1
        %v1097 = vsel %vm1095, %v1096, %v1092
        %v1098 = vadd.s32 %v1093, %v1097
        %v1099 = vadd.s32 %v1098, 536870912
        %v1100 = vshrl.u32 %v1099, 30
        %v1101 = vshll.u32 %v1100, 30
        %v1102 = vsub.s32 %v1098, %v1101
        %vm1103 = vcmp.lt.s32.totalorder %v1102, 0
        %v1104 = vsub.s32 0, %v1102
        %v1105 = vsel %vm1103, %v1104, %v1102
        %v1106 = vclz %v1105
        %v1107 = vsub.s32 %v1106, 2
        %vm1108 = vcmp.gt.s32.totalorder 0, %v1107
        %v1109 = vsel %vm1108, 0, %v1107
        %v1110 = vsub.s32 32, %v1109
        %v1111 = vshll.u32 %v1102, %v1109
        %v1112 = vshrl.u32 %v1094, %v1110
        %v1113 = vor.u32 %v1111, %v1112
        %v1114 = vsub.s32 4294967266, %v1109
        %v1115 = vadd.s32 %v1114, 127
        %v1116 = vshll.u32 %v1115, 23
        %v1117 = vor.u32 4788187, %v1116
        %v1118 = vand.u32 2147483647, %v1117
        %v1120 = vcvt.s32.f32 %v1113
        %v1121 = vmul.f32 %v1120, %v1118
        %v1122 = vxor.u32 %v1121, 2147483648
        %v1123 = vsel %vm1040, %v1122, %v1121
        %v1124 = vsub.s32 4, %v1100
        %v1125 = vsel %vm1040, %v1124, %v1100
        %v1126 = vsel %vm1039, %v301, %v1123
        %v1127 = vsel %vm1039, 0, %v1125
        %v1128 = vcosq.f32.pop %v1126
        %v1129 = vsinq.f32.pop %v1126
        %vm1130 = vweird.f32 %v301
        %v1131 = vadd.s32 %v1127, 3
        %v1132 = vand.u32 %v1131, 3
        %vm1133 = vcmp.lt.s32.totalorder %v1132, 2
        %vm1134 = vcmp.eq.s32.totalorder %v1132, 0
        %v1135 = vxor.u32 %v1129, 2147483648
        %v1136 = vsel %vm1134, %v1128, %v1135
        %vm1137 = vcmp.eq.s32.totalorder %v1132, 2
        %v1138 = vxor.u32 %v1128, 2147483648
        %v1139 = vsel %vm1137, %v1138, %v1129
        %v1140 = vsel %vm1133, %v1136, %v1139
        %v1141 = vsel %vm1130, nan, %v1140
        %v1142 = vand.u32 2147483647, %v302
        %vm1143 = vcmp.le.f32.partialorder %v1142, 0.7853982
        %vm1144 = vcmp.lt.s32.totalorder %v302, 0
        %v1145 = vand.u32 %v302, 2139095040
        %v1146 = vshrl.u32 %v1145, 23
        %v1147 = vsub.s32 %v1146, 127
        %v1148 = vand.u32 2147483647, %v302
        %v1149 = vand.u32 %v1148, 8388607
        %v1150 = vor.u32 %v1149, 8388608
        %v1151 = vsub.s32 0, %v1150
        %v1152 = vadd.s32 %v1147, 1
        %vm1153 = vcmp.gt.s32.totalorder %v1152, 0
        %v1154 = vsel %vm1153, %v1152, 0
        %v1155 = vshrl.u32 %v1154, 5
        %v1156 = vand.u32 %v1154, 31
        %v1157 = vsub.s32 32, %v1156
        %v1158 = vshrl.u32 683565275, %v1157
        %v1159 = vshll.u32 683565275, %v1156
        %v1160 = vshrl.u32 2475754826, %v1157
        %v1161 = vor.u32 %v1159, %v1160
        %v1162 = vshll.u32 2475754826, %v1156
        %v1163 = vshrl.u32 2131351028, %v1157
        %v1164 = vor.u32 %v1162, %v1163
        %v1165 = vshll.u32 2131351028, %v1156
        %v1166 = vshrl.u32 2102212464, %v1157
        %v1167 = vor.u32 %v1165, %v1166
        %v1168 = vshll.u32 2102212464, %v1156
        %v1169 = vshrl.u32 920167782, %v1157
        %v1170 = vor.u32 %v1168, %v1169
        %v1171 = vshll.u32 920167782, %v1156
        %v1172 = vshrl.u32 1326507024, %v1157
        %v1173 = vor.u32 %v1171, %v1172
        %vm1174 = vcmp.lt.s32.totalorder %v1155, 1
        %vm1175 = vcmp.lt.s32.totalorder %v1155, 2
        %vm1176 = vcmp.lt.s32.totalorder %v1155, 3
        %vm1177 = vcmp.lt.s32.totalorder %v1155, 4
        %v1178 = vsel %vm1174, %v1158, %v1161
        %v1179 = vsel %vm1177, %v1167, 2102212464
        %v1180 = vsel %vm1176, %v1164, %v1179
        %v1181 = vsel %vm1175, %v1178, %v1180
        %v1182 = vsel %vm1174, %v1161, %v1164
        %v1183 = vsel %vm1177, %v1170, 920167782
        %v1184 = vsel %vm1176, %v1167, %v1183
        %v1185 = vsel %vm1175, %v1182, %v1184
        %v1186 = vsel %vm1174, %v1164, %v1167
        %v1187 = vsel %vm1177, %v1173, 1326507024
        %v1188 = vsel %vm1176, %v1170, %v1187
        %v1189 = vsel %vm1175, %v1186, %v1188
        %v1190 = vshll.u32 %v1150, 8
        %v1191 = vmul.u32.u64.compose %v1190, %v1189
        %v1192 = vextract.low.u32 %v1191
        %v1193 = vextract.high.u32 %v1191
        %v1194 = vmul.u32.u64.compose %v1190, %v1185
        %v1195 = vextract.low.u32 %v1194
        %v1196 = vextract.high.u32 %v1194
        %v1197 = vmul.u32 %v1190, %v1181
        %v1198 = vadd.s32 %v1193, %v1195
        %vm1199 = vc.u32 %v1193, %v1195
        %v1200 = vadd.s32 %v1196, 1
        %v1201 = vsel %vm1199, %v1200, %v1196
        %v1202 = vadd.s32 %v1197, %v1201
        %v1203 = vadd.s32 %v1202, 536870912
        %v1204 = vshrl.u32 %v1203, 30
        %v1205 = vshll.u32 %v1204, 30
        %v1206 = vsub.s32 %v1202, %v1205
        %vm1207 = vcmp.lt.s32.totalorder %v1206, 0
        %v1208 = vsub.s32 0, %v1206
        %v1209 = vsel %vm1207, %v1208, %v1206
        %v1210 = vclz %v1209
        %v1211 = vsub.s32 %v1210, 2
        %vm1212 = vcmp.gt.s32.totalorder 0, %v1211
        %v1213 = vsel %vm1212, 0, %v1211
        %v1214 = vsub.s32 32, %v1213
        %v1215 = vshll.u32 %v1206, %v1213
        %v1216 = vshrl.u32 %v1198, %v1214
        %v1217 = vor.u32 %v1215, %v1216
        %v1218 = vsub.s32 4294967266, %v1213
        %v1219 = vadd.s32 %v1218, 127
        %v1220 = vshll.u32 %v1219, 23
        %v1221 = vor.u32 4788187, %v1220
        %v1222 = vand.u32 2147483647, %v1221
        %v1224 = vcvt.s32.f32 %v1217
        %v1225 = vmul.f32 %v1224, %v1222
        %v1226 = vxor.u32 %v1225, 2147483648
        %v1227 = vsel %vm1144, %v1226, %v1225
        %v1228 = vsub.s32 4, %v1204
        %v1229 = vsel %vm1144, %v1228, %v1204
        %v1230 = vsel %vm1143, %v302, %v1227
        %v1231 = vsel %vm1143, 0, %v1229
        %v1232 = vcosq.f32.pop %v1230
        %v1233 = vsinq.f32.pop %v1230
        %vm1234 = vweird.f32 %v302
        %v1235 = vadd.s32 %v1231, 3
        %v1236 = vand.u32 %v1235, 3
        %vm1237 = vcmp.lt.s32.totalorder %v1236, 2
        %vm1238 = vcmp.eq.s32.totalorder %v1236, 0
        %v1239 = vxor.u32 %v1233, 2147483648
        %v1240 = vsel %vm1238, %v1232, %v1239
        %vm1241 = vcmp.eq.s32.totalorder %v1236, 2
        %v1242 = vxor.u32 %v1232, 2147483648
        %v1243 = vsel %vm1241, %v1242, %v1233
        %v1244 = vsel %vm1237, %v1240, %v1243
        %v1245 = vsel %vm1234, nan, %v1244
        %v1246 = vand.u32 2147483647, %v303
        %vm1247 = vcmp.le.f32.partialorder %v1246, 0.7853982
        %vm1248 = vcmp.lt.s32.totalorder %v303, 0
        %v1249 = vand.u32 %v303, 2139095040
        %v1250 = vshrl.u32 %v1249, 23
        %v1251 = vsub.s32 %v1250, 127
        %v1252 = vand.u32 2147483647, %v303
        %v1253 = vand.u32 %v1252, 8388607
        %v1254 = vor.u32 %v1253, 8388608
        %v1255 = vsub.s32 0, %v1254
        %v1256 = vadd.s32 %v1251, 1
        %vm1257 = vcmp.gt.s32.totalorder %v1256, 0
        %v1258 = vsel %vm1257, %v1256, 0
        %v1259 = vshrl.u32 %v1258, 5
        %v1260 = vand.u32 %v1258, 31
        %v1261 = vsub.s32 32, %v1260
        %v1262 = vshrl.u32 683565275, %v1261
        %v1263 = vshll.u32 683565275, %v1260
        %v1264 = vshrl.u32 2475754826, %v1261
        %v1265 = vor.u32 %v1263, %v1264
        %v1266 = vshll.u32 2475754826, %v1260
        %v1267 = vshrl.u32 2131351028, %v1261
        %v1268 = vor.u32 %v1266, %v1267
        %v1269 = vshll.u32 2131351028, %v1260
        %v1270 = vshrl.u32 2102212464, %v1261
        %v1271 = vor.u32 %v1269, %v1270
        %v1272 = vshll.u32 2102212464, %v1260
        %v1273 = vshrl.u32 920167782, %v1261
        %v1274 = vor.u32 %v1272, %v1273
        %v1275 = vshll.u32 920167782, %v1260
        %v1276 = vshrl.u32 1326507024, %v1261
        %v1277 = vor.u32 %v1275, %v1276
        %vm1278 = vcmp.lt.s32.totalorder %v1259, 1
        %vm1279 = vcmp.lt.s32.totalorder %v1259, 2
        %vm1280 = vcmp.lt.s32.totalorder %v1259, 3
        %vm1281 = vcmp.lt.s32.totalorder %v1259, 4
        %v1282 = vsel %vm1278, %v1262, %v1265
        %v1283 = vsel %vm1281, %v1271, 2102212464
        %v1284 = vsel %vm1280, %v1268, %v1283
        %v1285 = vsel %vm1279, %v1282, %v1284
        %v1286 = vsel %vm1278, %v1265, %v1268
        %v1287 = vsel %vm1281, %v1274, 920167782
        %v1288 = vsel %vm1280, %v1271, %v1287
        %v1289 = vsel %vm1279, %v1286, %v1288
        %v1290 = vsel %vm1278, %v1268, %v1271
        %v1291 = vsel %vm1281, %v1277, 1326507024
        %v1292 = vsel %vm1280, %v1274, %v1291
        %v1293 = vsel %vm1279, %v1290, %v1292
        %v1294 = vshll.u32 %v1254, 8
        %v1295 = vmul.u32.u64.compose %v1294, %v1293
        %v1296 = vextract.low.u32 %v1295
        %v1297 = vextract.high.u32 %v1295
        %v1298 = vmul.u32.u64.compose %v1294, %v1289
        %v1299 = vextract.low.u32 %v1298
        %v1300 = vextract.high.u32 %v1298
        %v1301 = vmul.u32 %v1294, %v1285
        %v1302 = vadd.s32 %v1297, %v1299
        %vm1303 = vc.u32 %v1297, %v1299
        %v1304 = vadd.s32 %v1300, 1
        %v1305 = vsel %vm1303, %v1304, %v1300
        %v1306 = vadd.s32 %v1301, %v1305
        %v1307 = vadd.s32 %v1306, 536870912
        %v1308 = vshrl.u32 %v1307, 30
        %v1309 = vshll.u32 %v1308, 30
        %v1310 = vsub.s32 %v1306, %v1309
        %vm1311 = vcmp.lt.s32.totalorder %v1310, 0
        %v1312 = vsub.s32 0, %v1310
        %v1313 = vsel %vm1311, %v1312, %v1310
        %v1314 = vclz %v1313
        %v1315 = vsub.s32 %v1314, 2
        %vm1316 = vcmp.gt.s32.totalorder 0, %v1315
        %v1317 = vsel %vm1316, 0, %v1315
        %v1318 = vsub.s32 32, %v1317
        %v1319 = vshll.u32 %v1310, %v1317
        %v1320 = vshrl.u32 %v1302, %v1318
        %v1321 = vor.u32 %v1319, %v1320
        %v1322 = vsub.s32 4294967266, %v1317
        %v1323 = vadd.s32 %v1322, 127
        %v1324 = vshll.u32 %v1323, 23
        %v1325 = vor.u32 4788187, %v1324
        %v1326 = vand.u32 2147483647, %v1325
        %v1328 = vcvt.s32.f32 %v1321
        %v1329 = vmul.f32 %v1328, %v1326
        %v1330 = vxor.u32 %v1329, 2147483648
        %v1331 = vsel %vm1248, %v1330, %v1329
        %v1332 = vsub.s32 4, %v1308
        %v1333 = vsel %vm1248, %v1332, %v1308
        %v1334 = vsel %vm1247, %v303, %v1331
        %v1335 = vsel %vm1247, 0, %v1333
        %v1336 = vcosq.f32.pop %v1334
        %v1337 = vsinq.f32.pop %v1334
        %vm1338 = vweird.f32 %v303
        %v1339 = vadd.s32 %v1335, 3
        %v1340 = vand.u32 %v1339, 3
        %vm1341 = vcmp.lt.s32.totalorder %v1340, 2
        %vm1342 = vcmp.eq.s32.totalorder %v1340, 0
        %v1343 = vxor.u32 %v1337, 2147483648
        %v1344 = vsel %vm1342, %v1336, %v1343
        %vm1345 = vcmp.eq.s32.totalorder %v1340, 2
        %v1346 = vxor.u32 %v1336, 2147483648
        %v1347 = vsel %vm1345, %v1346, %v1337
        %v1348 = vsel %vm1341, %v1344, %v1347
        %v1349 = vsel %vm1338, nan, %v1348
        %v1350 = vand.u32 2147483647, %v304
        %vm1351 = vcmp.le.f32.partialorder %v1350, 0.7853982
        %vm1352 = vcmp.lt.s32.totalorder %v304, 0
        %v1353 = vand.u32 %v304, 2139095040
        %v1354 = vshrl.u32 %v1353, 23
        %v1355 = vsub.s32 %v1354, 127
        %v1356 = vand.u32 2147483647, %v304
        %v1357 = vand.u32 %v1356, 8388607
        %v1358 = vor.u32 %v1357, 8388608
        %v1359 = vsub.s32 0, %v1358
        %v1360 = vadd.s32 %v1355, 1
        %vm1361 = vcmp.gt.s32.totalorder %v1360, 0
        %v1362 = vsel %vm1361, %v1360, 0
        %v1363 = vshrl.u32 %v1362, 5
        %v1364 = vand.u32 %v1362, 31
        %v1365 = vsub.s32 32, %v1364
        %v1366 = vshrl.u32 683565275, %v1365
        %v1367 = vshll.u32 683565275, %v1364
        %v1368 = vshrl.u32 2475754826, %v1365
        %v1369 = vor.u32 %v1367, %v1368
        %v1370 = vshll.u32 2475754826, %v1364
        %v1371 = vshrl.u32 2131351028, %v1365
        %v1372 = vor.u32 %v1370, %v1371
        %v1373 = vshll.u32 2131351028, %v1364
        %v1374 = vshrl.u32 2102212464, %v1365
        %v1375 = vor.u32 %v1373, %v1374
        %v1376 = vshll.u32 2102212464, %v1364
        %v1377 = vshrl.u32 920167782, %v1365
        %v1378 = vor.u32 %v1376, %v1377
        %v1379 = vshll.u32 920167782, %v1364
        %v1380 = vshrl.u32 1326507024, %v1365
        %v1381 = vor.u32 %v1379, %v1380
        %vm1382 = vcmp.lt.s32.totalorder %v1363, 1
        %vm1383 = vcmp.lt.s32.totalorder %v1363, 2
        %vm1384 = vcmp.lt.s32.totalorder %v1363, 3
        %vm1385 = vcmp.lt.s32.totalorder %v1363, 4
        %v1386 = vsel %vm1382, %v1366, %v1369
        %v1387 = vsel %vm1385, %v1375, 2102212464
        %v1388 = vsel %vm1384, %v1372, %v1387
        %v1389 = vsel %vm1383, %v1386, %v1388
        %v1390 = vsel %vm1382, %v1369, %v1372
        %v1391 = vsel %vm1385, %v1378, 920167782
        %v1392 = vsel %vm1384, %v1375, %v1391
        %v1393 = vsel %vm1383, %v1390, %v1392
        %v1394 = vsel %vm1382, %v1372, %v1375
        %v1395 = vsel %vm1385, %v1381, 1326507024
        %v1396 = vsel %vm1384, %v1378, %v1395
        %v1397 = vsel %vm1383, %v1394, %v1396
        %v1398 = vshll.u32 %v1358, 8
        %v1399 = vmul.u32.u64.compose %v1398, %v1397
        %v1400 = vextract.low.u32 %v1399
        %v1401 = vextract.high.u32 %v1399
        %v1402 = vmul.u32.u64.compose %v1398, %v1393
        %v1403 = vextract.low.u32 %v1402
        %v1404 = vextract.high.u32 %v1402
        %v1405 = vmul.u32 %v1398, %v1389
        %v1406 = vadd.s32 %v1401, %v1403
        %vm1407 = vc.u32 %v1401, %v1403
        %v1408 = vadd.s32 %v1404, 1
        %v1409 = vsel %vm1407, %v1408, %v1404
        %v1410 = vadd.s32 %v1405, %v1409
        %v1411 = vadd.s32 %v1410, 536870912
        %v1412 = vshrl.u32 %v1411, 30
        %v1413 = vshll.u32 %v1412, 30
        %v1414 = vsub.s32 %v1410, %v1413
        %vm1415 = vcmp.lt.s32.totalorder %v1414, 0
        %v1416 = vsub.s32 0, %v1414
        %v1417 = vsel %vm1415, %v1416, %v1414
        %v1418 = vclz %v1417
        %v1419 = vsub.s32 %v1418, 2
        %vm1420 = vcmp.gt.s32.totalorder 0, %v1419
        %v1421 = vsel %vm1420, 0, %v1419
        %v1422 = vsub.s32 32, %v1421
        %v1423 = vshll.u32 %v1414, %v1421
        %v1424 = vshrl.u32 %v1406, %v1422
        %v1425 = vor.u32 %v1423, %v1424
        %v1426 = vsub.s32 4294967266, %v1421
        %v1427 = vadd.s32 %v1426, 127
        %v1428 = vshll.u32 %v1427, 23
        %v1429 = vor.u32 4788187, %v1428
        %v1430 = vand.u32 2147483647, %v1429
        %v1432 = vcvt.s32.f32 %v1425
        %v1433 = vmul.f32 %v1432, %v1430
        %v1434 = vxor.u32 %v1433, 2147483648
        %v1435 = vsel %vm1352, %v1434, %v1433
        %v1436 = vsub.s32 4, %v1412
        %v1437 = vsel %vm1352, %v1436, %v1412
        %v1438 = vsel %vm1351, %v304, %v1435
        %v1439 = vsel %vm1351, 0, %v1437
        %v1440 = vcosq.f32.pop %v1438
        %v1441 = vsinq.f32.pop %v1438
        %vm1442 = vweird.f32 %v304
        %v1443 = vadd.s32 %v1439, 3
        %v1444 = vand.u32 %v1443, 3
        %vm1445 = vcmp.lt.s32.totalorder %v1444, 2
        %vm1446 = vcmp.eq.s32.totalorder %v1444, 0
        %v1447 = vxor.u32 %v1441, 2147483648
        %v1448 = vsel %vm1446, %v1440, %v1447
        %vm1449 = vcmp.eq.s32.totalorder %v1444, 2
        %v1450 = vxor.u32 %v1440, 2147483648
        %v1451 = vsel %vm1449, %v1450, %v1441
        %v1452 = vsel %vm1445, %v1448, %v1451
        %v1453 = vsel %vm1442, nan, %v1452
        %v1454 = vand.u32 2147483647, %v305
        %vm1455 = vcmp.le.f32.partialorder %v1454, 0.7853982
        %vm1456 = vcmp.lt.s32.totalorder %v305, 0
        %v1457 = vand.u32 %v305, 2139095040
        %v1458 = vshrl.u32 %v1457, 23
        %v1459 = vsub.s32 %v1458, 127
        %v1460 = vand.u32 2147483647, %v305
        %v1461 = vand.u32 %v1460, 8388607
        %v1462 = vor.u32 %v1461, 8388608
        %v1463 = vsub.s32 0, %v1462
        %v1464 = vadd.s32 %v1459, 1
        %vm1465 = vcmp.gt.s32.totalorder %v1464, 0
        %v1466 = vsel %vm1465, %v1464, 0
        %v1467 = vshrl.u32 %v1466, 5
        %v1468 = vand.u32 %v1466, 31
        %v1469 = vsub.s32 32, %v1468
        %v1470 = vshrl.u32 683565275, %v1469
        %v1471 = vshll.u32 683565275, %v1468
        %v1472 = vshrl.u32 2475754826, %v1469
        %v1473 = vor.u32 %v1471, %v1472
        %v1474 = vshll.u32 2475754826, %v1468
        %v1475 = vshrl.u32 2131351028, %v1469
        %v1476 = vor.u32 %v1474, %v1475
        %v1477 = vshll.u32 2131351028, %v1468
        %v1478 = vshrl.u32 2102212464, %v1469
        %v1479 = vor.u32 %v1477, %v1478
        %v1480 = vshll.u32 2102212464, %v1468
        %v1481 = vshrl.u32 920167782, %v1469
        %v1482 = vor.u32 %v1480, %v1481
        %v1483 = vshll.u32 920167782, %v1468
        %v1484 = vshrl.u32 1326507024, %v1469
        %v1485 = vor.u32 %v1483, %v1484
        %vm1486 = vcmp.lt.s32.totalorder %v1467, 1
        %vm1487 = vcmp.lt.s32.totalorder %v1467, 2
        %vm1488 = vcmp.lt.s32.totalorder %v1467, 3
        %vm1489 = vcmp.lt.s32.totalorder %v1467, 4
        %v1490 = vsel %vm1486, %v1470, %v1473
        %v1491 = vsel %vm1489, %v1479, 2102212464
        %v1492 = vsel %vm1488, %v1476, %v1491
        %v1493 = vsel %vm1487, %v1490, %v1492
        %v1494 = vsel %vm1486, %v1473, %v1476
        %v1495 = vsel %vm1489, %v1482, 920167782
        %v1496 = vsel %vm1488, %v1479, %v1495
        %v1497 = vsel %vm1487, %v1494, %v1496
        %v1498 = vsel %vm1486, %v1476, %v1479
        %v1499 = vsel %vm1489, %v1485, 1326507024
        %v1500 = vsel %vm1488, %v1482, %v1499
        %v1501 = vsel %vm1487, %v1498, %v1500
        %v1502 = vshll.u32 %v1462, 8
        %v1503 = vmul.u32.u64.compose %v1502, %v1501
        %v1504 = vextract.low.u32 %v1503
        %v1505 = vextract.high.u32 %v1503
        %v1506 = vmul.u32.u64.compose %v1502, %v1497
        %v1507 = vextract.low.u32 %v1506
        %v1508 = vextract.high.u32 %v1506
        %v1509 = vmul.u32 %v1502, %v1493
        %v1510 = vadd.s32 %v1505, %v1507
        %vm1511 = vc.u32 %v1505, %v1507
        %v1512 = vadd.s32 %v1508, 1
        %v1513 = vsel %vm1511, %v1512, %v1508
        %v1514 = vadd.s32 %v1509, %v1513
        %v1515 = vadd.s32 %v1514, 536870912
        %v1516 = vshrl.u32 %v1515, 30
        %v1517 = vshll.u32 %v1516, 30
        %v1518 = vsub.s32 %v1514, %v1517
        %vm1519 = vcmp.lt.s32.totalorder %v1518, 0
        %v1520 = vsub.s32 0, %v1518
        %v1521 = vsel %vm1519, %v1520, %v1518
        %v1522 = vclz %v1521
        %v1523 = vsub.s32 %v1522, 2
        %vm1524 = vcmp.gt.s32.totalorder 0, %v1523
        %v1525 = vsel %vm1524, 0, %v1523
        %v1526 = vsub.s32 32, %v1525
        %v1527 = vshll.u32 %v1518, %v1525
        %v1528 = vshrl.u32 %v1510, %v1526
        %v1529 = vor.u32 %v1527, %v1528
        %v1530 = vsub.s32 4294967266, %v1525
        %v1531 = vadd.s32 %v1530, 127
        %v1532 = vshll.u32 %v1531, 23
        %v1533 = vor.u32 4788187, %v1532
        %v1534 = vand.u32 2147483647, %v1533
        %v1536 = vcvt.s32.f32 %v1529
        %v1537 = vmul.f32 %v1536, %v1534
        %v1538 = vxor.u32 %v1537, 2147483648
        %v1539 = vsel %vm1456, %v1538, %v1537
        %v1540 = vsub.s32 4, %v1516
        %v1541 = vsel %vm1456, %v1540, %v1516
        %v1542 = vsel %vm1455, %v305, %v1539
        %v1543 = vsel %vm1455, 0, %v1541
        %v1544 = vcosq.f32.pop %v1542
        %v1545 = vsinq.f32.pop %v1542
        %vm1546 = vweird.f32 %v305
        %v1547 = vadd.s32 %v1543, 3
        %v1548 = vand.u32 %v1547, 3
        %vm1549 = vcmp.lt.s32.totalorder %v1548, 2
        %vm1550 = vcmp.eq.s32.totalorder %v1548, 0
        %v1551 = vxor.u32 %v1545, 2147483648
        %v1552 = vsel %vm1550, %v1544, %v1551
        %vm1553 = vcmp.eq.s32.totalorder %v1548, 2
        %v1554 = vxor.u32 %v1544, 2147483648
        %v1555 = vsel %vm1553, %v1554, %v1545
        %v1556 = vsel %vm1549, %v1552, %v1555
        %v1557 = vsel %vm1546, nan, %v1556
        %v1558 = vand.u32 2147483647, %v306
        %vm1559 = vcmp.le.f32.partialorder %v1558, 0.7853982
        %vm1560 = vcmp.lt.s32.totalorder %v306, 0
        %v1561 = vand.u32 %v306, 2139095040
        %v1562 = vshrl.u32 %v1561, 23
        %v1563 = vsub.s32 %v1562, 127
        %v1564 = vand.u32 2147483647, %v306
        %v1565 = vand.u32 %v1564, 8388607
        %v1566 = vor.u32 %v1565, 8388608
        %v1567 = vsub.s32 0, %v1566
        %v1568 = vadd.s32 %v1563, 1
        %vm1569 = vcmp.gt.s32.totalorder %v1568, 0
        %v1570 = vsel %vm1569, %v1568, 0
        %v1571 = vshrl.u32 %v1570, 5
        %v1572 = vand.u32 %v1570, 31
        %v1573 = vsub.s32 32, %v1572
        %v1574 = vshrl.u32 683565275, %v1573
        %v1575 = vshll.u32 683565275, %v1572
        %v1576 = vshrl.u32 2475754826, %v1573
        %v1577 = vor.u32 %v1575, %v1576
        %v1578 = vshll.u32 2475754826, %v1572
        %v1579 = vshrl.u32 2131351028, %v1573
        %v1580 = vor.u32 %v1578, %v1579
        %v1581 = vshll.u32 2131351028, %v1572
        %v1582 = vshrl.u32 2102212464, %v1573
        %v1583 = vor.u32 %v1581, %v1582
        %v1584 = vshll.u32 2102212464, %v1572
        %v1585 = vshrl.u32 920167782, %v1573
        %v1586 = vor.u32 %v1584, %v1585
        %v1587 = vshll.u32 920167782, %v1572
        %v1588 = vshrl.u32 1326507024, %v1573
        %v1589 = vor.u32 %v1587, %v1588
        %vm1590 = vcmp.lt.s32.totalorder %v1571, 1
        %vm1591 = vcmp.lt.s32.totalorder %v1571, 2
        %vm1592 = vcmp.lt.s32.totalorder %v1571, 3
        %vm1593 = vcmp.lt.s32.totalorder %v1571, 4
        %v1594 = vsel %vm1590, %v1574, %v1577
        %v1595 = vsel %vm1593, %v1583, 2102212464
        %v1596 = vsel %vm1592, %v1580, %v1595
        %v1597 = vsel %vm1591, %v1594, %v1596
        %v1598 = vsel %vm1590, %v1577, %v1580
        %v1599 = vsel %vm1593, %v1586, 920167782
        %v1600 = vsel %vm1592, %v1583, %v1599
        %v1601 = vsel %vm1591, %v1598, %v1600
        %v1602 = vsel %vm1590, %v1580, %v1583
        %v1603 = vsel %vm1593, %v1589, 1326507024
        %v1604 = vsel %vm1592, %v1586, %v1603
        %v1605 = vsel %vm1591, %v1602, %v1604
        %v1606 = vshll.u32 %v1566, 8
        %v1607 = vmul.u32.u64.compose %v1606, %v1605
        %v1608 = vextract.low.u32 %v1607
        %v1609 = vextract.high.u32 %v1607
        %v1610 = vmul.u32.u64.compose %v1606, %v1601
        %v1611 = vextract.low.u32 %v1610
        %v1612 = vextract.high.u32 %v1610
        %v1613 = vmul.u32 %v1606, %v1597
        %v1614 = vadd.s32 %v1609, %v1611
        %vm1615 = vc.u32 %v1609, %v1611
        %v1616 = vadd.s32 %v1612, 1
        %v1617 = vsel %vm1615, %v1616, %v1612
        %v1618 = vadd.s32 %v1613, %v1617
        %v1619 = vadd.s32 %v1618, 536870912
        %v1620 = vshrl.u32 %v1619, 30
        %v1621 = vshll.u32 %v1620, 30
        %v1622 = vsub.s32 %v1618, %v1621
        %vm1623 = vcmp.lt.s32.totalorder %v1622, 0
        %v1624 = vsub.s32 0, %v1622
        %v1625 = vsel %vm1623, %v1624, %v1622
        %v1626 = vclz %v1625
        %v1627 = vsub.s32 %v1626, 2
        %vm1628 = vcmp.gt.s32.totalorder 0, %v1627
        %v1629 = vsel %vm1628, 0, %v1627
        %v1630 = vsub.s32 32, %v1629
        %v1631 = vshll.u32 %v1622, %v1629
        %v1632 = vshrl.u32 %v1614, %v1630
        %v1633 = vor.u32 %v1631, %v1632
        %v1634 = vsub.s32 4294967266, %v1629
        %v1635 = vadd.s32 %v1634, 127
        %v1636 = vshll.u32 %v1635, 23
        %v1637 = vor.u32 4788187, %v1636
        %v1638 = vand.u32 2147483647, %v1637
        %v1640 = vcvt.s32.f32 %v1633
        %v1641 = vmul.f32 %v1640, %v1638
        %v1642 = vxor.u32 %v1641, 2147483648
        %v1643 = vsel %vm1560, %v1642, %v1641
        %v1644 = vsub.s32 4, %v1620
        %v1645 = vsel %vm1560, %v1644, %v1620
        %v1646 = vsel %vm1559, %v306, %v1643
        %v1647 = vsel %vm1559, 0, %v1645
        %v1648 = vcosq.f32.pop %v1646
        %v1649 = vsinq.f32.pop %v1646
        %vm1650 = vweird.f32 %v306
        %v1651 = vadd.s32 %v1647, 3
        %v1652 = vand.u32 %v1651, 3
        %vm1653 = vcmp.lt.s32.totalorder %v1652, 2
        %vm1654 = vcmp.eq.s32.totalorder %v1652, 0
        %v1655 = vxor.u32 %v1649, 2147483648
        %v1656 = vsel %vm1654, %v1648, %v1655
        %vm1657 = vcmp.eq.s32.totalorder %v1652, 2
        %v1658 = vxor.u32 %v1648, 2147483648
        %v1659 = vsel %vm1657, %v1658, %v1649
        %v1660 = vsel %vm1653, %v1656, %v1659
        %v1661 = vsel %vm1650, nan, %v1660
        %v1662 = vand.u32 2147483647, %v307
        %vm1663 = vcmp.le.f32.partialorder %v1662, 0.7853982
        %vm1664 = vcmp.lt.s32.totalorder %v307, 0
        %v1665 = vand.u32 %v307, 2139095040
        %v1666 = vshrl.u32 %v1665, 23
        %v1667 = vsub.s32 %v1666, 127
        %v1668 = vand.u32 2147483647, %v307
        %v1669 = vand.u32 %v1668, 8388607
        %v1670 = vor.u32 %v1669, 8388608
        %v1671 = vsub.s32 0, %v1670
        %v1672 = vadd.s32 %v1667, 1
        %vm1673 = vcmp.gt.s32.totalorder %v1672, 0
        %v1674 = vsel %vm1673, %v1672, 0
        %v1675 = vshrl.u32 %v1674, 5
        %v1676 = vand.u32 %v1674, 31
        %v1677 = vsub.s32 32, %v1676
        %v1678 = vshrl.u32 683565275, %v1677
        %v1679 = vshll.u32 683565275, %v1676
        %v1680 = vshrl.u32 2475754826, %v1677
        %v1681 = vor.u32 %v1679, %v1680
        %v1682 = vshll.u32 2475754826, %v1676
        %v1683 = vshrl.u32 2131351028, %v1677
        %v1684 = vor.u32 %v1682, %v1683
        %v1685 = vshll.u32 2131351028, %v1676
        %v1686 = vshrl.u32 2102212464, %v1677
        %v1687 = vor.u32 %v1685, %v1686
        %v1688 = vshll.u32 2102212464, %v1676
        %v1689 = vshrl.u32 920167782, %v1677
        %v1690 = vor.u32 %v1688, %v1689
        %v1691 = vshll.u32 920167782, %v1676
        %v1692 = vshrl.u32 1326507024, %v1677
        %v1693 = vor.u32 %v1691, %v1692
        %vm1694 = vcmp.lt.s32.totalorder %v1675, 1
        %vm1695 = vcmp.lt.s32.totalorder %v1675, 2
        %vm1696 = vcmp.lt.s32.totalorder %v1675, 3
        %vm1697 = vcmp.lt.s32.totalorder %v1675, 4
        %v1698 = vsel %vm1694, %v1678, %v1681
        %v1699 = vsel %vm1697, %v1687, 2102212464
        %v1700 = vsel %vm1696, %v1684, %v1699
        %v1701 = vsel %vm1695, %v1698, %v1700
        %v1702 = vsel %vm1694, %v1681, %v1684
        %v1703 = vsel %vm1697, %v1690, 920167782
        %v1704 = vsel %vm1696, %v1687, %v1703
        %v1705 = vsel %vm1695, %v1702, %v1704
        %v1706 = vsel %vm1694, %v1684, %v1687
        %v1707 = vsel %vm1697, %v1693, 1326507024
        %v1708 = vsel %vm1696, %v1690, %v1707
        %v1709 = vsel %vm1695, %v1706, %v1708
        %v1710 = vshll.u32 %v1670, 8
        %v1711 = vmul.u32.u64.compose %v1710, %v1709
        %v1712 = vextract.low.u32 %v1711
        %v1713 = vextract.high.u32 %v1711
        %v1714 = vmul.u32.u64.compose %v1710, %v1705
        %v1715 = vextract.low.u32 %v1714
        %v1716 = vextract.high.u32 %v1714
        %v1717 = vmul.u32 %v1710, %v1701
        %v1718 = vadd.s32 %v1713, %v1715
        %vm1719 = vc.u32 %v1713, %v1715
        %v1720 = vadd.s32 %v1716, 1
        %v1721 = vsel %vm1719, %v1720, %v1716
        %v1722 = vadd.s32 %v1717, %v1721
        %v1723 = vadd.s32 %v1722, 536870912
        %v1724 = vshrl.u32 %v1723, 30
        %v1725 = vshll.u32 %v1724, 30
        %v1726 = vsub.s32 %v1722, %v1725
        %vm1727 = vcmp.lt.s32.totalorder %v1726, 0
        %v1728 = vsub.s32 0, %v1726
        %v1729 = vsel %vm1727, %v1728, %v1726
        %v1730 = vclz %v1729
        %v1731 = vsub.s32 %v1730, 2
        %vm1732 = vcmp.gt.s32.totalorder 0, %v1731
        %v1733 = vsel %vm1732, 0, %v1731
        %v1734 = vsub.s32 32, %v1733
        %v1735 = vshll.u32 %v1726, %v1733
        %v1736 = vshrl.u32 %v1718, %v1734
        %v1737 = vor.u32 %v1735, %v1736
        %v1738 = vsub.s32 4294967266, %v1733
        %v1739 = vadd.s32 %v1738, 127
        %v1740 = vshll.u32 %v1739, 23
        %v1741 = vor.u32 4788187, %v1740
        %v1742 = vand.u32 2147483647, %v1741
        %v1744 = vcvt.s32.f32 %v1737
        %v1745 = vmul.f32 %v1744, %v1742
        %v1746 = vxor.u32 %v1745, 2147483648
        %v1747 = vsel %vm1664, %v1746, %v1745
        %v1748 = vsub.s32 4, %v1724
        %v1749 = vsel %vm1664, %v1748, %v1724
        %v1750 = vsel %vm1663, %v307, %v1747
        %v1751 = vsel %vm1663, 0, %v1749
        %v1752 = vcosq.f32.pop %v1750
        %v1753 = vsinq.f32.pop %v1750
        %vm1754 = vweird.f32 %v307
        %v1755 = vadd.s32 %v1751, 3
        %v1756 = vand.u32 %v1755, 3
        %vm1757 = vcmp.lt.s32.totalorder %v1756, 2
        %vm1758 = vcmp.eq.s32.totalorder %v1756, 0
        %v1759 = vxor.u32 %v1753, 2147483648
        %v1760 = vsel %vm1758, %v1752, %v1759
        %vm1761 = vcmp.eq.s32.totalorder %v1756, 2
        %v1762 = vxor.u32 %v1752, 2147483648
        %v1763 = vsel %vm1761, %v1762, %v1753
        %v1764 = vsel %vm1757, %v1760, %v1763
        %v1765 = vsel %vm1754, nan, %v1764
        %v1766 = vand.u32 2147483647, %v308
        %vm1767 = vcmp.le.f32.partialorder %v1766, 0.7853982
        %vm1768 = vcmp.lt.s32.totalorder %v308, 0
        %v1769 = vand.u32 %v308, 2139095040
        %v1770 = vshrl.u32 %v1769, 23
        %v1771 = vsub.s32 %v1770, 127
        %v1772 = vand.u32 2147483647, %v308
        %v1773 = vand.u32 %v1772, 8388607
        %v1774 = vor.u32 %v1773, 8388608
        %v1775 = vsub.s32 0, %v1774
        %v1776 = vadd.s32 %v1771, 1
        %vm1777 = vcmp.gt.s32.totalorder %v1776, 0
        %v1778 = vsel %vm1777, %v1776, 0
        %v1779 = vshrl.u32 %v1778, 5
        %v1780 = vand.u32 %v1778, 31
        %v1781 = vsub.s32 32, %v1780
        %v1782 = vshrl.u32 683565275, %v1781
        %v1783 = vshll.u32 683565275, %v1780
        %v1784 = vshrl.u32 2475754826, %v1781
        %v1785 = vor.u32 %v1783, %v1784
        %v1786 = vshll.u32 2475754826, %v1780
        %v1787 = vshrl.u32 2131351028, %v1781
        %v1788 = vor.u32 %v1786, %v1787
        %v1789 = vshll.u32 2131351028, %v1780
        %v1790 = vshrl.u32 2102212464, %v1781
        %v1791 = vor.u32 %v1789, %v1790
        %v1792 = vshll.u32 2102212464, %v1780
        %v1793 = vshrl.u32 920167782, %v1781
        %v1794 = vor.u32 %v1792, %v1793
        %v1795 = vshll.u32 920167782, %v1780
        %v1796 = vshrl.u32 1326507024, %v1781
        %v1797 = vor.u32 %v1795, %v1796
        %vm1798 = vcmp.lt.s32.totalorder %v1779, 1
        %vm1799 = vcmp.lt.s32.totalorder %v1779, 2
        %vm1800 = vcmp.lt.s32.totalorder %v1779, 3
        %vm1801 = vcmp.lt.s32.totalorder %v1779, 4
        %v1802 = vsel %vm1798, %v1782, %v1785
        %v1803 = vsel %vm1801, %v1791, 2102212464
        %v1804 = vsel %vm1800, %v1788, %v1803
        %v1805 = vsel %vm1799, %v1802, %v1804
        %v1806 = vsel %vm1798, %v1785, %v1788
        %v1807 = vsel %vm1801, %v1794, 920167782
        %v1808 = vsel %vm1800, %v1791, %v1807
        %v1809 = vsel %vm1799, %v1806, %v1808
        %v1810 = vsel %vm1798, %v1788, %v1791
        %v1811 = vsel %vm1801, %v1797, 1326507024
        %v1812 = vsel %vm1800, %v1794, %v1811
        %v1813 = vsel %vm1799, %v1810, %v1812
        %v1814 = vshll.u32 %v1774, 8
        %v1815 = vmul.u32.u64.compose %v1814, %v1813
        %v1816 = vextract.low.u32 %v1815
        %v1817 = vextract.high.u32 %v1815
        %v1818 = vmul.u32.u64.compose %v1814, %v1809
        %v1819 = vextract.low.u32 %v1818
        %v1820 = vextract.high.u32 %v1818
        %v1821 = vmul.u32 %v1814, %v1805
        %v1822 = vadd.s32 %v1817, %v1819
        %vm1823 = vc.u32 %v1817, %v1819
        %v1824 = vadd.s32 %v1820, 1
        %v1825 = vsel %vm1823, %v1824, %v1820
        %v1826 = vadd.s32 %v1821, %v1825
        %v1827 = vadd.s32 %v1826, 536870912
        %v1828 = vshrl.u32 %v1827, 30
        %v1829 = vshll.u32 %v1828, 30
        %v1830 = vsub.s32 %v1826, %v1829
        %vm1831 = vcmp.lt.s32.totalorder %v1830, 0
        %v1832 = vsub.s32 0, %v1830
        %v1833 = vsel %vm1831, %v1832, %v1830
        %v1834 = vclz %v1833
        %v1835 = vsub.s32 %v1834, 2
        %vm1836 = vcmp.gt.s32.totalorder 0, %v1835
        %v1837 = vsel %vm1836, 0, %v1835
        %v1838 = vsub.s32 32, %v1837
        %v1839 = vshll.u32 %v1830, %v1837
        %v1840 = vshrl.u32 %v1822, %v1838
        %v1841 = vor.u32 %v1839, %v1840
        %v1842 = vsub.s32 4294967266, %v1837
        %v1843 = vadd.s32 %v1842, 127
        %v1844 = vshll.u32 %v1843, 23
        %v1845 = vor.u32 4788187, %v1844
        %v1846 = vand.u32 2147483647, %v1845
        %v1848 = vcvt.s32.f32 %v1841
        %v1849 = vmul.f32 %v1848, %v1846
        %v1850 = vxor.u32 %v1849, 2147483648
        %v1851 = vsel %vm1768, %v1850, %v1849
        %v1852 = vsub.s32 4, %v1828
        %v1853 = vsel %vm1768, %v1852, %v1828
        %v1854 = vsel %vm1767, %v308, %v1851
        %v1855 = vsel %vm1767, 0, %v1853
        %v1856 = vcosq.f32.pop %v1854
        %v1857 = vsinq.f32.pop %v1854
        %vm1858 = vweird.f32 %v308
        %v1859 = vadd.s32 %v1855, 3
        %v1860 = vand.u32 %v1859, 3
        %vm1861 = vcmp.lt.s32.totalorder %v1860, 2
        %vm1862 = vcmp.eq.s32.totalorder %v1860, 0
        %v1863 = vxor.u32 %v1857, 2147483648
        %v1864 = vsel %vm1862, %v1856, %v1863
        %vm1865 = vcmp.eq.s32.totalorder %v1860, 2
        %v1866 = vxor.u32 %v1856, 2147483648
        %v1867 = vsel %vm1865, %v1866, %v1857
        %v1868 = vsel %vm1861, %v1864, %v1867
        %v1869 = vsel %vm1858, nan, %v1868
        %v1870 = vand.u32 2147483647, %v309
        %vm1871 = vcmp.le.f32.partialorder %v1870, 0.7853982
        %vm1872 = vcmp.lt.s32.totalorder %v309, 0
        %v1873 = vand.u32 %v309, 2139095040
        %v1874 = vshrl.u32 %v1873, 23
        %v1875 = vsub.s32 %v1874, 127
        %v1876 = vand.u32 2147483647, %v309
        %v1877 = vand.u32 %v1876, 8388607
        %v1878 = vor.u32 %v1877, 8388608
        %v1879 = vsub.s32 0, %v1878
        %v1880 = vadd.s32 %v1875, 1
        %vm1881 = vcmp.gt.s32.totalorder %v1880, 0
        %v1882 = vsel %vm1881, %v1880, 0
        %v1883 = vshrl.u32 %v1882, 5
        %v1884 = vand.u32 %v1882, 31
        %v1885 = vsub.s32 32, %v1884
        %v1886 = vshrl.u32 683565275, %v1885
        %v1887 = vshll.u32 683565275, %v1884
        %v1888 = vshrl.u32 2475754826, %v1885
        %v1889 = vor.u32 %v1887, %v1888
        %v1890 = vshll.u32 2475754826, %v1884
        %v1891 = vshrl.u32 2131351028, %v1885
        %v1892 = vor.u32 %v1890, %v1891
        %v1893 = vshll.u32 2131351028, %v1884
        %v1894 = vshrl.u32 2102212464, %v1885
        %v1895 = vor.u32 %v1893, %v1894
        %v1896 = vshll.u32 2102212464, %v1884
        %v1897 = vshrl.u32 920167782, %v1885
        %v1898 = vor.u32 %v1896, %v1897
        %v1899 = vshll.u32 920167782, %v1884
        %v1900 = vshrl.u32 1326507024, %v1885
        %v1901 = vor.u32 %v1899, %v1900
        %vm1902 = vcmp.lt.s32.totalorder %v1883, 1
        %vm1903 = vcmp.lt.s32.totalorder %v1883, 2
        %vm1904 = vcmp.lt.s32.totalorder %v1883, 3
        %vm1905 = vcmp.lt.s32.totalorder %v1883, 4
        %v1906 = vsel %vm1902, %v1886, %v1889
        %v1907 = vsel %vm1905, %v1895, 2102212464
        %v1908 = vsel %vm1904, %v1892, %v1907
        %v1909 = vsel %vm1903, %v1906, %v1908
        %v1910 = vsel %vm1902, %v1889, %v1892
        %v1911 = vsel %vm1905, %v1898, 920167782
        %v1912 = vsel %vm1904, %v1895, %v1911
        %v1913 = vsel %vm1903, %v1910, %v1912
        %v1914 = vsel %vm1902, %v1892, %v1895
        %v1915 = vsel %vm1905, %v1901, 1326507024
        %v1916 = vsel %vm1904, %v1898, %v1915
        %v1917 = vsel %vm1903, %v1914, %v1916
        %v1918 = vshll.u32 %v1878, 8
        %v1919 = vmul.u32.u64.compose %v1918, %v1917
        %v1920 = vextract.low.u32 %v1919
        %v1921 = vextract.high.u32 %v1919
        %v1922 = vmul.u32.u64.compose %v1918, %v1913
        %v1923 = vextract.low.u32 %v1922
        %v1924 = vextract.high.u32 %v1922
        %v1925 = vmul.u32 %v1918, %v1909
        %v1926 = vadd.s32 %v1921, %v1923
        %vm1927 = vc.u32 %v1921, %v1923
        %v1928 = vadd.s32 %v1924, 1
        %v1929 = vsel %vm1927, %v1928, %v1924
        %v1930 = vadd.s32 %v1925, %v1929
        %v1931 = vadd.s32 %v1930, 536870912
        %v1932 = vshrl.u32 %v1931, 30
        %v1933 = vshll.u32 %v1932, 30
        %v1934 = vsub.s32 %v1930, %v1933
        %vm1935 = vcmp.lt.s32.totalorder %v1934, 0
        %v1936 = vsub.s32 0, %v1934
        %v1937 = vsel %vm1935, %v1936, %v1934
        %v1938 = vclz %v1937
        %v1939 = vsub.s32 %v1938, 2
        %vm1940 = vcmp.gt.s32.totalorder 0, %v1939
        %v1941 = vsel %vm1940, 0, %v1939
        %v1942 = vsub.s32 32, %v1941
        %v1943 = vshll.u32 %v1934, %v1941
        %v1944 = vshrl.u32 %v1926, %v1942
        %v1945 = vor.u32 %v1943, %v1944
        %v1946 = vsub.s32 4294967266, %v1941
        %v1947 = vadd.s32 %v1946, 127
        %v1948 = vshll.u32 %v1947, 23
        %v1949 = vor.u32 4788187, %v1948
        %v1950 = vand.u32 2147483647, %v1949
        %v1952 = vcvt.s32.f32 %v1945
        %v1953 = vmul.f32 %v1952, %v1950
        %v1954 = vxor.u32 %v1953, 2147483648
        %v1955 = vsel %vm1872, %v1954, %v1953
        %v1956 = vsub.s32 4, %v1932
        %v1957 = vsel %vm1872, %v1956, %v1932
        %v1958 = vsel %vm1871, %v309, %v1955
        %v1959 = vsel %vm1871, 0, %v1957
        %v1960 = vcosq.f32.pop %v1958
        %v1961 = vsinq.f32.pop %v1958
        %vm1962 = vweird.f32 %v309
        %v1963 = vadd.s32 %v1959, 3
        %v1964 = vand.u32 %v1963, 3
        %vm1965 = vcmp.lt.s32.totalorder %v1964, 2
        %vm1966 = vcmp.eq.s32.totalorder %v1964, 0
        %v1967 = vxor.u32 %v1961, 2147483648
        %v1968 = vsel %vm1966, %v1960, %v1967
        %vm1969 = vcmp.eq.s32.totalorder %v1964, 2
        %v1970 = vxor.u32 %v1960, 2147483648
        %v1971 = vsel %vm1969, %v1970, %v1961
        %v1972 = vsel %vm1965, %v1968, %v1971
        %v1973 = vsel %vm1962, nan, %v1972
        %v1974 = vand.u32 2147483647, %v294
        %vm1975 = vcmp.le.f32.partialorder %v1974, 0.7853982
        %vm1976 = vcmp.lt.s32.totalorder %v294, 0
        %v1977 = vand.u32 %v294, 2139095040
        %v1978 = vshrl.u32 %v1977, 23
        %v1979 = vsub.s32 %v1978, 127
        %v1980 = vand.u32 2147483647, %v294
        %v1981 = vand.u32 %v1980, 8388607
        %v1982 = vor.u32 %v1981, 8388608
        %v1983 = vsub.s32 0, %v1982
        %v1984 = vadd.s32 %v1979, 1
        %vm1985 = vcmp.gt.s32.totalorder %v1984, 0
        %v1986 = vsel %vm1985, %v1984, 0
        %v1987 = vshrl.u32 %v1986, 5
        %v1988 = vand.u32 %v1986, 31
        %v1989 = vsub.s32 32, %v1988
        %v1990 = vshrl.u32 683565275, %v1989
        %v1991 = vshll.u32 683565275, %v1988
        %v1992 = vshrl.u32 2475754826, %v1989
        %v1993 = vor.u32 %v1991, %v1992
        %v1994 = vshll.u32 2475754826, %v1988
        %v1995 = vshrl.u32 2131351028, %v1989
        %v1996 = vor.u32 %v1994, %v1995
        %v1997 = vshll.u32 2131351028, %v1988
        %v1998 = vshrl.u32 2102212464, %v1989
        %v1999 = vor.u32 %v1997, %v1998
        %v2000 = vshll.u32 2102212464, %v1988
        %v2001 = vshrl.u32 920167782, %v1989
        %v2002 = vor.u32 %v2000, %v2001
        %v2003 = vshll.u32 920167782, %v1988
        %v2004 = vshrl.u32 1326507024, %v1989
        %v2005 = vor.u32 %v2003, %v2004
        %vm2006 = vcmp.lt.s32.totalorder %v1987, 1
        %vm2007 = vcmp.lt.s32.totalorder %v1987, 2
        %vm2008 = vcmp.lt.s32.totalorder %v1987, 3
        %vm2009 = vcmp.lt.s32.totalorder %v1987, 4
        %v2010 = vsel %vm2006, %v1990, %v1993
        %v2011 = vsel %vm2009, %v1999, 2102212464
        %v2012 = vsel %vm2008, %v1996, %v2011
        %v2013 = vsel %vm2007, %v2010, %v2012
        %v2014 = vsel %vm2006, %v1993, %v1996
        %v2015 = vsel %vm2009, %v2002, 920167782
        %v2016 = vsel %vm2008, %v1999, %v2015
        %v2017 = vsel %vm2007, %v2014, %v2016
        %v2018 = vsel %vm2006, %v1996, %v1999
        %v2019 = vsel %vm2009, %v2005, 1326507024
        %v2020 = vsel %vm2008, %v2002, %v2019
        %v2021 = vsel %vm2007, %v2018, %v2020
        %v2022 = vshll.u32 %v1982, 8
        %v2023 = vmul.u32.u64.compose %v2022, %v2021
        %v2024 = vextract.low.u32 %v2023
        %v2025 = vextract.high.u32 %v2023
        %v2026 = vmul.u32.u64.compose %v2022, %v2017
        %v2027 = vextract.low.u32 %v2026
        %v2028 = vextract.high.u32 %v2026
        %v2029 = vmul.u32 %v2022, %v2013
        %v2030 = vadd.s32 %v2025, %v2027
        %vm2031 = vc.u32 %v2025, %v2027
        %v2032 = vadd.s32 %v2028, 1
        %v2033 = vsel %vm2031, %v2032, %v2028
        %v2034 = vadd.s32 %v2029, %v2033
        %v2035 = vadd.s32 %v2034, 536870912
        %v2036 = vshrl.u32 %v2035, 30
        %v2037 = vshll.u32 %v2036, 30
        %v2038 = vsub.s32 %v2034, %v2037
        %vm2039 = vcmp.lt.s32.totalorder %v2038, 0
        %v2040 = vsub.s32 0, %v2038
        %v2041 = vsel %vm2039, %v2040, %v2038
        %v2042 = vclz %v2041
        %v2043 = vsub.s32 %v2042, 2
        %vm2044 = vcmp.gt.s32.totalorder 0, %v2043
        %v2045 = vsel %vm2044, 0, %v2043
        %v2046 = vsub.s32 32, %v2045
        %v2047 = vshll.u32 %v2038, %v2045
        %v2048 = vshrl.u32 %v2030, %v2046
        %v2049 = vor.u32 %v2047, %v2048
        %v2050 = vsub.s32 4294967266, %v2045
        %v2051 = vadd.s32 %v2050, 127
        %v2052 = vshll.u32 %v2051, 23
        %v2053 = vor.u32 4788187, %v2052
        %v2054 = vand.u32 2147483647, %v2053
        %v2056 = vcvt.s32.f32 %v2049
        %v2057 = vmul.f32 %v2056, %v2054
        %v2058 = vxor.u32 %v2057, 2147483648
        %v2059 = vsel %vm1976, %v2058, %v2057
        %v2060 = vsub.s32 4, %v2036
        %v2061 = vsel %vm1976, %v2060, %v2036
        %v2062 = vsel %vm1975, %v294, %v2059
        %v2063 = vsel %vm1975, 0, %v2061
        %v2064 = vcosq.f32.pop %v2062
        %v2065 = vsinq.f32.pop %v2062
        %vm2066 = vweird.f32 %v294
        %v2067 = vand.u32 %v2063, 3
        %vm2068 = vcmp.lt.s32.totalorder %v2067, 2
        %vm2069 = vcmp.eq.s32.totalorder %v2067, 0
        %v2070 = vxor.u32 %v2065, 2147483648
        %v2071 = vsel %vm2069, %v2064, %v2070
        %vm2072 = vcmp.eq.s32.totalorder %v2067, 2
        %v2073 = vxor.u32 %v2064, 2147483648
        %v2074 = vsel %vm2072, %v2073, %v2065
        %v2075 = vsel %vm2068, %v2071, %v2074
        %v2076 = vsel %vm2066, nan, %v2075
        %v2077 = vand.u32 2147483647, %v295
        %vm2078 = vcmp.le.f32.partialorder %v2077, 0.7853982
        %vm2079 = vcmp.lt.s32.totalorder %v295, 0
        %v2080 = vand.u32 %v295, 2139095040
        %v2081 = vshrl.u32 %v2080, 23
        %v2082 = vsub.s32 %v2081, 127
        %v2083 = vand.u32 2147483647, %v295
        %v2084 = vand.u32 %v2083, 8388607
        %v2085 = vor.u32 %v2084, 8388608
        %v2086 = vsub.s32 0, %v2085
        %v2087 = vadd.s32 %v2082, 1
        %vm2088 = vcmp.gt.s32.totalorder %v2087, 0
        %v2089 = vsel %vm2088, %v2087, 0
        %v2090 = vshrl.u32 %v2089, 5
        %v2091 = vand.u32 %v2089, 31
        %v2092 = vsub.s32 32, %v2091
        %v2093 = vshrl.u32 683565275, %v2092
        %v2094 = vshll.u32 683565275, %v2091
        %v2095 = vshrl.u32 2475754826, %v2092
        %v2096 = vor.u32 %v2094, %v2095
        %v2097 = vshll.u32 2475754826, %v2091
        %v2098 = vshrl.u32 2131351028, %v2092
        %v2099 = vor.u32 %v2097, %v2098
        %v2100 = vshll.u32 2131351028, %v2091
        %v2101 = vshrl.u32 2102212464, %v2092
        %v2102 = vor.u32 %v2100, %v2101
        %v2103 = vshll.u32 2102212464, %v2091
        %v2104 = vshrl.u32 920167782, %v2092
        %v2105 = vor.u32 %v2103, %v2104
        %v2106 = vshll.u32 920167782, %v2091
        %v2107 = vshrl.u32 1326507024, %v2092
        %v2108 = vor.u32 %v2106, %v2107
        %vm2109 = vcmp.lt.s32.totalorder %v2090, 1
        %vm2110 = vcmp.lt.s32.totalorder %v2090, 2
        %vm2111 = vcmp.lt.s32.totalorder %v2090, 3
        %vm2112 = vcmp.lt.s32.totalorder %v2090, 4
        %v2113 = vsel %vm2109, %v2093, %v2096
        %v2114 = vsel %vm2112, %v2102, 2102212464
        %v2115 = vsel %vm2111, %v2099, %v2114
        %v2116 = vsel %vm2110, %v2113, %v2115
        %v2117 = vsel %vm2109, %v2096, %v2099
        %v2118 = vsel %vm2112, %v2105, 920167782
        %v2119 = vsel %vm2111, %v2102, %v2118
        %v2120 = vsel %vm2110, %v2117, %v2119
        %v2121 = vsel %vm2109, %v2099, %v2102
        %v2122 = vsel %vm2112, %v2108, 1326507024
        %v2123 = vsel %vm2111, %v2105, %v2122
        %v2124 = vsel %vm2110, %v2121, %v2123
        %v2125 = vshll.u32 %v2085, 8
        %v2126 = vmul.u32.u64.compose %v2125, %v2124
        %v2127 = vextract.low.u32 %v2126
        %v2128 = vextract.high.u32 %v2126
        %v2129 = vmul.u32.u64.compose %v2125, %v2120
        %v2130 = vextract.low.u32 %v2129
        %v2131 = vextract.high.u32 %v2129
        %v2132 = vmul.u32 %v2125, %v2116
        %v2133 = vadd.s32 %v2128, %v2130
        %vm2134 = vc.u32 %v2128, %v2130
        %v2135 = vadd.s32 %v2131, 1
        %v2136 = vsel %vm2134, %v2135, %v2131
        %v2137 = vadd.s32 %v2132, %v2136
        %v2138 = vadd.s32 %v2137, 536870912
        %v2139 = vshrl.u32 %v2138, 30
        %v2140 = vshll.u32 %v2139, 30
        %v2141 = vsub.s32 %v2137, %v2140
        %vm2142 = vcmp.lt.s32.totalorder %v2141, 0
        %v2143 = vsub.s32 0, %v2141
        %v2144 = vsel %vm2142, %v2143, %v2141
        %v2145 = vclz %v2144
        %v2146 = vsub.s32 %v2145, 2
        %vm2147 = vcmp.gt.s32.totalorder 0, %v2146
        %v2148 = vsel %vm2147, 0, %v2146
        %v2149 = vsub.s32 32, %v2148
        %v2150 = vshll.u32 %v2141, %v2148
        %v2151 = vshrl.u32 %v2133, %v2149
        %v2152 = vor.u32 %v2150, %v2151
        %v2153 = vsub.s32 4294967266, %v2148
        %v2154 = vadd.s32 %v2153, 127
        %v2155 = vshll.u32 %v2154, 23
        %v2156 = vor.u32 4788187, %v2155
        %v2157 = vand.u32 2147483647, %v2156
        %v2159 = vcvt.s32.f32 %v2152
        %v2160 = vmul.f32 %v2159, %v2157
        %v2161 = vxor.u32 %v2160, 2147483648
        %v2162 = vsel %vm2079, %v2161, %v2160
        %v2163 = vsub.s32 4, %v2139
        %v2164 = vsel %vm2079, %v2163, %v2139
        %v2165 = vsel %vm2078, %v295, %v2162
        %v2166 = vsel %vm2078, 0, %v2164
        %v2167 = vcosq.f32.pop %v2165
        %v2168 = vsinq.f32.pop %v2165
        %vm2169 = vweird.f32 %v295
        %v2170 = vand.u32 %v2166, 3
        %vm2171 = vcmp.lt.s32.totalorder %v2170, 2
        %vm2172 = vcmp.eq.s32.totalorder %v2170, 0
        %v2173 = vxor.u32 %v2168, 2147483648
        %v2174 = vsel %vm2172, %v2167, %v2173
        %vm2175 = vcmp.eq.s32.totalorder %v2170, 2
        %v2176 = vxor.u32 %v2167, 2147483648
        %v2177 = vsel %vm2175, %v2176, %v2168
        %v2178 = vsel %vm2171, %v2174, %v2177
        %v2179 = vsel %vm2169, nan, %v2178
        %v2180 = vand.u32 2147483647, %v296
        %vm2181 = vcmp.le.f32.partialorder %v2180, 0.7853982
        %vm2182 = vcmp.lt.s32.totalorder %v296, 0
        %v2183 = vand.u32 %v296, 2139095040
        %v2184 = vshrl.u32 %v2183, 23
        %v2185 = vsub.s32 %v2184, 127
        %v2186 = vand.u32 2147483647, %v296
        %v2187 = vand.u32 %v2186, 8388607
        %v2188 = vor.u32 %v2187, 8388608
        %v2189 = vsub.s32 0, %v2188
        %v2190 = vadd.s32 %v2185, 1
        %vm2191 = vcmp.gt.s32.totalorder %v2190, 0
        %v2192 = vsel %vm2191, %v2190, 0
        %v2193 = vshrl.u32 %v2192, 5
        %v2194 = vand.u32 %v2192, 31
        %v2195 = vsub.s32 32, %v2194
        %v2196 = vshrl.u32 683565275, %v2195
        %v2197 = vshll.u32 683565275, %v2194
        %v2198 = vshrl.u32 2475754826, %v2195
        %v2199 = vor.u32 %v2197, %v2198
        %v2200 = vshll.u32 2475754826, %v2194
        %v2201 = vshrl.u32 2131351028, %v2195
        %v2202 = vor.u32 %v2200, %v2201
        %v2203 = vshll.u32 2131351028, %v2194
        %v2204 = vshrl.u32 2102212464, %v2195
        %v2205 = vor.u32 %v2203, %v2204
        %v2206 = vshll.u32 2102212464, %v2194
        %v2207 = vshrl.u32 920167782, %v2195
        %v2208 = vor.u32 %v2206, %v2207
        %v2209 = vshll.u32 920167782, %v2194
        %v2210 = vshrl.u32 1326507024, %v2195
        %v2211 = vor.u32 %v2209, %v2210
        %vm2212 = vcmp.lt.s32.totalorder %v2193, 1
        %vm2213 = vcmp.lt.s32.totalorder %v2193, 2
        %vm2214 = vcmp.lt.s32.totalorder %v2193, 3
        %vm2215 = vcmp.lt.s32.totalorder %v2193, 4
        %v2216 = vsel %vm2212, %v2196, %v2199
        %v2217 = vsel %vm2215, %v2205, 2102212464
        %v2218 = vsel %vm2214, %v2202, %v2217
        %v2219 = vsel %vm2213, %v2216, %v2218
        %v2220 = vsel %vm2212, %v2199, %v2202
        %v2221 = vsel %vm2215, %v2208, 920167782
        %v2222 = vsel %vm2214, %v2205, %v2221
        %v2223 = vsel %vm2213, %v2220, %v2222
        %v2224 = vsel %vm2212, %v2202, %v2205
        %v2225 = vsel %vm2215, %v2211, 1326507024
        %v2226 = vsel %vm2214, %v2208, %v2225
        %v2227 = vsel %vm2213, %v2224, %v2226
        %v2228 = vshll.u32 %v2188, 8
        %v2229 = vmul.u32.u64.compose %v2228, %v2227
        %v2230 = vextract.low.u32 %v2229
        %v2231 = vextract.high.u32 %v2229
        %v2232 = vmul.u32.u64.compose %v2228, %v2223
        %v2233 = vextract.low.u32 %v2232
        %v2234 = vextract.high.u32 %v2232
        %v2235 = vmul.u32 %v2228, %v2219
        %v2236 = vadd.s32 %v2231, %v2233
        %vm2237 = vc.u32 %v2231, %v2233
        %v2238 = vadd.s32 %v2234, 1
        %v2239 = vsel %vm2237, %v2238, %v2234
        %v2240 = vadd.s32 %v2235, %v2239
        %v2241 = vadd.s32 %v2240, 536870912
        %v2242 = vshrl.u32 %v2241, 30
        %v2243 = vshll.u32 %v2242, 30
        %v2244 = vsub.s32 %v2240, %v2243
        %vm2245 = vcmp.lt.s32.totalorder %v2244, 0
        %v2246 = vsub.s32 0, %v2244
        %v2247 = vsel %vm2245, %v2246, %v2244
        %v2248 = vclz %v2247
        %v2249 = vsub.s32 %v2248, 2
        %vm2250 = vcmp.gt.s32.totalorder 0, %v2249
        %v2251 = vsel %vm2250, 0, %v2249
        %v2252 = vsub.s32 32, %v2251
        %v2253 = vshll.u32 %v2244, %v2251
        %v2254 = vshrl.u32 %v2236, %v2252
        %v2255 = vor.u32 %v2253, %v2254
        %v2256 = vsub.s32 4294967266, %v2251
        %v2257 = vadd.s32 %v2256, 127
        %v2258 = vshll.u32 %v2257, 23
        %v2259 = vor.u32 4788187, %v2258
        %v2260 = vand.u32 2147483647, %v2259
        %v2262 = vcvt.s32.f32 %v2255
        %v2263 = vmul.f32 %v2262, %v2260
        %v2264 = vxor.u32 %v2263, 2147483648
        %v2265 = vsel %vm2182, %v2264, %v2263
        %v2266 = vsub.s32 4, %v2242
        %v2267 = vsel %vm2182, %v2266, %v2242
        %v2268 = vsel %vm2181, %v296, %v2265
        %v2269 = vsel %vm2181, 0, %v2267
        %v2270 = vcosq.f32.pop %v2268
        %v2271 = vsinq.f32.pop %v2268
        %vm2272 = vweird.f32 %v296
        %v2273 = vand.u32 %v2269, 3
        %vm2274 = vcmp.lt.s32.totalorder %v2273, 2
        %vm2275 = vcmp.eq.s32.totalorder %v2273, 0
        %v2276 = vxor.u32 %v2271, 2147483648
        %v2277 = vsel %vm2275, %v2270, %v2276
        %vm2278 = vcmp.eq.s32.totalorder %v2273, 2
        %v2279 = vxor.u32 %v2270, 2147483648
        %v2280 = vsel %vm2278, %v2279, %v2271
        %v2281 = vsel %vm2274, %v2277, %v2280
        %v2282 = vsel %vm2272, nan, %v2281
        %v2283 = vand.u32 2147483647, %v297
        %vm2284 = vcmp.le.f32.partialorder %v2283, 0.7853982
        %vm2285 = vcmp.lt.s32.totalorder %v297, 0
        %v2286 = vand.u32 %v297, 2139095040
        %v2287 = vshrl.u32 %v2286, 23
        %v2288 = vsub.s32 %v2287, 127
        %v2289 = vand.u32 2147483647, %v297
        %v2290 = vand.u32 %v2289, 8388607
        %v2291 = vor.u32 %v2290, 8388608
        %v2292 = vsub.s32 0, %v2291
        %v2293 = vadd.s32 %v2288, 1
        %vm2294 = vcmp.gt.s32.totalorder %v2293, 0
        %v2295 = vsel %vm2294, %v2293, 0
        %v2296 = vshrl.u32 %v2295, 5
        %v2297 = vand.u32 %v2295, 31
        %v2298 = vsub.s32 32, %v2297
        %v2299 = vshrl.u32 683565275, %v2298
        %v2300 = vshll.u32 683565275, %v2297
        %v2301 = vshrl.u32 2475754826, %v2298
        %v2302 = vor.u32 %v2300, %v2301
        %v2303 = vshll.u32 2475754826, %v2297
        %v2304 = vshrl.u32 2131351028, %v2298
        %v2305 = vor.u32 %v2303, %v2304
        %v2306 = vshll.u32 2131351028, %v2297
        %v2307 = vshrl.u32 2102212464, %v2298
        %v2308 = vor.u32 %v2306, %v2307
        %v2309 = vshll.u32 2102212464, %v2297
        %v2310 = vshrl.u32 920167782, %v2298
        %v2311 = vor.u32 %v2309, %v2310
        %v2312 = vshll.u32 920167782, %v2297
        %v2313 = vshrl.u32 1326507024, %v2298
        %v2314 = vor.u32 %v2312, %v2313
        %vm2315 = vcmp.lt.s32.totalorder %v2296, 1
        %vm2316 = vcmp.lt.s32.totalorder %v2296, 2
        %vm2317 = vcmp.lt.s32.totalorder %v2296, 3
        %vm2318 = vcmp.lt.s32.totalorder %v2296, 4
        %v2319 = vsel %vm2315, %v2299, %v2302
        %v2320 = vsel %vm2318, %v2308, 2102212464
        %v2321 = vsel %vm2317, %v2305, %v2320
        %v2322 = vsel %vm2316, %v2319, %v2321
        %v2323 = vsel %vm2315, %v2302, %v2305
        %v2324 = vsel %vm2318, %v2311, 920167782
        %v2325 = vsel %vm2317, %v2308, %v2324
        %v2326 = vsel %vm2316, %v2323, %v2325
        %v2327 = vsel %vm2315, %v2305, %v2308
        %v2328 = vsel %vm2318, %v2314, 1326507024
        %v2329 = vsel %vm2317, %v2311, %v2328
        %v2330 = vsel %vm2316, %v2327, %v2329
        %v2331 = vshll.u32 %v2291, 8
        %v2332 = vmul.u32.u64.compose %v2331, %v2330
        %v2333 = vextract.low.u32 %v2332
        %v2334 = vextract.high.u32 %v2332
        %v2335 = vmul.u32.u64.compose %v2331, %v2326
        %v2336 = vextract.low.u32 %v2335
        %v2337 = vextract.high.u32 %v2335
        %v2338 = vmul.u32 %v2331, %v2322
        %v2339 = vadd.s32 %v2334, %v2336
        %vm2340 = vc.u32 %v2334, %v2336
        %v2341 = vadd.s32 %v2337, 1
        %v2342 = vsel %vm2340, %v2341, %v2337
        %v2343 = vadd.s32 %v2338, %v2342
        %v2344 = vadd.s32 %v2343, 536870912
        %v2345 = vshrl.u32 %v2344, 30
        %v2346 = vshll.u32 %v2345, 30
        %v2347 = vsub.s32 %v2343, %v2346
        %vm2348 = vcmp.lt.s32.totalorder %v2347, 0
        %v2349 = vsub.s32 0, %v2347
        %v2350 = vsel %vm2348, %v2349, %v2347
        %v2351 = vclz %v2350
        %v2352 = vsub.s32 %v2351, 2
        %vm2353 = vcmp.gt.s32.totalorder 0, %v2352
        %v2354 = vsel %vm2353, 0, %v2352
        %v2355 = vsub.s32 32, %v2354
        %v2356 = vshll.u32 %v2347, %v2354
        %v2357 = vshrl.u32 %v2339, %v2355
        %v2358 = vor.u32 %v2356, %v2357
        %v2359 = vsub.s32 4294967266, %v2354
        %v2360 = vadd.s32 %v2359, 127
        %v2361 = vshll.u32 %v2360, 23
        %v2362 = vor.u32 4788187, %v2361
        %v2363 = vand.u32 2147483647, %v2362
        %v2365 = vcvt.s32.f32 %v2358
        %v2366 = vmul.f32 %v2365, %v2363
        %v2367 = vxor.u32 %v2366, 2147483648
        %v2368 = vsel %vm2285, %v2367, %v2366
        %v2369 = vsub.s32 4, %v2345
        %v2370 = vsel %vm2285, %v2369, %v2345
        %v2371 = vsel %vm2284, %v297, %v2368
        %v2372 = vsel %vm2284, 0, %v2370
        %v2373 = vcosq.f32.pop %v2371
        %v2374 = vsinq.f32.pop %v2371
        %vm2375 = vweird.f32 %v297
        %v2376 = vand.u32 %v2372, 3
        %vm2377 = vcmp.lt.s32.totalorder %v2376, 2
        %vm2378 = vcmp.eq.s32.totalorder %v2376, 0
        %v2379 = vxor.u32 %v2374, 2147483648
        %v2380 = vsel %vm2378, %v2373, %v2379
        %vm2381 = vcmp.eq.s32.totalorder %v2376, 2
        %v2382 = vxor.u32 %v2373, 2147483648
        %v2383 = vsel %vm2381, %v2382, %v2374
        %v2384 = vsel %vm2377, %v2380, %v2383
        %v2385 = vsel %vm2375, nan, %v2384
        %v2386 = vand.u32 2147483647, %v298
        %vm2387 = vcmp.le.f32.partialorder %v2386, 0.7853982
        %vm2388 = vcmp.lt.s32.totalorder %v298, 0
        %v2389 = vand.u32 %v298, 2139095040
        %v2390 = vshrl.u32 %v2389, 23
        %v2391 = vsub.s32 %v2390, 127
        %v2392 = vand.u32 2147483647, %v298
        %v2393 = vand.u32 %v2392, 8388607
        %v2394 = vor.u32 %v2393, 8388608
        %v2395 = vsub.s32 0, %v2394
        %v2396 = vadd.s32 %v2391, 1
        %vm2397 = vcmp.gt.s32.totalorder %v2396, 0
        %v2398 = vsel %vm2397, %v2396, 0
        %v2399 = vshrl.u32 %v2398, 5
        %v2400 = vand.u32 %v2398, 31
        %v2401 = vsub.s32 32, %v2400
        %v2402 = vshrl.u32 683565275, %v2401
        %v2403 = vshll.u32 683565275, %v2400
        %v2404 = vshrl.u32 2475754826, %v2401
        %v2405 = vor.u32 %v2403, %v2404
        %v2406 = vshll.u32 2475754826, %v2400
        %v2407 = vshrl.u32 2131351028, %v2401
        %v2408 = vor.u32 %v2406, %v2407
        %v2409 = vshll.u32 2131351028, %v2400
        %v2410 = vshrl.u32 2102212464, %v2401
        %v2411 = vor.u32 %v2409, %v2410
        %v2412 = vshll.u32 2102212464, %v2400
        %v2413 = vshrl.u32 920167782, %v2401
        %v2414 = vor.u32 %v2412, %v2413
        %v2415 = vshll.u32 920167782, %v2400
        %v2416 = vshrl.u32 1326507024, %v2401
        %v2417 = vor.u32 %v2415, %v2416
        %vm2418 = vcmp.lt.s32.totalorder %v2399, 1
        %vm2419 = vcmp.lt.s32.totalorder %v2399, 2
        %vm2420 = vcmp.lt.s32.totalorder %v2399, 3
        %vm2421 = vcmp.lt.s32.totalorder %v2399, 4
        %v2422 = vsel %vm2418, %v2402, %v2405
        %v2423 = vsel %vm2421, %v2411, 2102212464
        %v2424 = vsel %vm2420, %v2408, %v2423
        %v2425 = vsel %vm2419, %v2422, %v2424
        %v2426 = vsel %vm2418, %v2405, %v2408
        %v2427 = vsel %vm2421, %v2414, 920167782
        %v2428 = vsel %vm2420, %v2411, %v2427
        %v2429 = vsel %vm2419, %v2426, %v2428
        %v2430 = vsel %vm2418, %v2408, %v2411
        %v2431 = vsel %vm2421, %v2417, 1326507024
        %v2432 = vsel %vm2420, %v2414, %v2431
        %v2433 = vsel %vm2419, %v2430, %v2432
        %v2434 = vshll.u32 %v2394, 8
        %v2435 = vmul.u32.u64.compose %v2434, %v2433
        %v2436 = vextract.low.u32 %v2435
        %v2437 = vextract.high.u32 %v2435
        %v2438 = vmul.u32.u64.compose %v2434, %v2429
        %v2439 = vextract.low.u32 %v2438
        %v2440 = vextract.high.u32 %v2438
        %v2441 = vmul.u32 %v2434, %v2425
        %v2442 = vadd.s32 %v2437, %v2439
        %vm2443 = vc.u32 %v2437, %v2439
        %v2444 = vadd.s32 %v2440, 1
        %v2445 = vsel %vm2443, %v2444, %v2440
        %v2446 = vadd.s32 %v2441, %v2445
        %v2447 = vadd.s32 %v2446, 536870912
        %v2448 = vshrl.u32 %v2447, 30
        %v2449 = vshll.u32 %v2448, 30
        %v2450 = vsub.s32 %v2446, %v2449
        %vm2451 = vcmp.lt.s32.totalorder %v2450, 0
        %v2452 = vsub.s32 0, %v2450
        %v2453 = vsel %vm2451, %v2452, %v2450
        %v2454 = vclz %v2453
        %v2455 = vsub.s32 %v2454, 2
        %vm2456 = vcmp.gt.s32.totalorder 0, %v2455
        %v2457 = vsel %vm2456, 0, %v2455
        %v2458 = vsub.s32 32, %v2457
        %v2459 = vshll.u32 %v2450, %v2457
        %v2460 = vshrl.u32 %v2442, %v2458
        %v2461 = vor.u32 %v2459, %v2460
        %v2462 = vsub.s32 4294967266, %v2457
        %v2463 = vadd.s32 %v2462, 127
        %v2464 = vshll.u32 %v2463, 23
        %v2465 = vor.u32 4788187, %v2464
        %v2466 = vand.u32 2147483647, %v2465
        %v2468 = vcvt.s32.f32 %v2461
        %v2469 = vmul.f32 %v2468, %v2466
        %v2470 = vxor.u32 %v2469, 2147483648
        %v2471 = vsel %vm2388, %v2470, %v2469
        %v2472 = vsub.s32 4, %v2448
        %v2473 = vsel %vm2388, %v2472, %v2448
        %v2474 = vsel %vm2387, %v298, %v2471
        %v2475 = vsel %vm2387, 0, %v2473
        %v2476 = vcosq.f32.pop %v2474
        %v2477 = vsinq.f32.pop %v2474
        %vm2478 = vweird.f32 %v298
        %v2479 = vand.u32 %v2475, 3
        %vm2480 = vcmp.lt.s32.totalorder %v2479, 2
        %vm2481 = vcmp.eq.s32.totalorder %v2479, 0
        %v2482 = vxor.u32 %v2477, 2147483648
        %v2483 = vsel %vm2481, %v2476, %v2482
        %vm2484 = vcmp.eq.s32.totalorder %v2479, 2
        %v2485 = vxor.u32 %v2476, 2147483648
        %v2486 = vsel %vm2484, %v2485, %v2477
        %v2487 = vsel %vm2480, %v2483, %v2486
        %v2488 = vsel %vm2478, nan, %v2487
        %v2489 = vand.u32 2147483647, %v299
        %vm2490 = vcmp.le.f32.partialorder %v2489, 0.7853982
        %vm2491 = vcmp.lt.s32.totalorder %v299, 0
        %v2492 = vand.u32 %v299, 2139095040
        %v2493 = vshrl.u32 %v2492, 23
        %v2494 = vsub.s32 %v2493, 127
        %v2495 = vand.u32 2147483647, %v299
        %v2496 = vand.u32 %v2495, 8388607
        %v2497 = vor.u32 %v2496, 8388608
        %v2498 = vsub.s32 0, %v2497
        %v2499 = vadd.s32 %v2494, 1
        %vm2500 = vcmp.gt.s32.totalorder %v2499, 0
        %v2501 = vsel %vm2500, %v2499, 0
        %v2502 = vshrl.u32 %v2501, 5
        %v2503 = vand.u32 %v2501, 31
        %v2504 = vsub.s32 32, %v2503
        %v2505 = vshrl.u32 683565275, %v2504
        %v2506 = vshll.u32 683565275, %v2503
        %v2507 = vshrl.u32 2475754826, %v2504
        %v2508 = vor.u32 %v2506, %v2507
        %v2509 = vshll.u32 2475754826, %v2503
        %v2510 = vshrl.u32 2131351028, %v2504
        %v2511 = vor.u32 %v2509, %v2510
        %v2512 = vshll.u32 2131351028, %v2503
        %v2513 = vshrl.u32 2102212464, %v2504
        %v2514 = vor.u32 %v2512, %v2513
        %v2515 = vshll.u32 2102212464, %v2503
        %v2516 = vshrl.u32 920167782, %v2504
        %v2517 = vor.u32 %v2515, %v2516
        %v2518 = vshll.u32 920167782, %v2503
        %v2519 = vshrl.u32 1326507024, %v2504
        %v2520 = vor.u32 %v2518, %v2519
        %vm2521 = vcmp.lt.s32.totalorder %v2502, 1
        %vm2522 = vcmp.lt.s32.totalorder %v2502, 2
        %vm2523 = vcmp.lt.s32.totalorder %v2502, 3
        %vm2524 = vcmp.lt.s32.totalorder %v2502, 4
        %v2525 = vsel %vm2521, %v2505, %v2508
        %v2526 = vsel %vm2524, %v2514, 2102212464
        %v2527 = vsel %vm2523, %v2511, %v2526
        %v2528 = vsel %vm2522, %v2525, %v2527
        %v2529 = vsel %vm2521, %v2508, %v2511
        %v2530 = vsel %vm2524, %v2517, 920167782
        %v2531 = vsel %vm2523, %v2514, %v2530
        %v2532 = vsel %vm2522, %v2529, %v2531
        %v2533 = vsel %vm2521, %v2511, %v2514
        %v2534 = vsel %vm2524, %v2520, 1326507024
        %v2535 = vsel %vm2523, %v2517, %v2534
        %v2536 = vsel %vm2522, %v2533, %v2535
        %v2537 = vshll.u32 %v2497, 8
        %v2538 = vmul.u32.u64.compose %v2537, %v2536
        %v2539 = vextract.low.u32 %v2538
        %v2540 = vextract.high.u32 %v2538
        %v2541 = vmul.u32.u64.compose %v2537, %v2532
        %v2542 = vextract.low.u32 %v2541
        %v2543 = vextract.high.u32 %v2541
        %v2544 = vmul.u32 %v2537, %v2528
        %v2545 = vadd.s32 %v2540, %v2542
        %vm2546 = vc.u32 %v2540, %v2542
        %v2547 = vadd.s32 %v2543, 1
        %v2548 = vsel %vm2546, %v2547, %v2543
        %v2549 = vadd.s32 %v2544, %v2548
        %v2550 = vadd.s32 %v2549, 536870912
        %v2551 = vshrl.u32 %v2550, 30
        %v2552 = vshll.u32 %v2551, 30
        %v2553 = vsub.s32 %v2549, %v2552
        %vm2554 = vcmp.lt.s32.totalorder %v2553, 0
        %v2555 = vsub.s32 0, %v2553
        %v2556 = vsel %vm2554, %v2555, %v2553
        %v2557 = vclz %v2556
        %v2558 = vsub.s32 %v2557, 2
        %vm2559 = vcmp.gt.s32.totalorder 0, %v2558
        %v2560 = vsel %vm2559, 0, %v2558
        %v2561 = vsub.s32 32, %v2560
        %v2562 = vshll.u32 %v2553, %v2560
        %v2563 = vshrl.u32 %v2545, %v2561
        %v2564 = vor.u32 %v2562, %v2563
        %v2565 = vsub.s32 4294967266, %v2560
        %v2566 = vadd.s32 %v2565, 127
        %v2567 = vshll.u32 %v2566, 23
        %v2568 = vor.u32 4788187, %v2567
        %v2569 = vand.u32 2147483647, %v2568
        %v2571 = vcvt.s32.f32 %v2564
        %v2572 = vmul.f32 %v2571, %v2569
        %v2573 = vxor.u32 %v2572, 2147483648
        %v2574 = vsel %vm2491, %v2573, %v2572
        %v2575 = vsub.s32 4, %v2551
        %v2576 = vsel %vm2491, %v2575, %v2551
        %v2577 = vsel %vm2490, %v299, %v2574
        %v2578 = vsel %vm2490, 0, %v2576
        %v2579 = vcosq.f32.pop %v2577
        %v2580 = vsinq.f32.pop %v2577
        %vm2581 = vweird.f32 %v299
        %v2582 = vand.u32 %v2578, 3
        %vm2583 = vcmp.lt.s32.totalorder %v2582, 2
        %vm2584 = vcmp.eq.s32.totalorder %v2582, 0
        %v2585 = vxor.u32 %v2580, 2147483648
        %v2586 = vsel %vm2584, %v2579, %v2585
        %vm2587 = vcmp.eq.s32.totalorder %v2582, 2
        %v2588 = vxor.u32 %v2579, 2147483648
        %v2589 = vsel %vm2587, %v2588, %v2580
        %v2590 = vsel %vm2583, %v2586, %v2589
        %v2591 = vsel %vm2581, nan, %v2590
        %v2592 = vand.u32 2147483647, %v300
        %vm2593 = vcmp.le.f32.partialorder %v2592, 0.7853982
        %vm2594 = vcmp.lt.s32.totalorder %v300, 0
        %v2595 = vand.u32 %v300, 2139095040
        %v2596 = vshrl.u32 %v2595, 23
        %v2597 = vsub.s32 %v2596, 127
        %v2598 = vand.u32 2147483647, %v300
        %v2599 = vand.u32 %v2598, 8388607
        %v2600 = vor.u32 %v2599, 8388608
        %v2601 = vsub.s32 0, %v2600
        %v2602 = vadd.s32 %v2597, 1
        %vm2603 = vcmp.gt.s32.totalorder %v2602, 0
        %v2604 = vsel %vm2603, %v2602, 0
        %v2605 = vshrl.u32 %v2604, 5
        %v2606 = vand.u32 %v2604, 31
        %v2607 = vsub.s32 32, %v2606
        %v2608 = vshrl.u32 683565275, %v2607
        %v2609 = vshll.u32 683565275, %v2606
        %v2610 = vshrl.u32 2475754826, %v2607
        %v2611 = vor.u32 %v2609, %v2610
        %v2612 = vshll.u32 2475754826, %v2606
        %v2613 = vshrl.u32 2131351028, %v2607
        %v2614 = vor.u32 %v2612, %v2613
        %v2615 = vshll.u32 2131351028, %v2606
        %v2616 = vshrl.u32 2102212464, %v2607
        %v2617 = vor.u32 %v2615, %v2616
        %v2618 = vshll.u32 2102212464, %v2606
        %v2619 = vshrl.u32 920167782, %v2607
        %v2620 = vor.u32 %v2618, %v2619
        %v2621 = vshll.u32 920167782, %v2606
        %v2622 = vshrl.u32 1326507024, %v2607
        %v2623 = vor.u32 %v2621, %v2622
        %vm2624 = vcmp.lt.s32.totalorder %v2605, 1
        %vm2625 = vcmp.lt.s32.totalorder %v2605, 2
        %vm2626 = vcmp.lt.s32.totalorder %v2605, 3
        %vm2627 = vcmp.lt.s32.totalorder %v2605, 4
        %v2628 = vsel %vm2624, %v2608, %v2611
        %v2629 = vsel %vm2627, %v2617, 2102212464
        %v2630 = vsel %vm2626, %v2614, %v2629
        %v2631 = vsel %vm2625, %v2628, %v2630
        %v2632 = vsel %vm2624, %v2611, %v2614
        %v2633 = vsel %vm2627, %v2620, 920167782
        %v2634 = vsel %vm2626, %v2617, %v2633
        %v2635 = vsel %vm2625, %v2632, %v2634
        %v2636 = vsel %vm2624, %v2614, %v2617
        %v2637 = vsel %vm2627, %v2623, 1326507024
        %v2638 = vsel %vm2626, %v2620, %v2637
        %v2639 = vsel %vm2625, %v2636, %v2638
        %v2640 = vshll.u32 %v2600, 8
        %v2641 = vmul.u32.u64.compose %v2640, %v2639
        %v2642 = vextract.low.u32 %v2641
        %v2643 = vextract.high.u32 %v2641
        %v2644 = vmul.u32.u64.compose %v2640, %v2635
        %v2645 = vextract.low.u32 %v2644
        %v2646 = vextract.high.u32 %v2644
        %v2647 = vmul.u32 %v2640, %v2631
        %v2648 = vadd.s32 %v2643, %v2645
        %vm2649 = vc.u32 %v2643, %v2645
        %v2650 = vadd.s32 %v2646, 1
        %v2651 = vsel %vm2649, %v2650, %v2646
        %v2652 = vadd.s32 %v2647, %v2651
        %v2653 = vadd.s32 %v2652, 536870912
        %v2654 = vshrl.u32 %v2653, 30
        %v2655 = vshll.u32 %v2654, 30
        %v2656 = vsub.s32 %v2652, %v2655
        %vm2657 = vcmp.lt.s32.totalorder %v2656, 0
        %v2658 = vsub.s32 0, %v2656
        %v2659 = vsel %vm2657, %v2658, %v2656
        %v2660 = vclz %v2659
        %v2661 = vsub.s32 %v2660, 2
        %vm2662 = vcmp.gt.s32.totalorder 0, %v2661
        %v2663 = vsel %vm2662, 0, %v2661
        %v2664 = vsub.s32 32, %v2663
        %v2665 = vshll.u32 %v2656, %v2663
        %v2666 = vshrl.u32 %v2648, %v2664
        %v2667 = vor.u32 %v2665, %v2666
        %v2668 = vsub.s32 4294967266, %v2663
        %v2669 = vadd.s32 %v2668, 127
        %v2670 = vshll.u32 %v2669, 23
        %v2671 = vor.u32 4788187, %v2670
        %v2672 = vand.u32 2147483647, %v2671
        %v2674 = vcvt.s32.f32 %v2667
        %v2675 = vmul.f32 %v2674, %v2672
        %v2676 = vxor.u32 %v2675, 2147483648
        %v2677 = vsel %vm2594, %v2676, %v2675
        %v2678 = vsub.s32 4, %v2654
        %v2679 = vsel %vm2594, %v2678, %v2654
        %v2680 = vsel %vm2593, %v300, %v2677
        %v2681 = vsel %vm2593, 0, %v2679
        %v2682 = vcosq.f32.pop %v2680
        %v2683 = vsinq.f32.pop %v2680
        %vm2684 = vweird.f32 %v300
        %v2685 = vand.u32 %v2681, 3
        %vm2686 = vcmp.lt.s32.totalorder %v2685, 2
        %vm2687 = vcmp.eq.s32.totalorder %v2685, 0
        %v2688 = vxor.u32 %v2683, 2147483648
        %v2689 = vsel %vm2687, %v2682, %v2688
        %vm2690 = vcmp.eq.s32.totalorder %v2685, 2
        %v2691 = vxor.u32 %v2682, 2147483648
        %v2692 = vsel %vm2690, %v2691, %v2683
        %v2693 = vsel %vm2686, %v2689, %v2692
        %v2694 = vsel %vm2684, nan, %v2693
        %v2695 = vand.u32 2147483647, %v301
        %vm2696 = vcmp.le.f32.partialorder %v2695, 0.7853982
        %vm2697 = vcmp.lt.s32.totalorder %v301, 0
        %v2698 = vand.u32 %v301, 2139095040
        %v2699 = vshrl.u32 %v2698, 23
        %v2700 = vsub.s32 %v2699, 127
        %v2701 = vand.u32 2147483647, %v301
        %v2702 = vand.u32 %v2701, 8388607
        %v2703 = vor.u32 %v2702, 8388608
        %v2704 = vsub.s32 0, %v2703
        %v2705 = vadd.s32 %v2700, 1
        %vm2706 = vcmp.gt.s32.totalorder %v2705, 0
        %v2707 = vsel %vm2706, %v2705, 0
        %v2708 = vshrl.u32 %v2707, 5
        %v2709 = vand.u32 %v2707, 31
        %v2710 = vsub.s32 32, %v2709
        %v2711 = vshrl.u32 683565275, %v2710
        %v2712 = vshll.u32 683565275, %v2709
        %v2713 = vshrl.u32 2475754826, %v2710
        %v2714 = vor.u32 %v2712, %v2713
        %v2715 = vshll.u32 2475754826, %v2709
        %v2716 = vshrl.u32 2131351028, %v2710
        %v2717 = vor.u32 %v2715, %v2716
        %v2718 = vshll.u32 2131351028, %v2709
        %v2719 = vshrl.u32 2102212464, %v2710
        %v2720 = vor.u32 %v2718, %v2719
        %v2721 = vshll.u32 2102212464, %v2709
        %v2722 = vshrl.u32 920167782, %v2710
        %v2723 = vor.u32 %v2721, %v2722
        %v2724 = vshll.u32 920167782, %v2709
        %v2725 = vshrl.u32 1326507024, %v2710
        %v2726 = vor.u32 %v2724, %v2725
        %vm2727 = vcmp.lt.s32.totalorder %v2708, 1
        %vm2728 = vcmp.lt.s32.totalorder %v2708, 2
        %vm2729 = vcmp.lt.s32.totalorder %v2708, 3
        %vm2730 = vcmp.lt.s32.totalorder %v2708, 4
        %v2731 = vsel %vm2727, %v2711, %v2714
        %v2732 = vsel %vm2730, %v2720, 2102212464
        %v2733 = vsel %vm2729, %v2717, %v2732
        %v2734 = vsel %vm2728, %v2731, %v2733
        %v2735 = vsel %vm2727, %v2714, %v2717
        %v2736 = vsel %vm2730, %v2723, 920167782
        %v2737 = vsel %vm2729, %v2720, %v2736
        %v2738 = vsel %vm2728, %v2735, %v2737
        %v2739 = vsel %vm2727, %v2717, %v2720
        %v2740 = vsel %vm2730, %v2726, 1326507024
        %v2741 = vsel %vm2729, %v2723, %v2740
        %v2742 = vsel %vm2728, %v2739, %v2741
        %v2743 = vshll.u32 %v2703, 8
        %v2744 = vmul.u32.u64.compose %v2743, %v2742
        %v2745 = vextract.low.u32 %v2744
        %v2746 = vextract.high.u32 %v2744
        %v2747 = vmul.u32.u64.compose %v2743, %v2738
        %v2748 = vextract.low.u32 %v2747
        %v2749 = vextract.high.u32 %v2747
        %v2750 = vmul.u32 %v2743, %v2734
        %v2751 = vadd.s32 %v2746, %v2748
        %vm2752 = vc.u32 %v2746, %v2748
        %v2753 = vadd.s32 %v2749, 1
        %v2754 = vsel %vm2752, %v2753, %v2749
        %v2755 = vadd.s32 %v2750, %v2754
        %v2756 = vadd.s32 %v2755, 536870912
        %v2757 = vshrl.u32 %v2756, 30
        %v2758 = vshll.u32 %v2757, 30
        %v2759 = vsub.s32 %v2755, %v2758
        %vm2760 = vcmp.lt.s32.totalorder %v2759, 0
        %v2761 = vsub.s32 0, %v2759
        %v2762 = vsel %vm2760, %v2761, %v2759
        %v2763 = vclz %v2762
        %v2764 = vsub.s32 %v2763, 2
        %vm2765 = vcmp.gt.s32.totalorder 0, %v2764
        %v2766 = vsel %vm2765, 0, %v2764
        %v2767 = vsub.s32 32, %v2766
        %v2768 = vshll.u32 %v2759, %v2766
        %v2769 = vshrl.u32 %v2751, %v2767
        %v2770 = vor.u32 %v2768, %v2769
        %v2771 = vsub.s32 4294967266, %v2766
        %v2772 = vadd.s32 %v2771, 127
        %v2773 = vshll.u32 %v2772, 23
        %v2774 = vor.u32 4788187, %v2773
        %v2775 = vand.u32 2147483647, %v2774
        %v2777 = vcvt.s32.f32 %v2770
        %v2778 = vmul.f32 %v2777, %v2775
        %v2779 = vxor.u32 %v2778, 2147483648
        %v2780 = vsel %vm2697, %v2779, %v2778
        %v2781 = vsub.s32 4, %v2757
        %v2782 = vsel %vm2697, %v2781, %v2757
        %v2783 = vsel %vm2696, %v301, %v2780
        %v2784 = vsel %vm2696, 0, %v2782
        %v2785 = vcosq.f32.pop %v2783
        %v2786 = vsinq.f32.pop %v2783
        %vm2787 = vweird.f32 %v301
        %v2788 = vand.u32 %v2784, 3
        %vm2789 = vcmp.lt.s32.totalorder %v2788, 2
        %vm2790 = vcmp.eq.s32.totalorder %v2788, 0
        %v2791 = vxor.u32 %v2786, 2147483648
        %v2792 = vsel %vm2790, %v2785, %v2791
        %vm2793 = vcmp.eq.s32.totalorder %v2788, 2
        %v2794 = vxor.u32 %v2785, 2147483648
        %v2795 = vsel %vm2793, %v2794, %v2786
        %v2796 = vsel %vm2789, %v2792, %v2795
        %v2797 = vsel %vm2787, nan, %v2796
        %v2798 = vand.u32 2147483647, %v302
        %vm2799 = vcmp.le.f32.partialorder %v2798, 0.7853982
        %vm2800 = vcmp.lt.s32.totalorder %v302, 0
        %v2801 = vand.u32 %v302, 2139095040
        %v2802 = vshrl.u32 %v2801, 23
        %v2803 = vsub.s32 %v2802, 127
        %v2804 = vand.u32 2147483647, %v302
        %v2805 = vand.u32 %v2804, 8388607
        %v2806 = vor.u32 %v2805, 8388608
        %v2807 = vsub.s32 0, %v2806
        %v2808 = vadd.s32 %v2803, 1
        %vm2809 = vcmp.gt.s32.totalorder %v2808, 0
        %v2810 = vsel %vm2809, %v2808, 0
        %v2811 = vshrl.u32 %v2810, 5
        %v2812 = vand.u32 %v2810, 31
        %v2813 = vsub.s32 32, %v2812
        %v2814 = vshrl.u32 683565275, %v2813
        %v2815 = vshll.u32 683565275, %v2812
        %v2816 = vshrl.u32 2475754826, %v2813
        %v2817 = vor.u32 %v2815, %v2816
        %v2818 = vshll.u32 2475754826, %v2812
        %v2819 = vshrl.u32 2131351028, %v2813
        %v2820 = vor.u32 %v2818, %v2819
        %v2821 = vshll.u32 2131351028, %v2812
        %v2822 = vshrl.u32 2102212464, %v2813
        %v2823 = vor.u32 %v2821, %v2822
        %v2824 = vshll.u32 2102212464, %v2812
        %v2825 = vshrl.u32 920167782, %v2813
        %v2826 = vor.u32 %v2824, %v2825
        %v2827 = vshll.u32 920167782, %v2812
        %v2828 = vshrl.u32 1326507024, %v2813
        %v2829 = vor.u32 %v2827, %v2828
        %vm2830 = vcmp.lt.s32.totalorder %v2811, 1
        %vm2831 = vcmp.lt.s32.totalorder %v2811, 2
        %vm2832 = vcmp.lt.s32.totalorder %v2811, 3
        %vm2833 = vcmp.lt.s32.totalorder %v2811, 4
        %v2834 = vsel %vm2830, %v2814, %v2817
        %v2835 = vsel %vm2833, %v2823, 2102212464
        %v2836 = vsel %vm2832, %v2820, %v2835
        %v2837 = vsel %vm2831, %v2834, %v2836
        %v2838 = vsel %vm2830, %v2817, %v2820
        %v2839 = vsel %vm2833, %v2826, 920167782
        %v2840 = vsel %vm2832, %v2823, %v2839
        %v2841 = vsel %vm2831, %v2838, %v2840
        %v2842 = vsel %vm2830, %v2820, %v2823
        %v2843 = vsel %vm2833, %v2829, 1326507024
        %v2844 = vsel %vm2832, %v2826, %v2843
        %v2845 = vsel %vm2831, %v2842, %v2844
        %v2846 = vshll.u32 %v2806, 8
        %v2847 = vmul.u32.u64.compose %v2846, %v2845
        %v2848 = vextract.low.u32 %v2847
        %v2849 = vextract.high.u32 %v2847
        %v2850 = vmul.u32.u64.compose %v2846, %v2841
        %v2851 = vextract.low.u32 %v2850
        %v2852 = vextract.high.u32 %v2850
        %v2853 = vmul.u32 %v2846, %v2837
        %v2854 = vadd.s32 %v2849, %v2851
        %vm2855 = vc.u32 %v2849, %v2851
        %v2856 = vadd.s32 %v2852, 1
        %v2857 = vsel %vm2855, %v2856, %v2852
        %v2858 = vadd.s32 %v2853, %v2857
        %v2859 = vadd.s32 %v2858, 536870912
        %v2860 = vshrl.u32 %v2859, 30
        %v2861 = vshll.u32 %v2860, 30
        %v2862 = vsub.s32 %v2858, %v2861
        %vm2863 = vcmp.lt.s32.totalorder %v2862, 0
        %v2864 = vsub.s32 0, %v2862
        %v2865 = vsel %vm2863, %v2864, %v2862
        %v2866 = vclz %v2865
        %v2867 = vsub.s32 %v2866, 2
        %vm2868 = vcmp.gt.s32.totalorder 0, %v2867
        %v2869 = vsel %vm2868, 0, %v2867
        %v2870 = vsub.s32 32, %v2869
        %v2871 = vshll.u32 %v2862, %v2869
        %v2872 = vshrl.u32 %v2854, %v2870
        %v2873 = vor.u32 %v2871, %v2872
        %v2874 = vsub.s32 4294967266, %v2869
        %v2875 = vadd.s32 %v2874, 127
        %v2876 = vshll.u32 %v2875, 23
        %v2877 = vor.u32 4788187, %v2876
        %v2878 = vand.u32 2147483647, %v2877
        %v2880 = vcvt.s32.f32 %v2873
        %v2881 = vmul.f32 %v2880, %v2878
        %v2882 = vxor.u32 %v2881, 2147483648
        %v2883 = vsel %vm2800, %v2882, %v2881
        %v2884 = vsub.s32 4, %v2860
        %v2885 = vsel %vm2800, %v2884, %v2860
        %v2886 = vsel %vm2799, %v302, %v2883
        %v2887 = vsel %vm2799, 0, %v2885
        %v2888 = vcosq.f32.pop %v2886
        %v2889 = vsinq.f32.pop %v2886
        %vm2890 = vweird.f32 %v302
        %v2891 = vand.u32 %v2887, 3
        %vm2892 = vcmp.lt.s32.totalorder %v2891, 2
        %vm2893 = vcmp.eq.s32.totalorder %v2891, 0
        %v2894 = vxor.u32 %v2889, 2147483648
        %v2895 = vsel %vm2893, %v2888, %v2894
        %vm2896 = vcmp.eq.s32.totalorder %v2891, 2
        %v2897 = vxor.u32 %v2888, 2147483648
        %v2898 = vsel %vm2896, %v2897, %v2889
        %v2899 = vsel %vm2892, %v2895, %v2898
        %v2900 = vsel %vm2890, nan, %v2899
        %v2901 = vand.u32 2147483647, %v303
        %vm2902 = vcmp.le.f32.partialorder %v2901, 0.7853982
        %vm2903 = vcmp.lt.s32.totalorder %v303, 0
        %v2904 = vand.u32 %v303, 2139095040
        %v2905 = vshrl.u32 %v2904, 23
        %v2906 = vsub.s32 %v2905, 127
        %v2907 = vand.u32 2147483647, %v303
        %v2908 = vand.u32 %v2907, 8388607
        %v2909 = vor.u32 %v2908, 8388608
        %v2910 = vsub.s32 0, %v2909
        %v2911 = vadd.s32 %v2906, 1
        %vm2912 = vcmp.gt.s32.totalorder %v2911, 0
        %v2913 = vsel %vm2912, %v2911, 0
        %v2914 = vshrl.u32 %v2913, 5
        %v2915 = vand.u32 %v2913, 31
        %v2916 = vsub.s32 32, %v2915
        %v2917 = vshrl.u32 683565275, %v2916
        %v2918 = vshll.u32 683565275, %v2915
        %v2919 = vshrl.u32 2475754826, %v2916
        %v2920 = vor.u32 %v2918, %v2919
        %v2921 = vshll.u32 2475754826, %v2915
        %v2922 = vshrl.u32 2131351028, %v2916
        %v2923 = vor.u32 %v2921, %v2922
        %v2924 = vshll.u32 2131351028, %v2915
        %v2925 = vshrl.u32 2102212464, %v2916
        %v2926 = vor.u32 %v2924, %v2925
        %v2927 = vshll.u32 2102212464, %v2915
        %v2928 = vshrl.u32 920167782, %v2916
        %v2929 = vor.u32 %v2927, %v2928
        %v2930 = vshll.u32 920167782, %v2915
        %v2931 = vshrl.u32 1326507024, %v2916
        %v2932 = vor.u32 %v2930, %v2931
        %vm2933 = vcmp.lt.s32.totalorder %v2914, 1
        %vm2934 = vcmp.lt.s32.totalorder %v2914, 2
        %vm2935 = vcmp.lt.s32.totalorder %v2914, 3
        %vm2936 = vcmp.lt.s32.totalorder %v2914, 4
        %v2937 = vsel %vm2933, %v2917, %v2920
        %v2938 = vsel %vm2936, %v2926, 2102212464
        %v2939 = vsel %vm2935, %v2923, %v2938
        %v2940 = vsel %vm2934, %v2937, %v2939
        %v2941 = vsel %vm2933, %v2920, %v2923
        %v2942 = vsel %vm2936, %v2929, 920167782
        %v2943 = vsel %vm2935, %v2926, %v2942
        %v2944 = vsel %vm2934, %v2941, %v2943
        %v2945 = vsel %vm2933, %v2923, %v2926
        %v2946 = vsel %vm2936, %v2932, 1326507024
        %v2947 = vsel %vm2935, %v2929, %v2946
        %v2948 = vsel %vm2934, %v2945, %v2947
        %v2949 = vshll.u32 %v2909, 8
        %v2950 = vmul.u32.u64.compose %v2949, %v2948
        %v2951 = vextract.low.u32 %v2950
        %v2952 = vextract.high.u32 %v2950
        %v2953 = vmul.u32.u64.compose %v2949, %v2944
        %v2954 = vextract.low.u32 %v2953
        %v2955 = vextract.high.u32 %v2953
        %v2956 = vmul.u32 %v2949, %v2940
        %v2957 = vadd.s32 %v2952, %v2954
        %vm2958 = vc.u32 %v2952, %v2954
        %v2959 = vadd.s32 %v2955, 1
        %v2960 = vsel %vm2958, %v2959, %v2955
        %v2961 = vadd.s32 %v2956, %v2960
        %v2962 = vadd.s32 %v2961, 536870912
        %v2963 = vshrl.u32 %v2962, 30
        %v2964 = vshll.u32 %v2963, 30
        %v2965 = vsub.s32 %v2961, %v2964
        %vm2966 = vcmp.lt.s32.totalorder %v2965, 0
        %v2967 = vsub.s32 0, %v2965
        %v2968 = vsel %vm2966, %v2967, %v2965
        %v2969 = vclz %v2968
        %v2970 = vsub.s32 %v2969, 2
        %vm2971 = vcmp.gt.s32.totalorder 0, %v2970
        %v2972 = vsel %vm2971, 0, %v2970
        %v2973 = vsub.s32 32, %v2972
        %v2974 = vshll.u32 %v2965, %v2972
        %v2975 = vshrl.u32 %v2957, %v2973
        %v2976 = vor.u32 %v2974, %v2975
        %v2977 = vsub.s32 4294967266, %v2972
        %v2978 = vadd.s32 %v2977, 127
        %v2979 = vshll.u32 %v2978, 23
        %v2980 = vor.u32 4788187, %v2979
        %v2981 = vand.u32 2147483647, %v2980
        %v2983 = vcvt.s32.f32 %v2976
        %v2984 = vmul.f32 %v2983, %v2981
        %v2985 = vxor.u32 %v2984, 2147483648
        %v2986 = vsel %vm2903, %v2985, %v2984
        %v2987 = vsub.s32 4, %v2963
        %v2988 = vsel %vm2903, %v2987, %v2963
        %v2989 = vsel %vm2902, %v303, %v2986
        %v2990 = vsel %vm2902, 0, %v2988
        %v2991 = vcosq.f32.pop %v2989
        %v2992 = vsinq.f32.pop %v2989
        %vm2993 = vweird.f32 %v303
        %v2994 = vand.u32 %v2990, 3
        %vm2995 = vcmp.lt.s32.totalorder %v2994, 2
        %vm2996 = vcmp.eq.s32.totalorder %v2994, 0
        %v2997 = vxor.u32 %v2992, 2147483648
        %v2998 = vsel %vm2996, %v2991, %v2997
        %vm2999 = vcmp.eq.s32.totalorder %v2994, 2
        %v3000 = vxor.u32 %v2991, 2147483648
        %v3001 = vsel %vm2999, %v3000, %v2992
        %v3002 = vsel %vm2995, %v2998, %v3001
        %v3003 = vsel %vm2993, nan, %v3002
        %v3004 = vand.u32 2147483647, %v304
        %vm3005 = vcmp.le.f32.partialorder %v3004, 0.7853982
        %vm3006 = vcmp.lt.s32.totalorder %v304, 0
        %v3007 = vand.u32 %v304, 2139095040
        %v3008 = vshrl.u32 %v3007, 23
        %v3009 = vsub.s32 %v3008, 127
        %v3010 = vand.u32 2147483647, %v304
        %v3011 = vand.u32 %v3010, 8388607
        %v3012 = vor.u32 %v3011, 8388608
        %v3013 = vsub.s32 0, %v3012
        %v3014 = vadd.s32 %v3009, 1
        %vm3015 = vcmp.gt.s32.totalorder %v3014, 0
        %v3016 = vsel %vm3015, %v3014, 0
        %v3017 = vshrl.u32 %v3016, 5
        %v3018 = vand.u32 %v3016, 31
        %v3019 = vsub.s32 32, %v3018
        %v3020 = vshrl.u32 683565275, %v3019
        %v3021 = vshll.u32 683565275, %v3018
        %v3022 = vshrl.u32 2475754826, %v3019
        %v3023 = vor.u32 %v3021, %v3022
        %v3024 = vshll.u32 2475754826, %v3018
        %v3025 = vshrl.u32 2131351028, %v3019
        %v3026 = vor.u32 %v3024, %v3025
        %v3027 = vshll.u32 2131351028, %v3018
        %v3028 = vshrl.u32 2102212464, %v3019
        %v3029 = vor.u32 %v3027, %v3028
        %v3030 = vshll.u32 2102212464, %v3018
        %v3031 = vshrl.u32 920167782, %v3019
        %v3032 = vor.u32 %v3030, %v3031
        %v3033 = vshll.u32 920167782, %v3018
        %v3034 = vshrl.u32 1326507024, %v3019
        %v3035 = vor.u32 %v3033, %v3034
        %vm3036 = vcmp.lt.s32.totalorder %v3017, 1
        %vm3037 = vcmp.lt.s32.totalorder %v3017, 2
        %vm3038 = vcmp.lt.s32.totalorder %v3017, 3
        %vm3039 = vcmp.lt.s32.totalorder %v3017, 4
        %v3040 = vsel %vm3036, %v3020, %v3023
        %v3041 = vsel %vm3039, %v3029, 2102212464
        %v3042 = vsel %vm3038, %v3026, %v3041
        %v3043 = vsel %vm3037, %v3040, %v3042
        %v3044 = vsel %vm3036, %v3023, %v3026
        %v3045 = vsel %vm3039, %v3032, 920167782
        %v3046 = vsel %vm3038, %v3029, %v3045
        %v3047 = vsel %vm3037, %v3044, %v3046
        %v3048 = vsel %vm3036, %v3026, %v3029
        %v3049 = vsel %vm3039, %v3035, 1326507024
        %v3050 = vsel %vm3038, %v3032, %v3049
        %v3051 = vsel %vm3037, %v3048, %v3050
        %v3052 = vshll.u32 %v3012, 8
        %v3053 = vmul.u32.u64.compose %v3052, %v3051
        %v3054 = vextract.low.u32 %v3053
        %v3055 = vextract.high.u32 %v3053
        %v3056 = vmul.u32.u64.compose %v3052, %v3047
        %v3057 = vextract.low.u32 %v3056
        %v3058 = vextract.high.u32 %v3056
        %v3059 = vmul.u32 %v3052, %v3043
        %v3060 = vadd.s32 %v3055, %v3057
        %vm3061 = vc.u32 %v3055, %v3057
        %v3062 = vadd.s32 %v3058, 1
        %v3063 = vsel %vm3061, %v3062, %v3058
        %v3064 = vadd.s32 %v3059, %v3063
        %v3065 = vadd.s32 %v3064, 536870912
        %v3066 = vshrl.u32 %v3065, 30
        %v3067 = vshll.u32 %v3066, 30
        %v3068 = vsub.s32 %v3064, %v3067
        %vm3069 = vcmp.lt.s32.totalorder %v3068, 0
        %v3070 = vsub.s32 0, %v3068
        %v3071 = vsel %vm3069, %v3070, %v3068
        %v3072 = vclz %v3071
        %v3073 = vsub.s32 %v3072, 2
        %vm3074 = vcmp.gt.s32.totalorder 0, %v3073
        %v3075 = vsel %vm3074, 0, %v3073
        %v3076 = vsub.s32 32, %v3075
        %v3077 = vshll.u32 %v3068, %v3075
        %v3078 = vshrl.u32 %v3060, %v3076
        %v3079 = vor.u32 %v3077, %v3078
        %v3080 = vsub.s32 4294967266, %v3075
        %v3081 = vadd.s32 %v3080, 127
        %v3082 = vshll.u32 %v3081, 23
        %v3083 = vor.u32 4788187, %v3082
        %v3084 = vand.u32 2147483647, %v3083
        %v3086 = vcvt.s32.f32 %v3079
        %v3087 = vmul.f32 %v3086, %v3084
        %v3088 = vxor.u32 %v3087, 2147483648
        %v3089 = vsel %vm3006, %v3088, %v3087
        %v3090 = vsub.s32 4, %v3066
        %v3091 = vsel %vm3006, %v3090, %v3066
        %v3092 = vsel %vm3005, %v304, %v3089
        %v3093 = vsel %vm3005, 0, %v3091
        %v3094 = vcosq.f32.pop %v3092
        %v3095 = vsinq.f32.pop %v3092
        %vm3096 = vweird.f32 %v304
        %v3097 = vand.u32 %v3093, 3
        %vm3098 = vcmp.lt.s32.totalorder %v3097, 2
        %vm3099 = vcmp.eq.s32.totalorder %v3097, 0
        %v3100 = vxor.u32 %v3095, 2147483648
        %v3101 = vsel %vm3099, %v3094, %v3100
        %vm3102 = vcmp.eq.s32.totalorder %v3097, 2
        %v3103 = vxor.u32 %v3094, 2147483648
        %v3104 = vsel %vm3102, %v3103, %v3095
        %v3105 = vsel %vm3098, %v3101, %v3104
        %v3106 = vsel %vm3096, nan, %v3105
        %v3107 = vand.u32 2147483647, %v305
        %vm3108 = vcmp.le.f32.partialorder %v3107, 0.7853982
        %vm3109 = vcmp.lt.s32.totalorder %v305, 0
        %v3110 = vand.u32 %v305, 2139095040
        %v3111 = vshrl.u32 %v3110, 23
        %v3112 = vsub.s32 %v3111, 127
        %v3113 = vand.u32 2147483647, %v305
        %v3114 = vand.u32 %v3113, 8388607
        %v3115 = vor.u32 %v3114, 8388608
        %v3116 = vsub.s32 0, %v3115
        %v3117 = vadd.s32 %v3112, 1
        %vm3118 = vcmp.gt.s32.totalorder %v3117, 0
        %v3119 = vsel %vm3118, %v3117, 0
        %v3120 = vshrl.u32 %v3119, 5
        %v3121 = vand.u32 %v3119, 31
        %v3122 = vsub.s32 32, %v3121
        %v3123 = vshrl.u32 683565275, %v3122
        %v3124 = vshll.u32 683565275, %v3121
        %v3125 = vshrl.u32 2475754826, %v3122
        %v3126 = vor.u32 %v3124, %v3125
        %v3127 = vshll.u32 2475754826, %v3121
        %v3128 = vshrl.u32 2131351028, %v3122
        %v3129 = vor.u32 %v3127, %v3128
        %v3130 = vshll.u32 2131351028, %v3121
        %v3131 = vshrl.u32 2102212464, %v3122
        %v3132 = vor.u32 %v3130, %v3131
        %v3133 = vshll.u32 2102212464, %v3121
        %v3134 = vshrl.u32 920167782, %v3122
        %v3135 = vor.u32 %v3133, %v3134
        %v3136 = vshll.u32 920167782, %v3121
        %v3137 = vshrl.u32 1326507024, %v3122
        %v3138 = vor.u32 %v3136, %v3137
        %vm3139 = vcmp.lt.s32.totalorder %v3120, 1
        %vm3140 = vcmp.lt.s32.totalorder %v3120, 2
        %vm3141 = vcmp.lt.s32.totalorder %v3120, 3
        %vm3142 = vcmp.lt.s32.totalorder %v3120, 4
        %v3143 = vsel %vm3139, %v3123, %v3126
        %v3144 = vsel %vm3142, %v3132, 2102212464
        %v3145 = vsel %vm3141, %v3129, %v3144
        %v3146 = vsel %vm3140, %v3143, %v3145
        %v3147 = vsel %vm3139, %v3126, %v3129
        %v3148 = vsel %vm3142, %v3135, 920167782
        %v3149 = vsel %vm3141, %v3132, %v3148
        %v3150 = vsel %vm3140, %v3147, %v3149
        %v3151 = vsel %vm3139, %v3129, %v3132
        %v3152 = vsel %vm3142, %v3138, 1326507024
        %v3153 = vsel %vm3141, %v3135, %v3152
        %v3154 = vsel %vm3140, %v3151, %v3153
        %v3155 = vshll.u32 %v3115, 8
        %v3156 = vmul.u32.u64.compose %v3155, %v3154
        %v3157 = vextract.low.u32 %v3156
        %v3158 = vextract.high.u32 %v3156
        %v3159 = vmul.u32.u64.compose %v3155, %v3150
        %v3160 = vextract.low.u32 %v3159
        %v3161 = vextract.high.u32 %v3159
        %v3162 = vmul.u32 %v3155, %v3146
        %v3163 = vadd.s32 %v3158, %v3160
        %vm3164 = vc.u32 %v3158, %v3160
        %v3165 = vadd.s32 %v3161, 1
        %v3166 = vsel %vm3164, %v3165, %v3161
        %v3167 = vadd.s32 %v3162, %v3166
        %v3168 = vadd.s32 %v3167, 536870912
        %v3169 = vshrl.u32 %v3168, 30
        %v3170 = vshll.u32 %v3169, 30
        %v3171 = vsub.s32 %v3167, %v3170
        %vm3172 = vcmp.lt.s32.totalorder %v3171, 0
        %v3173 = vsub.s32 0, %v3171
        %v3174 = vsel %vm3172, %v3173, %v3171
        %v3175 = vclz %v3174
        %v3176 = vsub.s32 %v3175, 2
        %vm3177 = vcmp.gt.s32.totalorder 0, %v3176
        %v3178 = vsel %vm3177, 0, %v3176
        %v3179 = vsub.s32 32, %v3178
        %v3180 = vshll.u32 %v3171, %v3178
        %v3181 = vshrl.u32 %v3163, %v3179
        %v3182 = vor.u32 %v3180, %v3181
        %v3183 = vsub.s32 4294967266, %v3178
        %v3184 = vadd.s32 %v3183, 127
        %v3185 = vshll.u32 %v3184, 23
        %v3186 = vor.u32 4788187, %v3185
        %v3187 = vand.u32 2147483647, %v3186
        %v3189 = vcvt.s32.f32 %v3182
        %v3190 = vmul.f32 %v3189, %v3187
        %v3191 = vxor.u32 %v3190, 2147483648
        %v3192 = vsel %vm3109, %v3191, %v3190
        %v3193 = vsub.s32 4, %v3169
        %v3194 = vsel %vm3109, %v3193, %v3169
        %v3195 = vsel %vm3108, %v305, %v3192
        %v3196 = vsel %vm3108, 0, %v3194
        %v3197 = vcosq.f32.pop %v3195
        %v3198 = vsinq.f32.pop %v3195
        %vm3199 = vweird.f32 %v305
        %v3200 = vand.u32 %v3196, 3
        %vm3201 = vcmp.lt.s32.totalorder %v3200, 2
        %vm3202 = vcmp.eq.s32.totalorder %v3200, 0
        %v3203 = vxor.u32 %v3198, 2147483648
        %v3204 = vsel %vm3202, %v3197, %v3203
        %vm3205 = vcmp.eq.s32.totalorder %v3200, 2
        %v3206 = vxor.u32 %v3197, 2147483648
        %v3207 = vsel %vm3205, %v3206, %v3198
        %v3208 = vsel %vm3201, %v3204, %v3207
        %v3209 = vsel %vm3199, nan, %v3208
        %v3210 = vand.u32 2147483647, %v306
        %vm3211 = vcmp.le.f32.partialorder %v3210, 0.7853982
        %vm3212 = vcmp.lt.s32.totalorder %v306, 0
        %v3213 = vand.u32 %v306, 2139095040
        %v3214 = vshrl.u32 %v3213, 23
        %v3215 = vsub.s32 %v3214, 127
        %v3216 = vand.u32 2147483647, %v306
        %v3217 = vand.u32 %v3216, 8388607
        %v3218 = vor.u32 %v3217, 8388608
        %v3219 = vsub.s32 0, %v3218
        %v3220 = vadd.s32 %v3215, 1
        %vm3221 = vcmp.gt.s32.totalorder %v3220, 0
        %v3222 = vsel %vm3221, %v3220, 0
        %v3223 = vshrl.u32 %v3222, 5
        %v3224 = vand.u32 %v3222, 31
        %v3225 = vsub.s32 32, %v3224
        %v3226 = vshrl.u32 683565275, %v3225
        %v3227 = vshll.u32 683565275, %v3224
        %v3228 = vshrl.u32 2475754826, %v3225
        %v3229 = vor.u32 %v3227, %v3228
        %v3230 = vshll.u32 2475754826, %v3224
        %v3231 = vshrl.u32 2131351028, %v3225
        %v3232 = vor.u32 %v3230, %v3231
        %v3233 = vshll.u32 2131351028, %v3224
        %v3234 = vshrl.u32 2102212464, %v3225
        %v3235 = vor.u32 %v3233, %v3234
        %v3236 = vshll.u32 2102212464, %v3224
        %v3237 = vshrl.u32 920167782, %v3225
        %v3238 = vor.u32 %v3236, %v3237
        %v3239 = vshll.u32 920167782, %v3224
        %v3240 = vshrl.u32 1326507024, %v3225
        %v3241 = vor.u32 %v3239, %v3240
        %vm3242 = vcmp.lt.s32.totalorder %v3223, 1
        %vm3243 = vcmp.lt.s32.totalorder %v3223, 2
        %vm3244 = vcmp.lt.s32.totalorder %v3223, 3
        %vm3245 = vcmp.lt.s32.totalorder %v3223, 4
        %v3246 = vsel %vm3242, %v3226, %v3229
        %v3247 = vsel %vm3245, %v3235, 2102212464
        %v3248 = vsel %vm3244, %v3232, %v3247
        %v3249 = vsel %vm3243, %v3246, %v3248
        %v3250 = vsel %vm3242, %v3229, %v3232
        %v3251 = vsel %vm3245, %v3238, 920167782
        %v3252 = vsel %vm3244, %v3235, %v3251
        %v3253 = vsel %vm3243, %v3250, %v3252
        %v3254 = vsel %vm3242, %v3232, %v3235
        %v3255 = vsel %vm3245, %v3241, 1326507024
        %v3256 = vsel %vm3244, %v3238, %v3255
        %v3257 = vsel %vm3243, %v3254, %v3256
        %v3258 = vshll.u32 %v3218, 8
        %v3259 = vmul.u32.u64.compose %v3258, %v3257
        %v3260 = vextract.low.u32 %v3259
        %v3261 = vextract.high.u32 %v3259
        %v3262 = vmul.u32.u64.compose %v3258, %v3253
        %v3263 = vextract.low.u32 %v3262
        %v3264 = vextract.high.u32 %v3262
        %v3265 = vmul.u32 %v3258, %v3249
        %v3266 = vadd.s32 %v3261, %v3263
        %vm3267 = vc.u32 %v3261, %v3263
        %v3268 = vadd.s32 %v3264, 1
        %v3269 = vsel %vm3267, %v3268, %v3264
        %v3270 = vadd.s32 %v3265, %v3269
        %v3271 = vadd.s32 %v3270, 536870912
        %v3272 = vshrl.u32 %v3271, 30
        %v3273 = vshll.u32 %v3272, 30
        %v3274 = vsub.s32 %v3270, %v3273
        %vm3275 = vcmp.lt.s32.totalorder %v3274, 0
        %v3276 = vsub.s32 0, %v3274
        %v3277 = vsel %vm3275, %v3276, %v3274
        %v3278 = vclz %v3277
        %v3279 = vsub.s32 %v3278, 2
        %vm3280 = vcmp.gt.s32.totalorder 0, %v3279
        %v3281 = vsel %vm3280, 0, %v3279
        %v3282 = vsub.s32 32, %v3281
        %v3283 = vshll.u32 %v3274, %v3281
        %v3284 = vshrl.u32 %v3266, %v3282
        %v3285 = vor.u32 %v3283, %v3284
        %v3286 = vsub.s32 4294967266, %v3281
        %v3287 = vadd.s32 %v3286, 127
        %v3288 = vshll.u32 %v3287, 23
        %v3289 = vor.u32 4788187, %v3288
        %v3290 = vand.u32 2147483647, %v3289
        %v3292 = vcvt.s32.f32 %v3285
        %v3293 = vmul.f32 %v3292, %v3290
        %v3294 = vxor.u32 %v3293, 2147483648
        %v3295 = vsel %vm3212, %v3294, %v3293
        %v3296 = vsub.s32 4, %v3272
        %v3297 = vsel %vm3212, %v3296, %v3272
        %v3298 = vsel %vm3211, %v306, %v3295
        %v3299 = vsel %vm3211, 0, %v3297
        %v3300 = vcosq.f32.pop %v3298
        %v3301 = vsinq.f32.pop %v3298
        %vm3302 = vweird.f32 %v306
        %v3303 = vand.u32 %v3299, 3
        %vm3304 = vcmp.lt.s32.totalorder %v3303, 2
        %vm3305 = vcmp.eq.s32.totalorder %v3303, 0
        %v3306 = vxor.u32 %v3301, 2147483648
        %v3307 = vsel %vm3305, %v3300, %v3306
        %vm3308 = vcmp.eq.s32.totalorder %v3303, 2
        %v3309 = vxor.u32 %v3300, 2147483648
        %v3310 = vsel %vm3308, %v3309, %v3301
        %v3311 = vsel %vm3304, %v3307, %v3310
        %v3312 = vsel %vm3302, nan, %v3311
        %v3313 = vand.u32 2147483647, %v307
        %vm3314 = vcmp.le.f32.partialorder %v3313, 0.7853982
        %vm3315 = vcmp.lt.s32.totalorder %v307, 0
        %v3316 = vand.u32 %v307, 2139095040
        %v3317 = vshrl.u32 %v3316, 23
        %v3318 = vsub.s32 %v3317, 127
        %v3319 = vand.u32 2147483647, %v307
        %v3320 = vand.u32 %v3319, 8388607
        %v3321 = vor.u32 %v3320, 8388608
        %v3322 = vsub.s32 0, %v3321
        %v3323 = vadd.s32 %v3318, 1
        %vm3324 = vcmp.gt.s32.totalorder %v3323, 0
        %v3325 = vsel %vm3324, %v3323, 0
        %v3326 = vshrl.u32 %v3325, 5
        %v3327 = vand.u32 %v3325, 31
        %v3328 = vsub.s32 32, %v3327
        %v3329 = vshrl.u32 683565275, %v3328
        %v3330 = vshll.u32 683565275, %v3327
        %v3331 = vshrl.u32 2475754826, %v3328
        %v3332 = vor.u32 %v3330, %v3331
        %v3333 = vshll.u32 2475754826, %v3327
        %v3334 = vshrl.u32 2131351028, %v3328
        %v3335 = vor.u32 %v3333, %v3334
        %v3336 = vshll.u32 2131351028, %v3327
        %v3337 = vshrl.u32 2102212464, %v3328
        %v3338 = vor.u32 %v3336, %v3337
        %v3339 = vshll.u32 2102212464, %v3327
        %v3340 = vshrl.u32 920167782, %v3328
        %v3341 = vor.u32 %v3339, %v3340
        %v3342 = vshll.u32 920167782, %v3327
        %v3343 = vshrl.u32 1326507024, %v3328
        %v3344 = vor.u32 %v3342, %v3343
        %vm3345 = vcmp.lt.s32.totalorder %v3326, 1
        %vm3346 = vcmp.lt.s32.totalorder %v3326, 2
        %vm3347 = vcmp.lt.s32.totalorder %v3326, 3
        %vm3348 = vcmp.lt.s32.totalorder %v3326, 4
        %v3349 = vsel %vm3345, %v3329, %v3332
        %v3350 = vsel %vm3348, %v3338, 2102212464
        %v3351 = vsel %vm3347, %v3335, %v3350
        %v3352 = vsel %vm3346, %v3349, %v3351
        %v3353 = vsel %vm3345, %v3332, %v3335
        %v3354 = vsel %vm3348, %v3341, 920167782
        %v3355 = vsel %vm3347, %v3338, %v3354
        %v3356 = vsel %vm3346, %v3353, %v3355
        %v3357 = vsel %vm3345, %v3335, %v3338
        %v3358 = vsel %vm3348, %v3344, 1326507024
        %v3359 = vsel %vm3347, %v3341, %v3358
        %v3360 = vsel %vm3346, %v3357, %v3359
        %v3361 = vshll.u32 %v3321, 8
        %v3362 = vmul.u32.u64.compose %v3361, %v3360
        %v3363 = vextract.low.u32 %v3362
        %v3364 = vextract.high.u32 %v3362
        %v3365 = vmul.u32.u64.compose %v3361, %v3356
        %v3366 = vextract.low.u32 %v3365
        %v3367 = vextract.high.u32 %v3365
        %v3368 = vmul.u32 %v3361, %v3352
        %v3369 = vadd.s32 %v3364, %v3366
        %vm3370 = vc.u32 %v3364, %v3366
        %v3371 = vadd.s32 %v3367, 1
        %v3372 = vsel %vm3370, %v3371, %v3367
        %v3373 = vadd.s32 %v3368, %v3372
        %v3374 = vadd.s32 %v3373, 536870912
        %v3375 = vshrl.u32 %v3374, 30
        %v3376 = vshll.u32 %v3375, 30
        %v3377 = vsub.s32 %v3373, %v3376
        %vm3378 = vcmp.lt.s32.totalorder %v3377, 0
        %v3379 = vsub.s32 0, %v3377
        %v3380 = vsel %vm3378, %v3379, %v3377
        %v3381 = vclz %v3380
        %v3382 = vsub.s32 %v3381, 2
        %vm3383 = vcmp.gt.s32.totalorder 0, %v3382
        %v3384 = vsel %vm3383, 0, %v3382
        %v3385 = vsub.s32 32, %v3384
        %v3386 = vshll.u32 %v3377, %v3384
        %v3387 = vshrl.u32 %v3369, %v3385
        %v3388 = vor.u32 %v3386, %v3387
        %v3389 = vsub.s32 4294967266, %v3384
        %v3390 = vadd.s32 %v3389, 127
        %v3391 = vshll.u32 %v3390, 23
        %v3392 = vor.u32 4788187, %v3391
        %v3393 = vand.u32 2147483647, %v3392
        %v3395 = vcvt.s32.f32 %v3388
        %v3396 = vmul.f32 %v3395, %v3393
        %v3397 = vxor.u32 %v3396, 2147483648
        %v3398 = vsel %vm3315, %v3397, %v3396
        %v3399 = vsub.s32 4, %v3375
        %v3400 = vsel %vm3315, %v3399, %v3375
        %v3401 = vsel %vm3314, %v307, %v3398
        %v3402 = vsel %vm3314, 0, %v3400
        %v3403 = vcosq.f32.pop %v3401
        %v3404 = vsinq.f32.pop %v3401
        %vm3405 = vweird.f32 %v307
        %v3406 = vand.u32 %v3402, 3
        %vm3407 = vcmp.lt.s32.totalorder %v3406, 2
        %vm3408 = vcmp.eq.s32.totalorder %v3406, 0
        %v3409 = vxor.u32 %v3404, 2147483648
        %v3410 = vsel %vm3408, %v3403, %v3409
        %vm3411 = vcmp.eq.s32.totalorder %v3406, 2
        %v3412 = vxor.u32 %v3403, 2147483648
        %v3413 = vsel %vm3411, %v3412, %v3404
        %v3414 = vsel %vm3407, %v3410, %v3413
        %v3415 = vsel %vm3405, nan, %v3414
        %v3416 = vand.u32 2147483647, %v308
        %vm3417 = vcmp.le.f32.partialorder %v3416, 0.7853982
        %vm3418 = vcmp.lt.s32.totalorder %v308, 0
        %v3419 = vand.u32 %v308, 2139095040
        %v3420 = vshrl.u32 %v3419, 23
        %v3421 = vsub.s32 %v3420, 127
        %v3422 = vand.u32 2147483647, %v308
        %v3423 = vand.u32 %v3422, 8388607
        %v3424 = vor.u32 %v3423, 8388608
        %v3425 = vsub.s32 0, %v3424
        %v3426 = vadd.s32 %v3421, 1
        %vm3427 = vcmp.gt.s32.totalorder %v3426, 0
        %v3428 = vsel %vm3427, %v3426, 0
        %v3429 = vshrl.u32 %v3428, 5
        %v3430 = vand.u32 %v3428, 31
        %v3431 = vsub.s32 32, %v3430
        %v3432 = vshrl.u32 683565275, %v3431
        %v3433 = vshll.u32 683565275, %v3430
        %v3434 = vshrl.u32 2475754826, %v3431
        %v3435 = vor.u32 %v3433, %v3434
        %v3436 = vshll.u32 2475754826, %v3430
        %v3437 = vshrl.u32 2131351028, %v3431
        %v3438 = vor.u32 %v3436, %v3437
        %v3439 = vshll.u32 2131351028, %v3430
        %v3440 = vshrl.u32 2102212464, %v3431
        %v3441 = vor.u32 %v3439, %v3440
        %v3442 = vshll.u32 2102212464, %v3430
        %v3443 = vshrl.u32 920167782, %v3431
        %v3444 = vor.u32 %v3442, %v3443
        %v3445 = vshll.u32 920167782, %v3430
        %v3446 = vshrl.u32 1326507024, %v3431
        %v3447 = vor.u32 %v3445, %v3446
        %vm3448 = vcmp.lt.s32.totalorder %v3429, 1
        %vm3449 = vcmp.lt.s32.totalorder %v3429, 2
        %vm3450 = vcmp.lt.s32.totalorder %v3429, 3
        %vm3451 = vcmp.lt.s32.totalorder %v3429, 4
        %v3452 = vsel %vm3448, %v3432, %v3435
        %v3453 = vsel %vm3451, %v3441, 2102212464
        %v3454 = vsel %vm3450, %v3438, %v3453
        %v3455 = vsel %vm3449, %v3452, %v3454
        %v3456 = vsel %vm3448, %v3435, %v3438
        %v3457 = vsel %vm3451, %v3444, 920167782
        %v3458 = vsel %vm3450, %v3441, %v3457
        %v3459 = vsel %vm3449, %v3456, %v3458
        %v3460 = vsel %vm3448, %v3438, %v3441
        %v3461 = vsel %vm3451, %v3447, 1326507024
        %v3462 = vsel %vm3450, %v3444, %v3461
        %v3463 = vsel %vm3449, %v3460, %v3462
        %v3464 = vshll.u32 %v3424, 8
        %v3465 = vmul.u32.u64.compose %v3464, %v3463
        %v3466 = vextract.low.u32 %v3465
        %v3467 = vextract.high.u32 %v3465
        %v3468 = vmul.u32.u64.compose %v3464, %v3459
        %v3469 = vextract.low.u32 %v3468
        %v3470 = vextract.high.u32 %v3468
        %v3471 = vmul.u32 %v3464, %v3455
        %v3472 = vadd.s32 %v3467, %v3469
        %vm3473 = vc.u32 %v3467, %v3469
        %v3474 = vadd.s32 %v3470, 1
        %v3475 = vsel %vm3473, %v3474, %v3470
        %v3476 = vadd.s32 %v3471, %v3475
        %v3477 = vadd.s32 %v3476, 536870912
        %v3478 = vshrl.u32 %v3477, 30
        %v3479 = vshll.u32 %v3478, 30
        %v3480 = vsub.s32 %v3476, %v3479
        %vm3481 = vcmp.lt.s32.totalorder %v3480, 0
        %v3482 = vsub.s32 0, %v3480
        %v3483 = vsel %vm3481, %v3482, %v3480
        %v3484 = vclz %v3483
        %v3485 = vsub.s32 %v3484, 2
        %vm3486 = vcmp.gt.s32.totalorder 0, %v3485
        %v3487 = vsel %vm3486, 0, %v3485
        %v3488 = vsub.s32 32, %v3487
        %v3489 = vshll.u32 %v3480, %v3487
        %v3490 = vshrl.u32 %v3472, %v3488
        %v3491 = vor.u32 %v3489, %v3490
        %v3492 = vsub.s32 4294967266, %v3487
        %v3493 = vadd.s32 %v3492, 127
        %v3494 = vshll.u32 %v3493, 23
        %v3495 = vor.u32 4788187, %v3494
        %v3496 = vand.u32 2147483647, %v3495
        %v3498 = vcvt.s32.f32 %v3491
        %v3499 = vmul.f32 %v3498, %v3496
        %v3500 = vxor.u32 %v3499, 2147483648
        %v3501 = vsel %vm3418, %v3500, %v3499
        %v3502 = vsub.s32 4, %v3478
        %v3503 = vsel %vm3418, %v3502, %v3478
        %v3504 = vsel %vm3417, %v308, %v3501
        %v3505 = vsel %vm3417, 0, %v3503
        %v3506 = vcosq.f32.pop %v3504
        %v3507 = vsinq.f32.pop %v3504
        %vm3508 = vweird.f32 %v308
        %v3509 = vand.u32 %v3505, 3
        %vm3510 = vcmp.lt.s32.totalorder %v3509, 2
        %vm3511 = vcmp.eq.s32.totalorder %v3509, 0
        %v3512 = vxor.u32 %v3507, 2147483648
        %v3513 = vsel %vm3511, %v3506, %v3512
        %vm3514 = vcmp.eq.s32.totalorder %v3509, 2
        %v3515 = vxor.u32 %v3506, 2147483648
        %v3516 = vsel %vm3514, %v3515, %v3507
        %v3517 = vsel %vm3510, %v3513, %v3516
        %v3518 = vsel %vm3508, nan, %v3517
        %v3519 = vand.u32 2147483647, %v309
        %vm3520 = vcmp.le.f32.partialorder %v3519, 0.7853982
        %vm3521 = vcmp.lt.s32.totalorder %v309, 0
        %v3522 = vand.u32 %v309, 2139095040
        %v3523 = vshrl.u32 %v3522, 23
        %v3524 = vsub.s32 %v3523, 127
        %v3525 = vand.u32 2147483647, %v309
        %v3526 = vand.u32 %v3525, 8388607
        %v3527 = vor.u32 %v3526, 8388608
        %v3528 = vsub.s32 0, %v3527
        %v3529 = vadd.s32 %v3524, 1
        %vm3530 = vcmp.gt.s32.totalorder %v3529, 0
        %v3531 = vsel %vm3530, %v3529, 0
        %v3532 = vshrl.u32 %v3531, 5
        %v3533 = vand.u32 %v3531, 31
        %v3534 = vsub.s32 32, %v3533
        %v3535 = vshrl.u32 683565275, %v3534
        %v3536 = vshll.u32 683565275, %v3533
        %v3537 = vshrl.u32 2475754826, %v3534
        %v3538 = vor.u32 %v3536, %v3537
        %v3539 = vshll.u32 2475754826, %v3533
        %v3540 = vshrl.u32 2131351028, %v3534
        %v3541 = vor.u32 %v3539, %v3540
        %v3542 = vshll.u32 2131351028, %v3533
        %v3543 = vshrl.u32 2102212464, %v3534
        %v3544 = vor.u32 %v3542, %v3543
        %v3545 = vshll.u32 2102212464, %v3533
        %v3546 = vshrl.u32 920167782, %v3534
        %v3547 = vor.u32 %v3545, %v3546
        %v3548 = vshll.u32 920167782, %v3533
        %v3549 = vshrl.u32 1326507024, %v3534
        %v3550 = vor.u32 %v3548, %v3549
        %vm3551 = vcmp.lt.s32.totalorder %v3532, 1
        %vm3552 = vcmp.lt.s32.totalorder %v3532, 2
        %vm3553 = vcmp.lt.s32.totalorder %v3532, 3
        %vm3554 = vcmp.lt.s32.totalorder %v3532, 4
        %v3555 = vsel %vm3551, %v3535, %v3538
        %v3556 = vsel %vm3554, %v3544, 2102212464
        %v3557 = vsel %vm3553, %v3541, %v3556
        %v3558 = vsel %vm3552, %v3555, %v3557
        %v3559 = vsel %vm3551, %v3538, %v3541
        %v3560 = vsel %vm3554, %v3547, 920167782
        %v3561 = vsel %vm3553, %v3544, %v3560
        %v3562 = vsel %vm3552, %v3559, %v3561
        %v3563 = vsel %vm3551, %v3541, %v3544
        %v3564 = vsel %vm3554, %v3550, 1326507024
        %v3565 = vsel %vm3553, %v3547, %v3564
        %v3566 = vsel %vm3552, %v3563, %v3565
        %v3567 = vshll.u32 %v3527, 8
        %v3568 = vmul.u32.u64.compose %v3567, %v3566
        %v3569 = vextract.low.u32 %v3568
        %v3570 = vextract.high.u32 %v3568
        %v3571 = vmul.u32.u64.compose %v3567, %v3562
        %v3572 = vextract.low.u32 %v3571
        %v3573 = vextract.high.u32 %v3571
        %v3574 = vmul.u32 %v3567, %v3558
        %v3575 = vadd.s32 %v3570, %v3572
        %vm3576 = vc.u32 %v3570, %v3572
        %v3577 = vadd.s32 %v3573, 1
        %v3578 = vsel %vm3576, %v3577, %v3573
        %v3579 = vadd.s32 %v3574, %v3578
        %v3580 = vadd.s32 %v3579, 536870912
        %v3581 = vshrl.u32 %v3580, 30
        %v3582 = vshll.u32 %v3581, 30
        %v3583 = vsub.s32 %v3579, %v3582
        %vm3584 = vcmp.lt.s32.totalorder %v3583, 0
        %v3585 = vsub.s32 0, %v3583
        %v3586 = vsel %vm3584, %v3585, %v3583
        %v3587 = vclz %v3586
        %v3588 = vsub.s32 %v3587, 2
        %vm3589 = vcmp.gt.s32.totalorder 0, %v3588
        %v3590 = vsel %vm3589, 0, %v3588
        %v3591 = vsub.s32 32, %v3590
        %v3592 = vshll.u32 %v3583, %v3590
        %v3593 = vshrl.u32 %v3575, %v3591
        %v3594 = vor.u32 %v3592, %v3593
        %v3595 = vsub.s32 4294967266, %v3590
        %v3596 = vadd.s32 %v3595, 127
        %v3597 = vshll.u32 %v3596, 23
        %v3598 = vor.u32 4788187, %v3597
        %v3599 = vand.u32 2147483647, %v3598
        %v3601 = vcvt.s32.f32 %v3594
        %v3602 = vmul.f32 %v3601, %v3599
        %v3603 = vxor.u32 %v3602, 2147483648
        %v3604 = vsel %vm3521, %v3603, %v3602
        %v3605 = vsub.s32 4, %v3581
        %v3606 = vsel %vm3521, %v3605, %v3581
        %v3607 = vsel %vm3520, %v309, %v3604
        %v3608 = vsel %vm3520, 0, %v3606
        %v3609 = vcosq.f32.pop %v3607
        %v3610 = vsinq.f32.pop %v3607
        %vm3611 = vweird.f32 %v309
        %v3612 = vand.u32 %v3608, 3
        %vm3613 = vcmp.lt.s32.totalorder %v3612, 2
        %vm3614 = vcmp.eq.s32.totalorder %v3612, 0
        %v3615 = vxor.u32 %v3610, 2147483648
        %v3616 = vsel %vm3614, %v3609, %v3615
        %vm3617 = vcmp.eq.s32.totalorder %v3612, 2
        %v3618 = vxor.u32 %v3609, 2147483648
        %v3619 = vsel %vm3617, %v3618, %v3610
        %v3620 = vsel %vm3613, %v3616, %v3619
        %v3621 = vsel %vm3611, nan, %v3620
        %v3622 = vsel %vm287, 1, 0
        %vm3623 = vcmp.eq.s32.totalorder %v3622, 1
        %v3624 = vsel %vm3623, %v413, %v2076
        %v3625 = vsel %vm3623, %v517, %v2179
        %v3626 = vsel %vm3623, %v621, %v2282
        %v3627 = vsel %vm3623, %v725, %v2385
        %v3628 = vsel %vm3623, %v829, %v2488
        %v3629 = vsel %vm3623, %v933, %v2591
        %v3630 = vsel %vm3623, %v1037, %v2694
        %v3631 = vsel %vm3623, %v1141, %v2797
        %v3632 = vsel %vm3623, %v1245, %v2900
        %v3633 = vsel %vm3623, %v1349, %v3003
        %v3634 = vsel %vm3623, %v1453, %v3106
        %v3635 = vsel %vm3623, %v1557, %v3209
        %v3636 = vsel %vm3623, %v1661, %v3312
        %v3637 = vsel %vm3623, %v1765, %v3415
        %v3638 = vsel %vm3623, %v1869, %v3518
        %v3639 = vsel %vm3623, %v1973, %v3621
        %v3640 = vpack.c.bf16 %v3625, %v3624
        %v3641 = vpack.c.bf16 %v3627, %v3626
        %v3642 = vpack.c.bf16 %v3629, %v3628
        %v3643 = vpack.c.bf16 %v3631, %v3630
        %v3644 = vpack.c.bf16 %v3633, %v3632
        %v3645 = vpack.c.bf16 %v3635, %v3634
        %v3646 = vpack.c.bf16 %v3637, %v3636
        %v3647 = vpack.c.bf16 %v3639, %v3638
        %v3648 = vld [vmem:[#allocation2] sm:$0xff]
        %v3649 = vld [vmem:[#allocation2 + $0x8] sm:$0xff]
        %v3650 = vld [vmem:[#allocation2 + $0x10] sm:$0xff]
        %v3651 = vld [vmem:[#allocation2 + $0x18] sm:$0xff]
        %v3652 = vld [vmem:[#allocation2 + $0x20] sm:$0xff]
        %v3653 = vld [vmem:[#allocation2 + $0x28] sm:$0xff]
        %v3654 = vld [vmem:[#allocation2 + $0x30] sm:$0xff]
        %v3655 = vld [vmem:[#allocation2 + $0x38] sm:$0xff]
        %v3656 = vld [vmem:[#allocation2 + $0x40] sm:$0xff]
        %v3657 = vld [vmem:[#allocation2 + $0x48] sm:$0xff]
        %v3658 = vld [vmem:[#allocation2 + $0x50] sm:$0xff]
        %v3659 = vld [vmem:[#allocation2 + $0x58] sm:$0xff]
        %v3660 = vld [vmem:[#allocation2 + $0x60] sm:$0xff]
        %v3661 = vld [vmem:[#allocation2 + $0x68] sm:$0xff]
        %v3662 = vld [vmem:[#allocation2 + $0x70] sm:$0xff]
        %v3663 = vld [vmem:[#allocation2 + $0x78] sm:$0xff]
        %v3664 = vld [vmem:[#allocation2 + $0x80] sm:$0xff]
        %v3665 = vld [vmem:[#allocation2 + $0x88] sm:$0xff]
        %v3666 = vld [vmem:[#allocation2 + $0x90] sm:$0xff]
        %v3667 = vld [vmem:[#allocation2 + $0x98] sm:$0xff]
        %v3668 = vld [vmem:[#allocation2 + $0xa0] sm:$0xff]
        %v3669 = vld [vmem:[#allocation2 + $0xa8] sm:$0xff]
        %v3670 = vld [vmem:[#allocation2 + $0xb0] sm:$0xff]
        %v3671 = vld [vmem:[#allocation2 + $0xb8] sm:$0xff]
        %v3672 = vld [vmem:[#allocation2 + $0xc0] sm:$0xff]
        %v3673 = vld [vmem:[#allocation2 + $0xc8] sm:$0xff]
        %v3674 = vld [vmem:[#allocation2 + $0xd0] sm:$0xff]
        %v3675 = vld [vmem:[#allocation2 + $0xd8] sm:$0xff]
        %v3676 = vld [vmem:[#allocation2 + $0xe0] sm:$0xff]
        %v3677 = vld [vmem:[#allocation2 + $0xe8] sm:$0xff]
        %v3678 = vld [vmem:[#allocation2 + $0xf0] sm:$0xff]
        %v3679 = vld [vmem:[#allocation2 + $0xf8] sm:$0xff]
        %v3680 = vld [vmem:[#allocation5] sm:$0xf]
        %v3682 = vlaneseq
        %v3683 = vshrl.u32 %v3682, 7
        %v3684 = vsub.s32 0, %v3683
        %v3685 = vrot.slane %v3680, %v3684
        %v3686 = vlaneseq
        %v3687 = vshrl.u32 %v3686, 7
        %v3688 = vsub.s32 1, %v3687
        %v3689 = vrot.slane %v3680, %v3688
        %v3690 = vlaneseq
        %v3691 = vshrl.u32 %v3690, 7
        %v3692 = vsub.s32 2, %v3691
        %v3693 = vrot.slane %v3680, %v3692
        %v3694 = vlaneseq
        %v3695 = vshrl.u32 %v3694, 7
        %v3696 = vsub.s32 3, %v3695
        %v3697 = vrot.slane %v3680, %v3696
        %v3734 = vunpack.c.l.b16 %v3648
        %v3735 = vunpack.c.h.b16 %v3648
        %v3736 = vunpack.c.l.b16 %v3649
        %v3737 = vunpack.c.h.b16 %v3649
        %v3738 = vunpack.c.l.b16 %v3650
        %v3739 = vunpack.c.h.b16 %v3650
        %v3740 = vunpack.c.l.b16 %v3651
        %v3741 = vunpack.c.h.b16 %v3651
        %v3742 = vunpack.c.l.b16 %v3652
        %v3743 = vunpack.c.h.b16 %v3652
        %v3744 = vunpack.c.l.b16 %v3653
        %v3745 = vunpack.c.h.b16 %v3653
        %v3746 = vunpack.c.l.b16 %v3654
        %v3747 = vunpack.c.h.b16 %v3654
        %v3748 = vunpack.c.l.b16 %v3655
        %v3749 = vunpack.c.h.b16 %v3655
        %v3750 = vunpack.c.l.b16 %v3656
        %v3751 = vunpack.c.h.b16 %v3656
        %v3752 = vunpack.c.l.b16 %v3657
        %v3753 = vunpack.c.h.b16 %v3657
        %v3754 = vunpack.c.l.b16 %v3658
        %v3755 = vunpack.c.h.b16 %v3658
        %v3756 = vunpack.c.l.b16 %v3659
        %v3757 = vunpack.c.h.b16 %v3659
        %v3758 = vunpack.c.l.b16 %v3660
        %v3759 = vunpack.c.h.b16 %v3660
        %v3760 = vunpack.c.l.b16 %v3661
        %v3761 = vunpack.c.h.b16 %v3661
        %v3762 = vunpack.c.l.b16 %v3662
        %v3763 = vunpack.c.h.b16 %v3662
        %v3764 = vunpack.c.l.b16 %v3663
        %v3765 = vunpack.c.h.b16 %v3663
        %v3766 = vunpack.c.l.b16 %v3664
        %v3767 = vunpack.c.h.b16 %v3664
        %v3768 = vunpack.c.l.b16 %v3665
        %v3769 = vunpack.c.h.b16 %v3665
        %v3770 = vunpack.c.l.b16 %v3666
        %v3771 = vunpack.c.h.b16 %v3666
        %v3772 = vunpack.c.l.b16 %v3667
        %v3773 = vunpack.c.h.b16 %v3667
        %v3774 = vunpack.c.l.b16 %v3668
        %v3775 = vunpack.c.h.b16 %v3668
        %v3776 = vunpack.c.l.b16 %v3669
        %v3777 = vunpack.c.h.b16 %v3669
        %v3778 = vunpack.c.l.b16 %v3670
        %v3779 = vunpack.c.h.b16 %v3670
        %v3780 = vunpack.c.l.b16 %v3671
        %v3781 = vunpack.c.h.b16 %v3671
        %v3782 = vunpack.c.l.b16 %v3672
        %v3783 = vunpack.c.h.b16 %v3672
        %v3784 = vunpack.c.l.b16 %v3673
        %v3785 = vunpack.c.h.b16 %v3673
        %v3786 = vunpack.c.l.b16 %v3674
        %v3787 = vunpack.c.h.b16 %v3674
        %v3788 = vunpack.c.l.b16 %v3675
        %v3789 = vunpack.c.h.b16 %v3675
        %v3790 = vunpack.c.l.b16 %v3676
        %v3791 = vunpack.c.h.b16 %v3676
        %v3792 = vunpack.c.l.b16 %v3677
        %v3793 = vunpack.c.h.b16 %v3677
        %v3794 = vunpack.c.l.b16 %v3678
        %v3795 = vunpack.c.h.b16 %v3678
        %v3796 = vunpack.c.l.b16 %v3679
        %v3797 = vunpack.c.h.b16 %v3679
        %v3798 = vpack.c.b16 %v3738, %v3734
        %v3799 = vpack.c.b16 %v3739, %v3735
        %v3800 = vpack.c.b16 %v3740, %v3736
        %v3801 = vpack.c.b16 %v3741, %v3737
        %v3802 = vpack.c.b16 %v3746, %v3742
        %v3803 = vpack.c.b16 %v3747, %v3743
        %v3804 = vpack.c.b16 %v3748, %v3744
        %v3805 = vpack.c.b16 %v3749, %v3745
        %v3806 = vpack.c.b16 %v3754, %v3750
        %v3807 = vpack.c.b16 %v3755, %v3751
        %v3808 = vpack.c.b16 %v3756, %v3752
        %v3809 = vpack.c.b16 %v3757, %v3753
        %v3810 = vpack.c.b16 %v3762, %v3758
        %v3811 = vpack.c.b16 %v3763, %v3759
        %v3812 = vpack.c.b16 %v3764, %v3760
        %v3813 = vpack.c.b16 %v3765, %v3761
        %v3814 = vpack.c.b16 %v3770, %v3766
        %v3815 = vpack.c.b16 %v3771, %v3767
        %v3816 = vpack.c.b16 %v3772, %v3768
        %v3817 = vpack.c.b16 %v3773, %v3769
        %v3818 = vpack.c.b16 %v3778, %v3774
        %v3819 = vpack.c.b16 %v3779, %v3775
        %v3820 = vpack.c.b16 %v3780, %v3776
        %v3821 = vpack.c.b16 %v3781, %v3777
        %v3822 = vpack.c.b16 %v3786, %v3782
        %v3823 = vpack.c.b16 %v3787, %v3783
        %v3824 = vpack.c.b16 %v3788, %v3784
        %v3825 = vpack.c.b16 %v3789, %v3785
        %v3826 = vpack.c.b16 %v3794, %v3790
        %v3827 = vpack.c.b16 %v3795, %v3791
        %v3828 = vpack.c.b16 %v3796, %v3792
        %v3829 = vpack.c.b16 %v3797, %v3793
        %3862 = vmatprep.subr.bf16.mxu0 %v3827
        %3863 = vmatpush1.bf16.msra.mxu0 %v3826
        %3864 = vmatprep.subr.bf16.mxu0 %v3823
        %3865 = vmatpush1.bf16.msra.mxu0 %v3822
        %3866 = vmatprep.subr.bf16.mxu0 %v3819
        %3867 = vmatpush1.bf16.msra.mxu0 %v3818
        %3868 = vmatprep.subr.bf16.mxu0 %v3815
        %3869 = vmatpush1.bf16.msra.mxu0 %v3814
        %3870 = vmatprep.subr.bf16.mxu0 %v3811
        %3871 = vmatpush1.bf16.msra.mxu0 %v3810
        %3872 = vmatprep.subr.bf16.mxu0 %v3807
        %3873 = vmatpush1.bf16.msra.mxu0 %v3806
        %3874 = vmatprep.subr.bf16.mxu0 %v3803
        %3875 = vmatpush1.bf16.msra.mxu0 %v3802
        %3876 = vmatprep.subr.bf16.mxu0 %v3799
        %3877 = vmatpush1.bf16.msra.mxu0 %v3798
        %3878 = vmatprep.subr.bf16.mxu0 0
        %3879 = vmatpush2.bf16.msra.mxu0 0
        %3880 = vmatprep.subr.bf16.mxu0 0
        %3881 = vmatpush2.bf16.msra.mxu0 0
        %3882 = vmatprep.subr.bf16.mxu0 0
        %3883 = vmatpush2.bf16.msra.mxu0 0
        %3884 = vmatprep.subr.bf16.mxu0 0
        %3885 = vmatpush2.bf16.msra.mxu0 0
        %3886 = vmatprep.subr.bf16.mxu0 0
        %3887 = vmatpush2.bf16.msra.mxu0 0
        %3888 = vmatprep.subr.bf16.mxu0 0
        %3889 = vmatpush2.bf16.msra.mxu0 0
        %3890 = vmatprep.subr.bf16.mxu0 0
        %3891 = vmatpush2.bf16.msra.mxu0 0
        %3892 = vmatprep.subr.bf16.mxu0 0
        %3893 = vmatpush2.bf16.msra.mxu0 0
        %3894 = vmatprep.mubr.bf16.mxu0 0
        %3895 = vmatmul.mubr.bf16.gmra.mxu0 %v3640
        %v3896 = vpop.f32.mrf.mxu0
        %v3897 = vadd.f32 %v3685, %v3896
        %v3898 = vpop.f32.mrf.mxu0
        %v3899 = vadd.f32 %v3689, %v3898
        %v3900 = vpop.f32.mrf.mxu0
        %v3901 = vadd.f32 %v3685, %v3900
        %v3902 = vpop.f32.mrf.mxu0
        %v3903 = vadd.f32 %v3689, %v3902
        %3904 = vmatprep.mubr.bf16.mxu0 0
        %3905 = vmatmul.mubr.bf16.gmra.mxu0 %v3641
        %v3906 = vpop.f32.mrf.mxu0
        %v3907 = vadd.f32 %v3685, %v3906
        %v3908 = vpop.f32.mrf.mxu0
        %v3909 = vadd.f32 %v3689, %v3908
        %v3910 = vpop.f32.mrf.mxu0
        %v3911 = vadd.f32 %v3685, %v3910
        %v3912 = vpop.f32.mrf.mxu0
        %v3913 = vadd.f32 %v3689, %v3912
        %3914 = vmatprep.mubr.bf16.mxu0 0
        %3915 = vmatmul.mubr.bf16.gmra.mxu0 %v3642
        %v3916 = vpop.f32.mrf.mxu0
        %v3917 = vadd.f32 %v3685, %v3916
        %v3918 = vpop.f32.mrf.mxu0
        %v3919 = vadd.f32 %v3689, %v3918
        %v3920 = vpop.f32.mrf.mxu0
        %v3921 = vadd.f32 %v3685, %v3920
        %v3922 = vpop.f32.mrf.mxu0
        %v3923 = vadd.f32 %v3689, %v3922
        %3924 = vmatprep.mubr.bf16.mxu0 0
        %3925 = vmatmul.mubr.bf16.gmra.mxu0 %v3643
        %v3926 = vpop.f32.mrf.mxu0
        %v3927 = vadd.f32 %v3685, %v3926
        %v3928 = vpop.f32.mrf.mxu0
        %v3929 = vadd.f32 %v3689, %v3928
        %v3930 = vpop.f32.mrf.mxu0
        %v3931 = vadd.f32 %v3685, %v3930
        %v3932 = vpop.f32.mrf.mxu0
        %v3933 = vadd.f32 %v3689, %v3932
        %3934 = vmatprep.mubr.bf16.mxu0 0
        %3935 = vmatmul.mubr.bf16.gmra.mxu0 %v3644
        %v3936 = vpop.f32.mrf.mxu0
        %v3937 = vadd.f32 %v3685, %v3936
        %v3938 = vpop.f32.mrf.mxu0
        %v3939 = vadd.f32 %v3689, %v3938
        %v3940 = vpop.f32.mrf.mxu0
        %v3941 = vadd.f32 %v3685, %v3940
        %v3942 = vpop.f32.mrf.mxu0
        %v3943 = vadd.f32 %v3689, %v3942
        %3944 = vmatprep.mubr.bf16.mxu0 0
        %3945 = vmatmul.mubr.bf16.gmra.mxu0 %v3645
        %v3946 = vpop.f32.mrf.mxu0
        %v3947 = vadd.f32 %v3685, %v3946
        %v3948 = vpop.f32.mrf.mxu0
        %v3949 = vadd.f32 %v3689, %v3948
        %v3950 = vpop.f32.mrf.mxu0
        %v3951 = vadd.f32 %v3685, %v3950
        %v3952 = vpop.f32.mrf.mxu0
        %v3953 = vadd.f32 %v3689, %v3952
        %3954 = vmatprep.mubr.bf16.mxu0 0
        %3955 = vmatmul.mubr.bf16.gmra.mxu0 %v3646
        %v3956 = vpop.f32.mrf.mxu0
        %v3957 = vadd.f32 %v3685, %v3956
        %v3958 = vpop.f32.mrf.mxu0
        %v3959 = vadd.f32 %v3689, %v3958
        %v3960 = vpop.f32.mrf.mxu0
        %v3961 = vadd.f32 %v3685, %v3960
        %v3962 = vpop.f32.mrf.mxu0
        %v3963 = vadd.f32 %v3689, %v3962
        %3964 = vmatprep.mubr.bf16.mxu0 0
        %3965 = vmatmul.mubr.bf16.gmra.mxu0 %v3647
        %v3966 = vpop.f32.mrf.mxu0
        %v3967 = vadd.f32 %v3685, %v3966
        %v3968 = vpop.f32.mrf.mxu0
        %v3969 = vadd.f32 %v3689, %v3968
        %v3970 = vpop.f32.mrf.mxu0
        %v3971 = vadd.f32 %v3685, %v3970
        %v3972 = vpop.f32.mrf.mxu0
        %v3973 = vadd.f32 %v3689, %v3972
        %3974 = vdwg.mxu0
        %3975 = vmatprep.subr.bf16.mxu0 %v3829
        %3976 = vmatpush1.bf16.msra.mxu0 %v3828
        %3977 = vmatprep.subr.bf16.mxu0 %v3825
        %3978 = vmatpush1.bf16.msra.mxu0 %v3824
        %3979 = vmatprep.subr.bf16.mxu0 %v3821
        %3980 = vmatpush1.bf16.msra.mxu0 %v3820
        %3981 = vmatprep.subr.bf16.mxu0 %v3817
        %3982 = vmatpush1.bf16.msra.mxu0 %v3816
        %3983 = vmatprep.subr.bf16.mxu0 %v3813
        %3984 = vmatpush1.bf16.msra.mxu0 %v3812
        %3985 = vmatprep.subr.bf16.mxu0 %v3809
        %3986 = vmatpush1.bf16.msra.mxu0 %v3808
        %3987 = vmatprep.subr.bf16.mxu0 %v3805
        %3988 = vmatpush1.bf16.msra.mxu0 %v3804
        %3989 = vmatprep.subr.bf16.mxu0 %v3801
        %3990 = vmatpush1.bf16.msra.mxu0 %v3800
        %3991 = vmatprep.subr.bf16.mxu0 0
        %3992 = vmatpush2.bf16.msra.mxu0 0
        %3993 = vmatprep.subr.bf16.mxu0 0
        %3994 = vmatpush2.bf16.msra.mxu0 0
        %3995 = vmatprep.subr.bf16.mxu0 0
        %3996 = vmatpush2.bf16.msra.mxu0 0
        %3997 = vmatprep.subr.bf16.mxu0 0
        %3998 = vmatpush2.bf16.msra.mxu0 0
        %3999 = vmatprep.subr.bf16.mxu0 0
        %4000 = vmatpush2.bf16.msra.mxu0 0
        %4001 = vmatprep.subr.bf16.mxu0 0
        %4002 = vmatpush2.bf16.msra.mxu0 0
        %4003 = vmatprep.subr.bf16.mxu0 0
        %4004 = vmatpush2.bf16.msra.mxu0 0
        %4005 = vmatprep.subr.bf16.mxu0 0
        %4006 = vmatpush2.bf16.msra.mxu0 0
        %4007 = vmatprep.mubr.bf16.mxu0 0
        %4008 = vmatmul.mubr.bf16.gmra.mxu0 %v3640
        %v4009 = vpop.f32.mrf.mxu0
        %v4010 = vadd.f32 %v3693, %v4009
        %v4011 = vpop.f32.mrf.mxu0
        %v4012 = vadd.f32 %v3697, %v4011
        %v4013 = vpop.f32.mrf.mxu0
        %v4014 = vadd.f32 %v3693, %v4013
        %v4015 = vpop.f32.mrf.mxu0
        %v4016 = vadd.f32 %v3697, %v4015
        %4017 = vmatprep.mubr.bf16.mxu0 0
        %4018 = vmatmul.mubr.bf16.gmra.mxu0 %v3641
        %v4019 = vpop.f32.mrf.mxu0
        %v4020 = vadd.f32 %v3693, %v4019
        %v4021 = vpop.f32.mrf.mxu0
        %v4022 = vadd.f32 %v3697, %v4021
        %v4023 = vpop.f32.mrf.mxu0
        %v4024 = vadd.f32 %v3693, %v4023
        %v4025 = vpop.f32.mrf.mxu0
        %v4026 = vadd.f32 %v3697, %v4025
        %4027 = vmatprep.mubr.bf16.mxu0 0
        %4028 = vmatmul.mubr.bf16.gmra.mxu0 %v3642
        %v4029 = vpop.f32.mrf.mxu0
        %v4030 = vadd.f32 %v3693, %v4029
        %v4031 = vpop.f32.mrf.mxu0
        %v4032 = vadd.f32 %v3697, %v4031
        %v4033 = vpop.f32.mrf.mxu0
        %v4034 = vadd.f32 %v3693, %v4033
        %v4035 = vpop.f32.mrf.mxu0
        %v4036 = vadd.f32 %v3697, %v4035
        %4037 = vmatprep.mubr.bf16.mxu0 0
        %4038 = vmatmul.mubr.bf16.gmra.mxu0 %v3643
        %v4039 = vpop.f32.mrf.mxu0
        %v4040 = vadd.f32 %v3693, %v4039
        %v4041 = vpop.f32.mrf.mxu0
        %v4042 = vadd.f32 %v3697, %v4041
        %v4043 = vpop.f32.mrf.mxu0
        %v4044 = vadd.f32 %v3693, %v4043
        %v4045 = vpop.f32.mrf.mxu0
        %v4046 = vadd.f32 %v3697, %v4045
        %4047 = vmatprep.mubr.bf16.mxu0 0
        %4048 = vmatmul.mubr.bf16.gmra.mxu0 %v3644
        %v4049 = vpop.f32.mrf.mxu0
        %v4050 = vadd.f32 %v3693, %v4049
        %v4051 = vpop.f32.mrf.mxu0
        %v4052 = vadd.f32 %v3697, %v4051
        %v4053 = vpop.f32.mrf.mxu0
        %v4054 = vadd.f32 %v3693, %v4053
        %v4055 = vpop.f32.mrf.mxu0
        %v4056 = vadd.f32 %v3697, %v4055
        %4057 = vmatprep.mubr.bf16.mxu0 0
        %4058 = vmatmul.mubr.bf16.gmra.mxu0 %v3645
        %v4059 = vpop.f32.mrf.mxu0
        %v4060 = vadd.f32 %v3693, %v4059
        %v4061 = vpop.f32.mrf.mxu0
        %v4062 = vadd.f32 %v3697, %v4061
        %v4063 = vpop.f32.mrf.mxu0
        %v4064 = vadd.f32 %v3693, %v4063
        %v4065 = vpop.f32.mrf.mxu0
        %v4066 = vadd.f32 %v3697, %v4065
        %4067 = vmatprep.mubr.bf16.mxu0 0
        %4068 = vmatmul.mubr.bf16.gmra.mxu0 %v3646
        %v4069 = vpop.f32.mrf.mxu0
        %v4070 = vadd.f32 %v3693, %v4069
        %v4071 = vpop.f32.mrf.mxu0
        %v4072 = vadd.f32 %v3697, %v4071
        %v4073 = vpop.f32.mrf.mxu0
        %v4074 = vadd.f32 %v3693, %v4073
        %v4075 = vpop.f32.mrf.mxu0
        %v4076 = vadd.f32 %v3697, %v4075
        %4077 = vmatprep.mubr.bf16.mxu0 0
        %4078 = vmatmul.mubr.bf16.gmra.mxu0 %v3647
        %v4079 = vpop.f32.mrf.mxu0
        %v4080 = vadd.f32 %v3693, %v4079
        %v4081 = vpop.f32.mrf.mxu0
        %v4082 = vadd.f32 %v3697, %v4081
        %v4083 = vpop.f32.mrf.mxu0
        %v4084 = vadd.f32 %v3693, %v4083
        %v4085 = vpop.f32.mrf.mxu0
        %v4086 = vadd.f32 %v3697, %v4085
        %4087 = vdwg.mxu0
        %v4088 = vxor.u32 %v3897, 2147483648
        %v4089 = vxor.u32 %v3899, 2147483648
        %v4090 = vxor.u32 %v4010, 2147483648
        %v4091 = vxor.u32 %v4012, 2147483648
        %v4092 = vxor.u32 %v3901, 2147483648
        %v4093 = vxor.u32 %v3903, 2147483648
        %v4094 = vxor.u32 %v4014, 2147483648
        %v4095 = vxor.u32 %v4016, 2147483648
        %v4096 = vxor.u32 %v3907, 2147483648
        %v4097 = vxor.u32 %v3909, 2147483648
        %v4098 = vxor.u32 %v4020, 2147483648
        %v4099 = vxor.u32 %v4022, 2147483648
        %v4100 = vxor.u32 %v3911, 2147483648
        %v4101 = vxor.u32 %v3913, 2147483648
        %v4102 = vxor.u32 %v4024, 2147483648
        %v4103 = vxor.u32 %v4026, 2147483648
        %v4104 = vxor.u32 %v3917, 2147483648
        %v4105 = vxor.u32 %v3919, 2147483648
        %v4106 = vxor.u32 %v4030, 2147483648
        %v4107 = vxor.u32 %v4032, 2147483648
        %v4108 = vxor.u32 %v3921, 2147483648
        %v4109 = vxor.u32 %v3923, 2147483648
        %v4110 = vxor.u32 %v4034, 2147483648
        %v4111 = vxor.u32 %v4036, 2147483648
        %v4112 = vxor.u32 %v3927, 2147483648
        %v4113 = vxor.u32 %v3929, 2147483648
        %v4114 = vxor.u32 %v4040, 2147483648
        %v4115 = vxor.u32 %v4042, 2147483648
        %v4116 = vxor.u32 %v3931, 2147483648
        %v4117 = vxor.u32 %v3933, 2147483648
        %v4118 = vxor.u32 %v4044, 2147483648
        %v4119 = vxor.u32 %v4046, 2147483648
        %v4120 = vxor.u32 %v3937, 2147483648
        %v4121 = vxor.u32 %v3939, 2147483648
        %v4122 = vxor.u32 %v4050, 2147483648
        %v4123 = vxor.u32 %v4052, 2147483648
        %v4124 = vxor.u32 %v3941, 2147483648
        %v4125 = vxor.u32 %v3943, 2147483648
        %v4126 = vxor.u32 %v4054, 2147483648
        %v4127 = vxor.u32 %v4056, 2147483648
        %v4128 = vxor.u32 %v3947, 2147483648
        %v4129 = vxor.u32 %v3949, 2147483648
        %v4130 = vxor.u32 %v4060, 2147483648
        %v4131 = vxor.u32 %v4062, 2147483648
        %v4132 = vxor.u32 %v3951, 2147483648
        %v4133 = vxor.u32 %v3953, 2147483648
        %v4134 = vxor.u32 %v4064, 2147483648
        %v4135 = vxor.u32 %v4066, 2147483648
        %v4136 = vxor.u32 %v3957, 2147483648
        %v4137 = vxor.u32 %v3959, 2147483648
        %v4138 = vxor.u32 %v4070, 2147483648
        %v4139 = vxor.u32 %v4072, 2147483648
        %v4140 = vxor.u32 %v3961, 2147483648
        %v4141 = vxor.u32 %v3963, 2147483648
        %v4142 = vxor.u32 %v4074, 2147483648
        %v4143 = vxor.u32 %v4076, 2147483648
        %v4144 = vxor.u32 %v3967, 2147483648
        %v4145 = vxor.u32 %v3969, 2147483648
        %v4146 = vxor.u32 %v4080, 2147483648
        %v4147 = vxor.u32 %v4082, 2147483648
        %v4148 = vxor.u32 %v3971, 2147483648
        %v4149 = vxor.u32 %v3973, 2147483648
        %v4150 = vxor.u32 %v4084, 2147483648
        %v4151 = vxor.u32 %v4086, 2147483648
        %v4152 = vmul.f32 %v4088, 1.442695
        %v4153 = vpow.pop %v4152
        %v4154 = vmul.f32 %v4089, 1.442695
        %v4155 = vpow.pop %v4154
        %v4156 = vmul.f32 %v4090, 1.442695
        %v4157 = vpow.pop %v4156
        %v4158 = vmul.f32 %v4091, 1.442695
        %v4159 = vpow.pop %v4158
        %v4160 = vmul.f32 %v4092, 1.442695
        %v4161 = vpow.pop %v4160
        %v4162 = vmul.f32 %v4093, 1.442695
        %v4163 = vpow.pop %v4162
        %v4164 = vmul.f32 %v4094, 1.442695
        %v4165 = vpow.pop %v4164
        %v4166 = vmul.f32 %v4095, 1.442695
        %v4167 = vpow.pop %v4166
        %v4168 = vmul.f32 %v4096, 1.442695
        %v4169 = vpow.pop %v4168
        %v4170 = vmul.f32 %v4097, 1.442695
        %v4171 = vpow.pop %v4170
        %v4172 = vmul.f32 %v4098, 1.442695
        %v4173 = vpow.pop %v4172
        %v4174 = vmul.f32 %v4099, 1.442695
        %v4175 = vpow.pop %v4174
        %v4176 = vmul.f32 %v4100, 1.442695
        %v4177 = vpow.pop %v4176
        %v4178 = vmul.f32 %v4101, 1.442695
        %v4179 = vpow.pop %v4178
        %v4180 = vmul.f32 %v4102, 1.442695
        %v4181 = vpow.pop %v4180
        %v4182 = vmul.f32 %v4103, 1.442695
        %v4183 = vpow.pop %v4182
        %v4184 = vmul.f32 %v4104, 1.442695
        %v4185 = vpow.pop %v4184
        %v4186 = vmul.f32 %v4105, 1.442695
        %v4187 = vpow.pop %v4186
        %v4188 = vmul.f32 %v4106, 1.442695
        %v4189 = vpow.pop %v4188
        %v4190 = vmul.f32 %v4107, 1.442695
        %v4191 = vpow.pop %v4190
        %v4192 = vmul.f32 %v4108, 1.442695
        %v4193 = vpow.pop %v4192
        %v4194 = vmul.f32 %v4109, 1.442695
        %v4195 = vpow.pop %v4194
        %v4196 = vmul.f32 %v4110, 1.442695
        %v4197 = vpow.pop %v4196
        %v4198 = vmul.f32 %v4111, 1.442695
        %v4199 = vpow.pop %v4198
        %v4200 = vmul.f32 %v4112, 1.442695
        %v4201 = vpow.pop %v4200
        %v4202 = vmul.f32 %v4113, 1.442695
        %v4203 = vpow.pop %v4202
        %v4204 = vmul.f32 %v4114, 1.442695
        %v4205 = vpow.pop %v4204
        %v4206 = vmul.f32 %v4115, 1.442695
        %v4207 = vpow.pop %v4206
        %v4208 = vmul.f32 %v4116, 1.442695
        %v4209 = vpow.pop %v4208
        %v4210 = vmul.f32 %v4117, 1.442695
        %v4211 = vpow.pop %v4210
        %v4212 = vmul.f32 %v4118, 1.442695
        %v4213 = vpow.pop %v4212
        %v4214 = vmul.f32 %v4119, 1.442695
        %v4215 = vpow.pop %v4214
        %v4216 = vmul.f32 %v4120, 1.442695
        %v4217 = vpow.pop %v4216
        %v4218 = vmul.f32 %v4121, 1.442695
        %v4219 = vpow.pop %v4218
        %v4220 = vmul.f32 %v4122, 1.442695
        %v4221 = vpow.pop %v4220
        %v4222 = vmul.f32 %v4123, 1.442695
        %v4223 = vpow.pop %v4222
        %v4224 = vmul.f32 %v4124, 1.442695
        %v4225 = vpow.pop %v4224
        %v4226 = vmul.f32 %v4125, 1.442695
        %v4227 = vpow.pop %v4226
        %v4228 = vmul.f32 %v4126, 1.442695
        %v4229 = vpow.pop %v4228
        %v4230 = vmul.f32 %v4127, 1.442695
        %v4231 = vpow.pop %v4230
        %v4232 = vmul.f32 %v4128, 1.442695
        %v4233 = vpow.pop %v4232
        %v4234 = vmul.f32 %v4129, 1.442695
        %v4235 = vpow.pop %v4234
        %v4236 = vmul.f32 %v4130, 1.442695
        %v4237 = vpow.pop %v4236
        %v4238 = vmul.f32 %v4131, 1.442695
        %v4239 = vpow.pop %v4238
        %v4240 = vmul.f32 %v4132, 1.442695
        %v4241 = vpow.pop %v4240
        %v4242 = vmul.f32 %v4133, 1.442695
        %v4243 = vpow.pop %v4242
        %v4244 = vmul.f32 %v4134, 1.442695
        %v4245 = vpow.pop %v4244
        %v4246 = vmul.f32 %v4135, 1.442695
        %v4247 = vpow.pop %v4246
        %v4248 = vmul.f32 %v4136, 1.442695
        %v4249 = vpow.pop %v4248
        %v4250 = vmul.f32 %v4137, 1.442695
        %v4251 = vpow.pop %v4250
        %v4252 = vmul.f32 %v4138, 1.442695
        %v4253 = vpow.pop %v4252
        %v4254 = vmul.f32 %v4139, 1.442695
        %v4255 = vpow.pop %v4254
        %v4256 = vmul.f32 %v4140, 1.442695
        %v4257 = vpow.pop %v4256
        %v4258 = vmul.f32 %v4141, 1.442695
        %v4259 = vpow.pop %v4258
        %v4260 = vmul.f32 %v4142, 1.442695
        %v4261 = vpow.pop %v4260
        %v4262 = vmul.f32 %v4143, 1.442695
        %v4263 = vpow.pop %v4262
        %v4264 = vmul.f32 %v4144, 1.442695
        %v4265 = vpow.pop %v4264
        %v4266 = vmul.f32 %v4145, 1.442695
        %v4267 = vpow.pop %v4266
        %v4268 = vmul.f32 %v4146, 1.442695
        %v4269 = vpow.pop %v4268
        %v4270 = vmul.f32 %v4147, 1.442695
        %v4271 = vpow.pop %v4270
        %v4272 = vmul.f32 %v4148, 1.442695
        %v4273 = vpow.pop %v4272
        %v4274 = vmul.f32 %v4149, 1.442695
        %v4275 = vpow.pop %v4274
        %v4276 = vmul.f32 %v4150, 1.442695
        %v4277 = vpow.pop %v4276
        %v4278 = vmul.f32 %v4151, 1.442695
        %v4279 = vpow.pop %v4278
        %v4280 = vadd.f32 %v4153, 1.0
        %v4281 = vadd.f32 %v4155, 1.0
        %v4282 = vadd.f32 %v4157, 1.0
        %v4283 = vadd.f32 %v4159, 1.0
        %v4284 = vadd.f32 %v4161, 1.0
        %v4285 = vadd.f32 %v4163, 1.0
        %v4286 = vadd.f32 %v4165, 1.0
        %v4287 = vadd.f32 %v4167, 1.0
        %v4288 = vadd.f32 %v4169, 1.0
        %v4289 = vadd.f32 %v4171, 1.0
        %v4290 = vadd.f32 %v4173, 1.0
        %v4291 = vadd.f32 %v4175, 1.0
        %v4292 = vadd.f32 %v4177, 1.0
        %v4293 = vadd.f32 %v4179, 1.0
        %v4294 = vadd.f32 %v4181, 1.0
        %v4295 = vadd.f32 %v4183, 1.0
        %v4296 = vadd.f32 %v4185, 1.0
        %v4297 = vadd.f32 %v4187, 1.0
        %v4298 = vadd.f32 %v4189, 1.0
        %v4299 = vadd.f32 %v4191, 1.0
        %v4300 = vadd.f32 %v4193, 1.0
        %v4301 = vadd.f32 %v4195, 1.0
        %v4302 = vadd.f32 %v4197, 1.0
        %v4303 = vadd.f32 %v4199, 1.0
        %v4304 = vadd.f32 %v4201, 1.0
        %v4305 = vadd.f32 %v4203, 1.0
        %v4306 = vadd.f32 %v4205, 1.0
        %v4307 = vadd.f32 %v4207, 1.0
        %v4308 = vadd.f32 %v4209, 1.0
        %v4309 = vadd.f32 %v4211, 1.0
        %v4310 = vadd.f32 %v4213, 1.0
        %v4311 = vadd.f32 %v4215, 1.0
        %v4312 = vadd.f32 %v4217, 1.0
        %v4313 = vadd.f32 %v4219, 1.0
        %v4314 = vadd.f32 %v4221, 1.0
        %v4315 = vadd.f32 %v4223, 1.0
        %v4316 = vadd.f32 %v4225, 1.0
        %v4317 = vadd.f32 %v4227, 1.0
        %v4318 = vadd.f32 %v4229, 1.0
        %v4319 = vadd.f32 %v4231, 1.0
        %v4320 = vadd.f32 %v4233, 1.0
        %v4321 = vadd.f32 %v4235, 1.0
        %v4322 = vadd.f32 %v4237, 1.0
        %v4323 = vadd.f32 %v4239, 1.0
        %v4324 = vadd.f32 %v4241, 1.0
        %v4325 = vadd.f32 %v4243, 1.0
        %v4326 = vadd.f32 %v4245, 1.0
        %v4327 = vadd.f32 %v4247, 1.0
        %v4328 = vadd.f32 %v4249, 1.0
        %v4329 = vadd.f32 %v4251, 1.0
        %v4330 = vadd.f32 %v4253, 1.0
        %v4331 = vadd.f32 %v4255, 1.0
        %v4332 = vadd.f32 %v4257, 1.0
        %v4333 = vadd.f32 %v4259, 1.0
        %v4334 = vadd.f32 %v4261, 1.0
        %v4335 = vadd.f32 %v4263, 1.0
        %v4336 = vadd.f32 %v4265, 1.0
        %v4337 = vadd.f32 %v4267, 1.0
        %v4338 = vadd.f32 %v4269, 1.0
        %v4339 = vadd.f32 %v4271, 1.0
        %v4340 = vadd.f32 %v4273, 1.0
        %v4341 = vadd.f32 %v4275, 1.0
        %v4342 = vadd.f32 %v4277, 1.0
        %v4343 = vadd.f32 %v4279, 1.0
        %v4344 = vrcp.pop %v4280
        %v4345 = vmul.f32 1.0, %v4344
        %v4346 = vrcp.pop %v4281
        %v4347 = vmul.f32 1.0, %v4346
        %v4348 = vrcp.pop %v4282
        %v4349 = vmul.f32 1.0, %v4348
        %v4350 = vrcp.pop %v4283
        %v4351 = vmul.f32 1.0, %v4350
        %v4352 = vrcp.pop %v4284
        %v4353 = vmul.f32 1.0, %v4352
        %v4354 = vrcp.pop %v4285
        %v4355 = vmul.f32 1.0, %v4354
        %v4356 = vrcp.pop %v4286
        %v4357 = vmul.f32 1.0, %v4356
        %v4358 = vrcp.pop %v4287
        %v4359 = vmul.f32 1.0, %v4358
        %v4360 = vrcp.pop %v4288
        %v4361 = vmul.f32 1.0, %v4360
        %v4362 = vrcp.pop %v4289
        %v4363 = vmul.f32 1.0, %v4362
        %v4364 = vrcp.pop %v4290
        %v4365 = vmul.f32 1.0, %v4364
        %v4366 = vrcp.pop %v4291
        %v4367 = vmul.f32 1.0, %v4366
        %v4368 = vrcp.pop %v4292
        %v4369 = vmul.f32 1.0, %v4368
        %v4370 = vrcp.pop %v4293
        %v4371 = vmul.f32 1.0, %v4370
        %v4372 = vrcp.pop %v4294
        %v4373 = vmul.f32 1.0, %v4372
        %v4374 = vrcp.pop %v4295
        %v4375 = vmul.f32 1.0, %v4374
        %v4376 = vrcp.pop %v4296
        %v4377 = vmul.f32 1.0, %v4376
        %v4378 = vrcp.pop %v4297
        %v4379 = vmul.f32 1.0, %v4378
        %v4380 = vrcp.pop %v4298
        %v4381 = vmul.f32 1.0, %v4380
        %v4382 = vrcp.pop %v4299
        %v4383 = vmul.f32 1.0, %v4382
        %v4384 = vrcp.pop %v4300
        %v4385 = vmul.f32 1.0, %v4384
        %v4386 = vrcp.pop %v4301
        %v4387 = vmul.f32 1.0, %v4386
        %v4388 = vrcp.pop %v4302
        %v4389 = vmul.f32 1.0, %v4388
        %v4390 = vrcp.pop %v4303
        %v4391 = vmul.f32 1.0, %v4390
        %v4392 = vrcp.pop %v4304
        %v4393 = vmul.f32 1.0, %v4392
        %v4394 = vrcp.pop %v4305
        %v4395 = vmul.f32 1.0, %v4394
        %v4396 = vrcp.pop %v4306
        %v4397 = vmul.f32 1.0, %v4396
        %v4398 = vrcp.pop %v4307
        %v4399 = vmul.f32 1.0, %v4398
        %v4400 = vrcp.pop %v4308
        %v4401 = vmul.f32 1.0, %v4400
        %v4402 = vrcp.pop %v4309
        %v4403 = vmul.f32 1.0, %v4402
        %v4404 = vrcp.pop %v4310
        %v4405 = vmul.f32 1.0, %v4404
        %v4406 = vrcp.pop %v4311
        %v4407 = vmul.f32 1.0, %v4406
        %v4408 = vrcp.pop %v4312
        %v4409 = vmul.f32 1.0, %v4408
        %v4410 = vrcp.pop %v4313
        %v4411 = vmul.f32 1.0, %v4410
        %v4412 = vrcp.pop %v4314
        %v4413 = vmul.f32 1.0, %v4412
        %v4414 = vrcp.pop %v4315
        %v4415 = vmul.f32 1.0, %v4414
        %v4416 = vrcp.pop %v4316
        %v4417 = vmul.f32 1.0, %v4416
        %v4418 = vrcp.pop %v4317
        %v4419 = vmul.f32 1.0, %v4418
        %v4420 = vrcp.pop %v4318
        %v4421 = vmul.f32 1.0, %v4420
        %v4422 = vrcp.pop %v4319
        %v4423 = vmul.f32 1.0, %v4422
        %v4424 = vrcp.pop %v4320
        %v4425 = vmul.f32 1.0, %v4424
        %v4426 = vrcp.pop %v4321
        %v4427 = vmul.f32 1.0, %v4426
        %v4428 = vrcp.pop %v4322
        %v4429 = vmul.f32 1.0, %v4428
        %v4430 = vrcp.pop %v4323
        %v4431 = vmul.f32 1.0, %v4430
        %v4432 = vrcp.pop %v4324
        %v4433 = vmul.f32 1.0, %v4432
        %v4434 = vrcp.pop %v4325
        %v4435 = vmul.f32 1.0, %v4434
        %v4436 = vrcp.pop %v4326
        %v4437 = vmul.f32 1.0, %v4436
        %v4438 = vrcp.pop %v4327
        %v4439 = vmul.f32 1.0, %v4438
        %v4440 = vrcp.pop %v4328
        %v4441 = vmul.f32 1.0, %v4440
        %v4442 = vrcp.pop %v4329
        %v4443 = vmul.f32 1.0, %v4442
        %v4444 = vrcp.pop %v4330
        %v4445 = vmul.f32 1.0, %v4444
        %v4446 = vrcp.pop %v4331
        %v4447 = vmul.f32 1.0, %v4446
        %v4448 = vrcp.pop %v4332
        %v4449 = vmul.f32 1.0, %v4448
        %v4450 = vrcp.pop %v4333
        %v4451 = vmul.f32 1.0, %v4450
        %v4452 = vrcp.pop %v4334
        %v4453 = vmul.f32 1.0, %v4452
        %v4454 = vrcp.pop %v4335
        %v4455 = vmul.f32 1.0, %v4454
        %v4456 = vrcp.pop %v4336
        %v4457 = vmul.f32 1.0, %v4456
        %v4458 = vrcp.pop %v4337
        %v4459 = vmul.f32 1.0, %v4458
        %v4460 = vrcp.pop %v4338
        %v4461 = vmul.f32 1.0, %v4460
        %v4462 = vrcp.pop %v4339
        %v4463 = vmul.f32 1.0, %v4462
        %v4464 = vrcp.pop %v4340
        %v4465 = vmul.f32 1.0, %v4464
        %v4466 = vrcp.pop %v4341
        %v4467 = vmul.f32 1.0, %v4466
        %v4468 = vrcp.pop %v4342
        %v4469 = vmul.f32 1.0, %v4468
        %v4470 = vrcp.pop %v4343
        %v4471 = vmul.f32 1.0, %v4470
        %v4472 = vmul.f32 %v3897, %v4345
        %v4473 = vmul.f32 %v3899, %v4347
        %v4474 = vmul.f32 %v4010, %v4349
        %v4475 = vmul.f32 %v4012, %v4351
        %v4476 = vmul.f32 %v3901, %v4353
        %v4477 = vmul.f32 %v3903, %v4355
        %v4478 = vmul.f32 %v4014, %v4357
        %v4479 = vmul.f32 %v4016, %v4359
        %v4480 = vmul.f32 %v3907, %v4361
        %v4481 = vmul.f32 %v3909, %v4363
        %v4482 = vmul.f32 %v4020, %v4365
        %v4483 = vmul.f32 %v4022, %v4367
        %v4484 = vmul.f32 %v3911, %v4369
        %v4485 = vmul.f32 %v3913, %v4371
        %v4486 = vmul.f32 %v4024, %v4373
        %v4487 = vmul.f32 %v4026, %v4375
        %v4488 = vmul.f32 %v3917, %v4377
        %v4489 = vmul.f32 %v3919, %v4379
        %v4490 = vmul.f32 %v4030, %v4381
        %v4491 = vmul.f32 %v4032, %v4383
        %v4492 = vmul.f32 %v3921, %v4385
        %v4493 = vmul.f32 %v3923, %v4387
        %v4494 = vmul.f32 %v4034, %v4389
        %v4495 = vmul.f32 %v4036, %v4391
        %v4496 = vmul.f32 %v3927, %v4393
        %v4497 = vmul.f32 %v3929, %v4395
        %v4498 = vmul.f32 %v4040, %v4397
        %v4499 = vmul.f32 %v4042, %v4399
        %v4500 = vmul.f32 %v3931, %v4401
        %v4501 = vmul.f32 %v3933, %v4403
        %v4502 = vmul.f32 %v4044, %v4405
        %v4503 = vmul.f32 %v4046, %v4407
        %v4504 = vmul.f32 %v3937, %v4409
        %v4505 = vmul.f32 %v3939, %v4411
        %v4506 = vmul.f32 %v4050, %v4413
        %v4507 = vmul.f32 %v4052, %v4415
        %v4508 = vmul.f32 %v3941, %v4417
        %v4509 = vmul.f32 %v3943, %v4419
        %v4510 = vmul.f32 %v4054, %v4421
        %v4511 = vmul.f32 %v4056, %v4423
        %v4512 = vmul.f32 %v3947, %v4425
        %v4513 = vmul.f32 %v3949, %v4427
        %v4514 = vmul.f32 %v4060, %v4429
        %v4515 = vmul.f32 %v4062, %v4431
        %v4516 = vmul.f32 %v3951, %v4433
        %v4517 = vmul.f32 %v3953, %v4435
        %v4518 = vmul.f32 %v4064, %v4437
        %v4519 = vmul.f32 %v4066, %v4439
        %v4520 = vmul.f32 %v3957, %v4441
        %v4521 = vmul.f32 %v3959, %v4443
        %v4522 = vmul.f32 %v4070, %v4445
        %v4523 = vmul.f32 %v4072, %v4447
        %v4524 = vmul.f32 %v3961, %v4449
        %v4525 = vmul.f32 %v3963, %v4451
        %v4526 = vmul.f32 %v4074, %v4453
        %v4527 = vmul.f32 %v4076, %v4455
        %v4528 = vmul.f32 %v3967, %v4457
        %v4529 = vmul.f32 %v3969, %v4459
        %v4530 = vmul.f32 %v4080, %v4461
        %v4531 = vmul.f32 %v4082, %v4463
        %v4532 = vmul.f32 %v3971, %v4465
        %v4533 = vmul.f32 %v3973, %v4467
        %v4534 = vmul.f32 %v4084, %v4469
        %v4535 = vmul.f32 %v4086, %v4471
        %v4536 = vpack.c.bf16 %v4476, %v4472
        %v4537 = vpack.c.bf16 %v4477, %v4473
        %v4538 = vpack.c.bf16 %v4478, %v4474
        %v4539 = vpack.c.bf16 %v4479, %v4475
        %v4540 = vpack.c.bf16 %v4484, %v4480
        %v4541 = vpack.c.bf16 %v4485, %v4481
        %v4542 = vpack.c.bf16 %v4486, %v4482
        %v4543 = vpack.c.bf16 %v4487, %v4483
        %v4544 = vpack.c.bf16 %v4492, %v4488
        %v4545 = vpack.c.bf16 %v4493, %v4489
        %v4546 = vpack.c.bf16 %v4494, %v4490
        %v4547 = vpack.c.bf16 %v4495, %v4491
        %v4548 = vpack.c.bf16 %v4500, %v4496
        %v4549 = vpack.c.bf16 %v4501, %v4497
        %v4550 = vpack.c.bf16 %v4502, %v4498
        %v4551 = vpack.c.bf16 %v4503, %v4499
        %v4552 = vpack.c.bf16 %v4508, %v4504
        %v4553 = vpack.c.bf16 %v4509, %v4505
        %v4554 = vpack.c.bf16 %v4510, %v4506
        %v4555 = vpack.c.bf16 %v4511, %v4507
        %v4556 = vpack.c.bf16 %v4516, %v4512
        %v4557 = vpack.c.bf16 %v4517, %v4513
        %v4558 = vpack.c.bf16 %v4518, %v4514
        %v4559 = vpack.c.bf16 %v4519, %v4515
        %v4560 = vpack.c.bf16 %v4524, %v4520
        %v4561 = vpack.c.bf16 %v4525, %v4521
        %v4562 = vpack.c.bf16 %v4526, %v4522
        %v4563 = vpack.c.bf16 %v4527, %v4523
        %v4564 = vpack.c.bf16 %v4532, %v4528
        %v4565 = vpack.c.bf16 %v4533, %v4529
        %v4566 = vpack.c.bf16 %v4534, %v4530
        %v4567 = vpack.c.bf16 %v4535, %v4531
        %v4568 = vld [vmem:[#allocation7] sm:$0xff]
        %v4569 = vld [vmem:[#allocation7 + $0x8] sm:$0xff]
        %v4570 = vld [vmem:[#allocation7 + $0x10] sm:$0xff]
        %v4571 = vld [vmem:[#allocation7 + $0x18] sm:$0xff]
        %v4572 = vld [vmem:[#allocation7 + $0x20] sm:$0xff]
        %v4573 = vld [vmem:[#allocation7 + $0x28] sm:$0xff]
        %v4574 = vld [vmem:[#allocation7 + $0x30] sm:$0xff]
        %v4575 = vld [vmem:[#allocation7 + $0x38] sm:$0xff]
        %v4576 = vld [vmem:[#allocation7 + $0x40] sm:$0xff]
        %v4577 = vld [vmem:[#allocation7 + $0x48] sm:$0xff]
        %v4578 = vld [vmem:[#allocation7 + $0x50] sm:$0xff]
        %v4579 = vld [vmem:[#allocation7 + $0x58] sm:$0xff]
        %v4580 = vld [vmem:[#allocation7 + $0x60] sm:$0xff]
        %v4581 = vld [vmem:[#allocation7 + $0x68] sm:$0xff]
        %v4582 = vld [vmem:[#allocation7 + $0x70] sm:$0xff]
        %v4583 = vld [vmem:[#allocation7 + $0x78] sm:$0xff]
        %v4584 = vld [vmem:[#allocation7 + $0x80] sm:$0xff]
        %v4585 = vld [vmem:[#allocation7 + $0x88] sm:$0xff]
        %v4586 = vld [vmem:[#allocation7 + $0x90] sm:$0xff]
        %v4587 = vld [vmem:[#allocation7 + $0x98] sm:$0xff]
        %v4588 = vld [vmem:[#allocation7 + $0xa0] sm:$0xff]
        %v4589 = vld [vmem:[#allocation7 + $0xa8] sm:$0xff]
        %v4590 = vld [vmem:[#allocation7 + $0xb0] sm:$0xff]
        %v4591 = vld [vmem:[#allocation7 + $0xb8] sm:$0xff]
        %v4592 = vld [vmem:[#allocation7 + $0xc0] sm:$0xff]
        %v4593 = vld [vmem:[#allocation7 + $0xc8] sm:$0xff]
        %v4594 = vld [vmem:[#allocation7 + $0xd0] sm:$0xff]
        %v4595 = vld [vmem:[#allocation7 + $0xd8] sm:$0xff]
        %v4596 = vld [vmem:[#allocation7 + $0xe0] sm:$0xff]
        %v4597 = vld [vmem:[#allocation7 + $0xe8] sm:$0xff]
        %v4598 = vld [vmem:[#allocation7 + $0xf0] sm:$0xff]
        %v4599 = vld [vmem:[#allocation7 + $0xf8] sm:$0xff]
        %v4600 = vld [vmem:[#allocation7 + $0x100] sm:$0xff]
        %v4601 = vld [vmem:[#allocation7 + $0x108] sm:$0xff]
        %v4602 = vld [vmem:[#allocation7 + $0x110] sm:$0xff]
        %v4603 = vld [vmem:[#allocation7 + $0x118] sm:$0xff]
        %v4604 = vld [vmem:[#allocation7 + $0x120] sm:$0xff]
        %v4605 = vld [vmem:[#allocation7 + $0x128] sm:$0xff]
        %v4606 = vld [vmem:[#allocation7 + $0x130] sm:$0xff]
        %v4607 = vld [vmem:[#allocation7 + $0x138] sm:$0xff]
        %v4608 = vld [vmem:[#allocation7 + $0x140] sm:$0xff]
        %v4609 = vld [vmem:[#allocation7 + $0x148] sm:$0xff]
        %v4610 = vld [vmem:[#allocation7 + $0x150] sm:$0xff]
        %v4611 = vld [vmem:[#allocation7 + $0x158] sm:$0xff]
        %v4612 = vld [vmem:[#allocation7 + $0x160] sm:$0xff]
        %v4613 = vld [vmem:[#allocation7 + $0x168] sm:$0xff]
        %v4614 = vld [vmem:[#allocation7 + $0x170] sm:$0xff]
        %v4615 = vld [vmem:[#allocation7 + $0x178] sm:$0xff]
        %v4616 = vld [vmem:[#allocation7 + $0x180] sm:$0xff]
        %v4617 = vld [vmem:[#allocation7 + $0x188] sm:$0xff]
        %v4618 = vld [vmem:[#allocation7 + $0x190] sm:$0xff]
        %v4619 = vld [vmem:[#allocation7 + $0x198] sm:$0xff]
        %v4620 = vld [vmem:[#allocation7 + $0x1a0] sm:$0xff]
        %v4621 = vld [vmem:[#allocation7 + $0x1a8] sm:$0xff]
        %v4622 = vld [vmem:[#allocation7 + $0x1b0] sm:$0xff]
        %v4623 = vld [vmem:[#allocation7 + $0x1b8] sm:$0xff]
        %v4624 = vld [vmem:[#allocation7 + $0x1c0] sm:$0xff]
        %v4625 = vld [vmem:[#allocation7 + $0x1c8] sm:$0xff]
        %v4626 = vld [vmem:[#allocation7 + $0x1d0] sm:$0xff]
        %v4627 = vld [vmem:[#allocation7 + $0x1d8] sm:$0xff]
        %v4628 = vld [vmem:[#allocation7 + $0x1e0] sm:$0xff]
        %v4629 = vld [vmem:[#allocation7 + $0x1e8] sm:$0xff]
        %v4630 = vld [vmem:[#allocation7 + $0x1f0] sm:$0xff]
        %v4631 = vld [vmem:[#allocation7 + $0x1f8] sm:$0xff]
        %v4632 = vld [vmem:[#allocation7 + $0x200] sm:$0xff]
        %v4633 = vld [vmem:[#allocation7 + $0x208] sm:$0xff]
        %v4634 = vld [vmem:[#allocation7 + $0x210] sm:$0xff]
        %v4635 = vld [vmem:[#allocation7 + $0x218] sm:$0xff]
        %v4636 = vld [vmem:[#allocation7 + $0x220] sm:$0xff]
        %v4637 = vld [vmem:[#allocation7 + $0x228] sm:$0xff]
        %v4638 = vld [vmem:[#allocation7 + $0x230] sm:$0xff]
        %v4639 = vld [vmem:[#allocation7 + $0x238] sm:$0xff]
        %v4640 = vld [vmem:[#allocation7 + $0x240] sm:$0xff]
        %v4641 = vld [vmem:[#allocation7 + $0x248] sm:$0xff]
        %v4642 = vld [vmem:[#allocation7 + $0x250] sm:$0xff]
        %v4643 = vld [vmem:[#allocation7 + $0x258] sm:$0xff]
        %v4644 = vld [vmem:[#allocation7 + $0x260] sm:$0xff]
        %v4645 = vld [vmem:[#allocation7 + $0x268] sm:$0xff]
        %v4646 = vld [vmem:[#allocation7 + $0x270] sm:$0xff]
        %v4647 = vld [vmem:[#allocation7 + $0x278] sm:$0xff]
        %v4648 = vld [vmem:[#allocation7 + $0x280] sm:$0xff]
        %v4649 = vld [vmem:[#allocation7 + $0x288] sm:$0xff]
        %v4650 = vld [vmem:[#allocation7 + $0x290] sm:$0xff]
        %v4651 = vld [vmem:[#allocation7 + $0x298] sm:$0xff]
        %v4652 = vld [vmem:[#allocation7 + $0x2a0] sm:$0xff]
        %v4653 = vld [vmem:[#allocation7 + $0x2a8] sm:$0xff]
        %v4654 = vld [vmem:[#allocation7 + $0x2b0] sm:$0xff]
        %v4655 = vld [vmem:[#allocation7 + $0x2b8] sm:$0xff]
        %v4656 = vld [vmem:[#allocation7 + $0x2c0] sm:$0xff]
        %v4657 = vld [vmem:[#allocation7 + $0x2c8] sm:$0xff]
        %v4658 = vld [vmem:[#allocation7 + $0x2d0] sm:$0xff]
        %v4659 = vld [vmem:[#allocation7 + $0x2d8] sm:$0xff]
        %v4660 = vld [vmem:[#allocation7 + $0x2e0] sm:$0xff]
        %v4661 = vld [vmem:[#allocation7 + $0x2e8] sm:$0xff]
        %v4662 = vld [vmem:[#allocation7 + $0x2f0] sm:$0xff]
        %v4663 = vld [vmem:[#allocation7 + $0x2f8] sm:$0xff]
        %v4664 = vld [vmem:[#allocation7 + $0x300] sm:$0xff]
        %v4665 = vld [vmem:[#allocation7 + $0x308] sm:$0xff]
        %v4666 = vld [vmem:[#allocation7 + $0x310] sm:$0xff]
        %v4667 = vld [vmem:[#allocation7 + $0x318] sm:$0xff]
        %v4668 = vld [vmem:[#allocation7 + $0x320] sm:$0xff]
        %v4669 = vld [vmem:[#allocation7 + $0x328] sm:$0xff]
        %v4670 = vld [vmem:[#allocation7 + $0x330] sm:$0xff]
        %v4671 = vld [vmem:[#allocation7 + $0x338] sm:$0xff]
        %v4672 = vld [vmem:[#allocation7 + $0x340] sm:$0xff]
        %v4673 = vld [vmem:[#allocation7 + $0x348] sm:$0xff]
        %v4674 = vld [vmem:[#allocation7 + $0x350] sm:$0xff]
        %v4675 = vld [vmem:[#allocation7 + $0x358] sm:$0xff]
        %v4676 = vld [vmem:[#allocation7 + $0x360] sm:$0xff]
        %v4677 = vld [vmem:[#allocation7 + $0x368] sm:$0xff]
        %v4678 = vld [vmem:[#allocation7 + $0x370] sm:$0xff]
        %v4679 = vld [vmem:[#allocation7 + $0x378] sm:$0xff]
        %v4680 = vld [vmem:[#allocation7 + $0x380] sm:$0xff]
        %v4681 = vld [vmem:[#allocation7 + $0x388] sm:$0xff]
        %v4682 = vld [vmem:[#allocation7 + $0x390] sm:$0xff]
        %v4683 = vld [vmem:[#allocation7 + $0x398] sm:$0xff]
        %v4684 = vld [vmem:[#allocation7 + $0x3a0] sm:$0xff]
        %v4685 = vld [vmem:[#allocation7 + $0x3a8] sm:$0xff]
        %v4686 = vld [vmem:[#allocation7 + $0x3b0] sm:$0xff]
        %v4687 = vld [vmem:[#allocation7 + $0x3b8] sm:$0xff]
        %v4688 = vld [vmem:[#allocation7 + $0x3c0] sm:$0xff]
        %v4689 = vld [vmem:[#allocation7 + $0x3c8] sm:$0xff]
        %v4690 = vld [vmem:[#allocation7 + $0x3d0] sm:$0xff]
        %v4691 = vld [vmem:[#allocation7 + $0x3d8] sm:$0xff]
        %v4692 = vld [vmem:[#allocation7 + $0x3e0] sm:$0xff]
        %v4693 = vld [vmem:[#allocation7 + $0x3e8] sm:$0xff]
        %v4694 = vld [vmem:[#allocation7 + $0x3f0] sm:$0xff]
        %v4695 = vld [vmem:[#allocation7 + $0x3f8] sm:$0xff]
        %v4696 = vld [vmem:[#allocation8] sm:$0xf]
        %v4698 = vlaneseq
        %v4699 = vshrl.u32 %v4698, 7
        %v4700 = vsub.s32 0, %v4699
        %v4701 = vrot.slane %v4696, %v4700
        %v4702 = vlaneseq
        %v4703 = vshrl.u32 %v4702, 7
        %v4704 = vsub.s32 1, %v4703
        %v4705 = vrot.slane %v4696, %v4704
        %v4706 = vlaneseq
        %v4707 = vshrl.u32 %v4706, 7
        %v4708 = vsub.s32 2, %v4707
        %v4709 = vrot.slane %v4696, %v4708
        %v4710 = vlaneseq
        %v4711 = vshrl.u32 %v4710, 7
        %v4712 = vsub.s32 3, %v4711
        %v4713 = vrot.slane %v4696, %v4712
        %v4846 = vunpack.c.l.b16 %v4568
        %v4847 = vunpack.c.h.b16 %v4568
        %v4848 = vunpack.c.l.b16 %v4569
        %v4849 = vunpack.c.h.b16 %v4569
        %v4850 = vunpack.c.l.b16 %v4570
        %v4851 = vunpack.c.h.b16 %v4570
        %v4852 = vunpack.c.l.b16 %v4571
        %v4853 = vunpack.c.h.b16 %v4571
        %v4854 = vunpack.c.l.b16 %v4572
        %v4855 = vunpack.c.h.b16 %v4572
        %v4856 = vunpack.c.l.b16 %v4573
        %v4857 = vunpack.c.h.b16 %v4573
        %v4858 = vunpack.c.l.b16 %v4574
        %v4859 = vunpack.c.h.b16 %v4574
        %v4860 = vunpack.c.l.b16 %v4575
        %v4861 = vunpack.c.h.b16 %v4575
        %v4862 = vunpack.c.l.b16 %v4576
        %v4863 = vunpack.c.h.b16 %v4576
        %v4864 = vunpack.c.l.b16 %v4577
        %v4865 = vunpack.c.h.b16 %v4577
        %v4866 = vunpack.c.l.b16 %v4578
        %v4867 = vunpack.c.h.b16 %v4578
        %v4868 = vunpack.c.l.b16 %v4579
        %v4869 = vunpack.c.h.b16 %v4579
        %v4870 = vunpack.c.l.b16 %v4580
        %v4871 = vunpack.c.h.b16 %v4580
        %v4872 = vunpack.c.l.b16 %v4581
        %v4873 = vunpack.c.h.b16 %v4581
        %v4874 = vunpack.c.l.b16 %v4582
        %v4875 = vunpack.c.h.b16 %v4582
        %v4876 = vunpack.c.l.b16 %v4583
        %v4877 = vunpack.c.h.b16 %v4583
        %v4878 = vunpack.c.l.b16 %v4584
        %v4879 = vunpack.c.h.b16 %v4584
        %v4880 = vunpack.c.l.b16 %v4585
        %v4881 = vunpack.c.h.b16 %v4585
        %v4882 = vunpack.c.l.b16 %v4586
        %v4883 = vunpack.c.h.b16 %v4586
        %v4884 = vunpack.c.l.b16 %v4587
        %v4885 = vunpack.c.h.b16 %v4587
        %v4886 = vunpack.c.l.b16 %v4588
        %v4887 = vunpack.c.h.b16 %v4588
        %v4888 = vunpack.c.l.b16 %v4589
        %v4889 = vunpack.c.h.b16 %v4589
        %v4890 = vunpack.c.l.b16 %v4590
        %v4891 = vunpack.c.h.b16 %v4590
        %v4892 = vunpack.c.l.b16 %v4591
        %v4893 = vunpack.c.h.b16 %v4591
        %v4894 = vunpack.c.l.b16 %v4592
        %v4895 = vunpack.c.h.b16 %v4592
        %v4896 = vunpack.c.l.b16 %v4593
        %v4897 = vunpack.c.h.b16 %v4593
        %v4898 = vunpack.c.l.b16 %v4594
        %v4899 = vunpack.c.h.b16 %v4594
        %v4900 = vunpack.c.l.b16 %v4595
        %v4901 = vunpack.c.h.b16 %v4595
        %v4902 = vunpack.c.l.b16 %v4596
        %v4903 = vunpack.c.h.b16 %v4596
        %v4904 = vunpack.c.l.b16 %v4597
        %v4905 = vunpack.c.h.b16 %v4597
        %v4906 = vunpack.c.l.b16 %v4598
        %v4907 = vunpack.c.h.b16 %v4598
        %v4908 = vunpack.c.l.b16 %v4599
        %v4909 = vunpack.c.h.b16 %v4599
        %v4910 = vunpack.c.l.b16 %v4600
        %v4911 = vunpack.c.h.b16 %v4600
        %v4912 = vunpack.c.l.b16 %v4601
        %v4913 = vunpack.c.h.b16 %v4601
        %v4914 = vunpack.c.l.b16 %v4602
        %v4915 = vunpack.c.h.b16 %v4602
        %v4916 = vunpack.c.l.b16 %v4603
        %v4917 = vunpack.c.h.b16 %v4603
        %v4918 = vunpack.c.l.b16 %v4604
        %v4919 = vunpack.c.h.b16 %v4604
        %v4920 = vunpack.c.l.b16 %v4605
        %v4921 = vunpack.c.h.b16 %v4605
        %v4922 = vunpack.c.l.b16 %v4606
        %v4923 = vunpack.c.h.b16 %v4606
        %v4924 = vunpack.c.l.b16 %v4607
        %v4925 = vunpack.c.h.b16 %v4607
        %v4926 = vunpack.c.l.b16 %v4608
        %v4927 = vunpack.c.h.b16 %v4608
        %v4928 = vunpack.c.l.b16 %v4609
        %v4929 = vunpack.c.h.b16 %v4609
        %v4930 = vunpack.c.l.b16 %v4610
        %v4931 = vunpack.c.h.b16 %v4610
        %v4932 = vunpack.c.l.b16 %v4611
        %v4933 = vunpack.c.h.b16 %v4611
        %v4934 = vunpack.c.l.b16 %v4612
        %v4935 = vunpack.c.h.b16 %v4612
        %v4936 = vunpack.c.l.b16 %v4613
        %v4937 = vunpack.c.h.b16 %v4613
        %v4938 = vunpack.c.l.b16 %v4614
        %v4939 = vunpack.c.h.b16 %v4614
        %v4940 = vunpack.c.l.b16 %v4615
        %v4941 = vunpack.c.h.b16 %v4615
        %v4942 = vunpack.c.l.b16 %v4616
        %v4943 = vunpack.c.h.b16 %v4616
        %v4944 = vunpack.c.l.b16 %v4617
        %v4945 = vunpack.c.h.b16 %v4617
        %v4946 = vunpack.c.l.b16 %v4618
        %v4947 = vunpack.c.h.b16 %v4618
        %v4948 = vunpack.c.l.b16 %v4619
        %v4949 = vunpack.c.h.b16 %v4619
        %v4950 = vunpack.c.l.b16 %v4620
        %v4951 = vunpack.c.h.b16 %v4620
        %v4952 = vunpack.c.l.b16 %v4621
        %v4953 = vunpack.c.h.b16 %v4621
        %v4954 = vunpack.c.l.b16 %v4622
        %v4955 = vunpack.c.h.b16 %v4622
        %v4956 = vunpack.c.l.b16 %v4623
        %v4957 = vunpack.c.h.b16 %v4623
        %v4958 = vunpack.c.l.b16 %v4624
        %v4959 = vunpack.c.h.b16 %v4624
        %v4960 = vunpack.c.l.b16 %v4625
        %v4961 = vunpack.c.h.b16 %v4625
        %v4962 = vunpack.c.l.b16 %v4626
        %v4963 = vunpack.c.h.b16 %v4626
        %v4964 = vunpack.c.l.b16 %v4627
        %v4965 = vunpack.c.h.b16 %v4627
        %v4966 = vunpack.c.l.b16 %v4628
        %v4967 = vunpack.c.h.b16 %v4628
        %v4968 = vunpack.c.l.b16 %v4629
        %v4969 = vunpack.c.h.b16 %v4629
        %v4970 = vunpack.c.l.b16 %v4630
        %v4971 = vunpack.c.h.b16 %v4630
        %v4972 = vunpack.c.l.b16 %v4631
        %v4973 = vunpack.c.h.b16 %v4631
        %v4974 = vunpack.c.l.b16 %v4632
        %v4975 = vunpack.c.h.b16 %v4632
        %v4976 = vunpack.c.l.b16 %v4633
        %v4977 = vunpack.c.h.b16 %v4633
        %v4978 = vunpack.c.l.b16 %v4634
        %v4979 = vunpack.c.h.b16 %v4634
        %v4980 = vunpack.c.l.b16 %v4635
        %v4981 = vunpack.c.h.b16 %v4635
        %v4982 = vunpack.c.l.b16 %v4636
        %v4983 = vunpack.c.h.b16 %v4636
        %v4984 = vunpack.c.l.b16 %v4637
        %v4985 = vunpack.c.h.b16 %v4637
        %v4986 = vunpack.c.l.b16 %v4638
        %v4987 = vunpack.c.h.b16 %v4638
        %v4988 = vunpack.c.l.b16 %v4639
        %v4989 = vunpack.c.h.b16 %v4639
        %v4990 = vunpack.c.l.b16 %v4640
        %v4991 = vunpack.c.h.b16 %v4640
        %v4992 = vunpack.c.l.b16 %v4641
        %v4993 = vunpack.c.h.b16 %v4641
        %v4994 = vunpack.c.l.b16 %v4642
        %v4995 = vunpack.c.h.b16 %v4642
        %v4996 = vunpack.c.l.b16 %v4643
        %v4997 = vunpack.c.h.b16 %v4643
        %v4998 = vunpack.c.l.b16 %v4644
        %v4999 = vunpack.c.h.b16 %v4644
        %v5000 = vunpack.c.l.b16 %v4645
        %v5001 = vunpack.c.h.b16 %v4645
        %v5002 = vunpack.c.l.b16 %v4646
        %v5003 = vunpack.c.h.b16 %v4646
        %v5004 = vunpack.c.l.b16 %v4647
        %v5005 = vunpack.c.h.b16 %v4647
        %v5006 = vunpack.c.l.b16 %v4648
        %v5007 = vunpack.c.h.b16 %v4648
        %v5008 = vunpack.c.l.b16 %v4649
        %v5009 = vunpack.c.h.b16 %v4649
        %v5010 = vunpack.c.l.b16 %v4650
        %v5011 = vunpack.c.h.b16 %v4650
        %v5012 = vunpack.c.l.b16 %v4651
        %v5013 = vunpack.c.h.b16 %v4651
        %v5014 = vunpack.c.l.b16 %v4652
        %v5015 = vunpack.c.h.b16 %v4652
        %v5016 = vunpack.c.l.b16 %v4653
        %v5017 = vunpack.c.h.b16 %v4653
        %v5018 = vunpack.c.l.b16 %v4654
        %v5019 = vunpack.c.h.b16 %v4654
        %v5020 = vunpack.c.l.b16 %v4655
        %v5021 = vunpack.c.h.b16 %v4655
        %v5022 = vunpack.c.l.b16 %v4656
        %v5023 = vunpack.c.h.b16 %v4656
        %v5024 = vunpack.c.l.b16 %v4657
        %v5025 = vunpack.c.h.b16 %v4657
        %v5026 = vunpack.c.l.b16 %v4658
        %v5027 = vunpack.c.h.b16 %v4658
        %v5028 = vunpack.c.l.b16 %v4659
        %v5029 = vunpack.c.h.b16 %v4659
        %v5030 = vunpack.c.l.b16 %v4660
        %v5031 = vunpack.c.h.b16 %v4660
        %v5032 = vunpack.c.l.b16 %v4661
        %v5033 = vunpack.c.h.b16 %v4661
        %v5034 = vunpack.c.l.b16 %v4662
        %v5035 = vunpack.c.h.b16 %v4662
        %v5036 = vunpack.c.l.b16 %v4663
        %v5037 = vunpack.c.h.b16 %v4663
        %v5038 = vunpack.c.l.b16 %v4664
        %v5039 = vunpack.c.h.b16 %v4664
        %v5040 = vunpack.c.l.b16 %v4665
        %v5041 = vunpack.c.h.b16 %v4665
        %v5042 = vunpack.c.l.b16 %v4666
        %v5043 = vunpack.c.h.b16 %v4666
        %v5044 = vunpack.c.l.b16 %v4667
        %v5045 = vunpack.c.h.b16 %v4667
        %v5046 = vunpack.c.l.b16 %v4668
        %v5047 = vunpack.c.h.b16 %v4668
        %v5048 = vunpack.c.l.b16 %v4669
        %v5049 = vunpack.c.h.b16 %v4669
        %v5050 = vunpack.c.l.b16 %v4670
        %v5051 = vunpack.c.h.b16 %v4670
        %v5052 = vunpack.c.l.b16 %v4671
        %v5053 = vunpack.c.h.b16 %v4671
        %v5054 = vunpack.c.l.b16 %v4672
        %v5055 = vunpack.c.h.b16 %v4672
        %v5056 = vunpack.c.l.b16 %v4673
        %v5057 = vunpack.c.h.b16 %v4673
        %v5058 = vunpack.c.l.b16 %v4674
        %v5059 = vunpack.c.h.b16 %v4674
        %v5060 = vunpack.c.l.b16 %v4675
        %v5061 = vunpack.c.h.b16 %v4675
        %v5062 = vunpack.c.l.b16 %v4676
        %v5063 = vunpack.c.h.b16 %v4676
        %v5064 = vunpack.c.l.b16 %v4677
        %v5065 = vunpack.c.h.b16 %v4677
        %v5066 = vunpack.c.l.b16 %v4678
        %v5067 = vunpack.c.h.b16 %v4678
        %v5068 = vunpack.c.l.b16 %v4679
        %v5069 = vunpack.c.h.b16 %v4679
        %v5070 = vunpack.c.l.b16 %v4680
        %v5071 = vunpack.c.h.b16 %v4680
        %v5072 = vunpack.c.l.b16 %v4681
        %v5073 = vunpack.c.h.b16 %v4681
        %v5074 = vunpack.c.l.b16 %v4682
        %v5075 = vunpack.c.h.b16 %v4682
        %v5076 = vunpack.c.l.b16 %v4683
        %v5077 = vunpack.c.h.b16 %v4683
        %v5078 = vunpack.c.l.b16 %v4684
        %v5079 = vunpack.c.h.b16 %v4684
        %v5080 = vunpack.c.l.b16 %v4685
        %v5081 = vunpack.c.h.b16 %v4685
        %v5082 = vunpack.c.l.b16 %v4686
        %v5083 = vunpack.c.h.b16 %v4686
        %v5084 = vunpack.c.l.b16 %v4687
        %v5085 = vunpack.c.h.b16 %v4687
        %v5086 = vunpack.c.l.b16 %v4688
        %v5087 = vunpack.c.h.b16 %v4688
        %v5088 = vunpack.c.l.b16 %v4689
        %v5089 = vunpack.c.h.b16 %v4689
        %v5090 = vunpack.c.l.b16 %v4690
        %v5091 = vunpack.c.h.b16 %v4690
        %v5092 = vunpack.c.l.b16 %v4691
        %v5093 = vunpack.c.h.b16 %v4691
        %v5094 = vunpack.c.l.b16 %v4692
        %v5095 = vunpack.c.h.b16 %v4692
        %v5096 = vunpack.c.l.b16 %v4693
        %v5097 = vunpack.c.h.b16 %v4693
        %v5098 = vunpack.c.l.b16 %v4694
        %v5099 = vunpack.c.h.b16 %v4694
        %v5100 = vunpack.c.l.b16 %v4695
        %v5101 = vunpack.c.h.b16 %v4695
        %v5102 = vpack.c.b16 %v4850, %v4846
        %v5103 = vpack.c.b16 %v4851, %v4847
        %v5104 = vpack.c.b16 %v4852, %v4848
        %v5105 = vpack.c.b16 %v4853, %v4849
        %v5106 = vpack.c.b16 %v4858, %v4854
        %v5107 = vpack.c.b16 %v4859, %v4855
        %v5108 = vpack.c.b16 %v4860, %v4856
        %v5109 = vpack.c.b16 %v4861, %v4857
        %v5110 = vpack.c.b16 %v4866, %v4862
        %v5111 = vpack.c.b16 %v4867, %v4863
        %v5112 = vpack.c.b16 %v4868, %v4864
        %v5113 = vpack.c.b16 %v4869, %v4865
        %v5114 = vpack.c.b16 %v4874, %v4870
        %v5115 = vpack.c.b16 %v4875, %v4871
        %v5116 = vpack.c.b16 %v4876, %v4872
        %v5117 = vpack.c.b16 %v4877, %v4873
        %v5118 = vpack.c.b16 %v4882, %v4878
        %v5119 = vpack.c.b16 %v4883, %v4879
        %v5120 = vpack.c.b16 %v4884, %v4880
        %v5121 = vpack.c.b16 %v4885, %v4881
        %v5122 = vpack.c.b16 %v4890, %v4886
        %v5123 = vpack.c.b16 %v4891, %v4887
        %v5124 = vpack.c.b16 %v4892, %v4888
        %v5125 = vpack.c.b16 %v4893, %v4889
        %v5126 = vpack.c.b16 %v4898, %v4894
        %v5127 = vpack.c.b16 %v4899, %v4895
        %v5128 = vpack.c.b16 %v4900, %v4896
        %v5129 = vpack.c.b16 %v4901, %v4897
        %v5130 = vpack.c.b16 %v4906, %v4902
        %v5131 = vpack.c.b16 %v4907, %v4903
        %v5132 = vpack.c.b16 %v4908, %v4904
        %v5133 = vpack.c.b16 %v4909, %v4905
        %v5134 = vpack.c.b16 %v4914, %v4910
        %v5135 = vpack.c.b16 %v4915, %v4911
        %v5136 = vpack.c.b16 %v4916, %v4912
        %v5137 = vpack.c.b16 %v4917, %v4913
        %v5138 = vpack.c.b16 %v4922, %v4918
        %v5139 = vpack.c.b16 %v4923, %v4919
        %v5140 = vpack.c.b16 %v4924, %v4920
        %v5141 = vpack.c.b16 %v4925, %v4921
        %v5142 = vpack.c.b16 %v4930, %v4926
        %v5143 = vpack.c.b16 %v4931, %v4927
        %v5144 = vpack.c.b16 %v4932, %v4928
        %v5145 = vpack.c.b16 %v4933, %v4929
        %v5146 = vpack.c.b16 %v4938, %v4934
        %v5147 = vpack.c.b16 %v4939, %v4935
        %v5148 = vpack.c.b16 %v4940, %v4936
        %v5149 = vpack.c.b16 %v4941, %v4937
        %v5150 = vpack.c.b16 %v4946, %v4942
        %v5151 = vpack.c.b16 %v4947, %v4943
        %v5152 = vpack.c.b16 %v4948, %v4944
        %v5153 = vpack.c.b16 %v4949, %v4945
        %v5154 = vpack.c.b16 %v4954, %v4950
        %v5155 = vpack.c.b16 %v4955, %v4951
        %v5156 = vpack.c.b16 %v4956, %v4952
        %v5157 = vpack.c.b16 %v4957, %v4953
        %v5158 = vpack.c.b16 %v4962, %v4958
        %v5159 = vpack.c.b16 %v4963, %v4959
        %v5160 = vpack.c.b16 %v4964, %v4960
        %v5161 = vpack.c.b16 %v4965, %v4961
        %v5162 = vpack.c.b16 %v4970, %v4966
        %v5163 = vpack.c.b16 %v4971, %v4967
        %v5164 = vpack.c.b16 %v4972, %v4968
        %v5165 = vpack.c.b16 %v4973, %v4969
        %v5166 = vpack.c.b16 %v4978, %v4974
        %v5167 = vpack.c.b16 %v4979, %v4975
        %v5168 = vpack.c.b16 %v4980, %v4976
        %v5169 = vpack.c.b16 %v4981, %v4977
        %v5170 = vpack.c.b16 %v4986, %v4982
        %v5171 = vpack.c.b16 %v4987, %v4983
        %v5172 = vpack.c.b16 %v4988, %v4984
        %v5173 = vpack.c.b16 %v4989, %v4985
        %v5174 = vpack.c.b16 %v4994, %v4990
        %v5175 = vpack.c.b16 %v4995, %v4991
        %v5176 = vpack.c.b16 %v4996, %v4992
        %v5177 = vpack.c.b16 %v4997, %v4993
        %v5178 = vpack.c.b16 %v5002, %v4998
        %v5179 = vpack.c.b16 %v5003, %v4999
        %v5180 = vpack.c.b16 %v5004, %v5000
        %v5181 = vpack.c.b16 %v5005, %v5001
        %v5182 = vpack.c.b16 %v5010, %v5006
        %v5183 = vpack.c.b16 %v5011, %v5007
        %v5184 = vpack.c.b16 %v5012, %v5008
        %v5185 = vpack.c.b16 %v5013, %v5009
        %v5186 = vpack.c.b16 %v5018, %v5014
        %v5187 = vpack.c.b16 %v5019, %v5015
        %v5188 = vpack.c.b16 %v5020, %v5016
        %v5189 = vpack.c.b16 %v5021, %v5017
        %v5190 = vpack.c.b16 %v5026, %v5022
        %v5191 = vpack.c.b16 %v5027, %v5023
        %v5192 = vpack.c.b16 %v5028, %v5024
        %v5193 = vpack.c.b16 %v5029, %v5025
        %v5194 = vpack.c.b16 %v5034, %v5030
        %v5195 = vpack.c.b16 %v5035, %v5031
        %v5196 = vpack.c.b16 %v5036, %v5032
        %v5197 = vpack.c.b16 %v5037, %v5033
        %v5198 = vpack.c.b16 %v5042, %v5038
        %v5199 = vpack.c.b16 %v5043, %v5039
        %v5200 = vpack.c.b16 %v5044, %v5040
        %v5201 = vpack.c.b16 %v5045, %v5041
        %v5202 = vpack.c.b16 %v5050, %v5046
        %v5203 = vpack.c.b16 %v5051, %v5047
        %v5204 = vpack.c.b16 %v5052, %v5048
        %v5205 = vpack.c.b16 %v5053, %v5049
        %v5206 = vpack.c.b16 %v5058, %v5054
        %v5207 = vpack.c.b16 %v5059, %v5055
        %v5208 = vpack.c.b16 %v5060, %v5056
        %v5209 = vpack.c.b16 %v5061, %v5057
        %v5210 = vpack.c.b16 %v5066, %v5062
        %v5211 = vpack.c.b16 %v5067, %v5063
        %v5212 = vpack.c.b16 %v5068, %v5064
        %v5213 = vpack.c.b16 %v5069, %v5065
        %v5214 = vpack.c.b16 %v5074, %v5070
        %v5215 = vpack.c.b16 %v5075, %v5071
        %v5216 = vpack.c.b16 %v5076, %v5072
        %v5217 = vpack.c.b16 %v5077, %v5073
        %v5218 = vpack.c.b16 %v5082, %v5078
        %v5219 = vpack.c.b16 %v5083, %v5079
        %v5220 = vpack.c.b16 %v5084, %v5080
        %v5221 = vpack.c.b16 %v5085, %v5081
        %v5222 = vpack.c.b16 %v5090, %v5086
        %v5223 = vpack.c.b16 %v5091, %v5087
        %v5224 = vpack.c.b16 %v5092, %v5088
        %v5225 = vpack.c.b16 %v5093, %v5089
        %v5226 = vpack.c.b16 %v5098, %v5094
        %v5227 = vpack.c.b16 %v5099, %v5095
        %v5228 = vpack.c.b16 %v5100, %v5096
        %v5229 = vpack.c.b16 %v5101, %v5097
        %5358 = vmatprep.subr.bf16.mxu0 %v5131
        %5359 = vmatpush1.bf16.msra.mxu0 %v5130
        %5360 = vmatprep.subr.bf16.mxu0 %v5127
        %5361 = vmatpush1.bf16.msra.mxu0 %v5126
        %5362 = vmatprep.subr.bf16.mxu0 %v5123
        %5363 = vmatpush1.bf16.msra.mxu0 %v5122
        %5364 = vmatprep.subr.bf16.mxu0 %v5119
        %5365 = vmatpush1.bf16.msra.mxu0 %v5118
        %5366 = vmatprep.subr.bf16.mxu0 %v5115
        %5367 = vmatpush1.bf16.msra.mxu0 %v5114
        %5368 = vmatprep.subr.bf16.mxu0 %v5111
        %5369 = vmatpush1.bf16.msra.mxu0 %v5110
        %5370 = vmatprep.subr.bf16.mxu0 %v5107
        %5371 = vmatpush1.bf16.msra.mxu0 %v5106
        %5372 = vmatprep.subr.bf16.mxu0 %v5103
        %5373 = vmatpush1.bf16.msra.mxu0 %v5102
        %5374 = vmatprep.subr.bf16.mxu0 %v5163
        %5375 = vmatpush2.bf16.msra.mxu0 %v5162
        %5376 = vmatprep.subr.bf16.mxu0 %v5159
        %5377 = vmatpush2.bf16.msra.mxu0 %v5158
        %5378 = vmatprep.subr.bf16.mxu0 %v5155
        %5379 = vmatpush2.bf16.msra.mxu0 %v5154
        %5380 = vmatprep.subr.bf16.mxu0 %v5151
        %5381 = vmatpush2.bf16.msra.mxu0 %v5150
        %5382 = vmatprep.subr.bf16.mxu0 %v5147
        %5383 = vmatpush2.bf16.msra.mxu0 %v5146
        %5384 = vmatprep.subr.bf16.mxu0 %v5143
        %5385 = vmatpush2.bf16.msra.mxu0 %v5142
        %5386 = vmatprep.subr.bf16.mxu0 %v5139
        %5387 = vmatpush2.bf16.msra.mxu0 %v5138
        %5388 = vmatprep.subr.bf16.mxu0 %v5135
        %5389 = vmatpush2.bf16.msra.mxu0 %v5134
        %5390 = vmatprep.mubr.bf16.mxu0 %v4537
        %5391 = vmatmul.mubr.bf16.gmra.mxu0 %v4536
        %v5392 = vpop.f32.mrf.mxu0
        %v5393 = vadd.f32 %v4701, %v5392
        %v5394 = vpop.f32.mrf.mxu0
        %v5395 = vadd.f32 %v4705, %v5394
        %v5396 = vpop.f32.mrf.mxu0
        %v5397 = vadd.f32 %v4701, %v5396
        %v5398 = vpop.f32.mrf.mxu0
        %v5399 = vadd.f32 %v4705, %v5398
        %5400 = vmatprep.mubr.bf16.mxu0 %v4541
        %5401 = vmatmul.mubr.bf16.gmra.mxu0 %v4540
        %v5402 = vpop.f32.mrf.mxu0
        %v5403 = vadd.f32 %v4701, %v5402
        %v5404 = vpop.f32.mrf.mxu0
        %v5405 = vadd.f32 %v4705, %v5404
        %v5406 = vpop.f32.mrf.mxu0
        %v5407 = vadd.f32 %v4701, %v5406
        %v5408 = vpop.f32.mrf.mxu0
        %v5409 = vadd.f32 %v4705, %v5408
        %5410 = vmatprep.mubr.bf16.mxu0 %v4545
        %5411 = vmatmul.mubr.bf16.gmra.mxu0 %v4544
        %v5412 = vpop.f32.mrf.mxu0
        %v5413 = vadd.f32 %v4701, %v5412
        %v5414 = vpop.f32.mrf.mxu0
        %v5415 = vadd.f32 %v4705, %v5414
        %v5416 = vpop.f32.mrf.mxu0
        %v5417 = vadd.f32 %v4701, %v5416
        %v5418 = vpop.f32.mrf.mxu0
        %v5419 = vadd.f32 %v4705, %v5418
        %5420 = vmatprep.mubr.bf16.mxu0 %v4549
        %5421 = vmatmul.mubr.bf16.gmra.mxu0 %v4548
        %v5422 = vpop.f32.mrf.mxu0
        %v5423 = vadd.f32 %v4701, %v5422
        %v5424 = vpop.f32.mrf.mxu0
        %v5425 = vadd.f32 %v4705, %v5424
        %v5426 = vpop.f32.mrf.mxu0
        %v5427 = vadd.f32 %v4701, %v5426
        %v5428 = vpop.f32.mrf.mxu0
        %v5429 = vadd.f32 %v4705, %v5428
        %5430 = vmatprep.mubr.bf16.mxu0 %v4553
        %5431 = vmatmul.mubr.bf16.gmra.mxu0 %v4552
        %v5432 = vpop.f32.mrf.mxu0
        %v5433 = vadd.f32 %v4701, %v5432
        %v5434 = vpop.f32.mrf.mxu0
        %v5435 = vadd.f32 %v4705, %v5434
        %v5436 = vpop.f32.mrf.mxu0
        %v5437 = vadd.f32 %v4701, %v5436
        %v5438 = vpop.f32.mrf.mxu0
        %v5439 = vadd.f32 %v4705, %v5438
        %5440 = vmatprep.mubr.bf16.mxu0 %v4557
        %5441 = vmatmul.mubr.bf16.gmra.mxu0 %v4556
        %v5442 = vpop.f32.mrf.mxu0
        %v5443 = vadd.f32 %v4701, %v5442
        %v5444 = vpop.f32.mrf.mxu0
        %v5445 = vadd.f32 %v4705, %v5444
        %v5446 = vpop.f32.mrf.mxu0
        %v5447 = vadd.f32 %v4701, %v5446
        %v5448 = vpop.f32.mrf.mxu0
        %v5449 = vadd.f32 %v4705, %v5448
        %5450 = vmatprep.mubr.bf16.mxu0 %v4561
        %5451 = vmatmul.mubr.bf16.gmra.mxu0 %v4560
        %v5452 = vpop.f32.mrf.mxu0
        %v5453 = vadd.f32 %v4701, %v5452
        %v5454 = vpop.f32.mrf.mxu0
        %v5455 = vadd.f32 %v4705, %v5454
        %v5456 = vpop.f32.mrf.mxu0
        %v5457 = vadd.f32 %v4701, %v5456
        %v5458 = vpop.f32.mrf.mxu0
        %v5459 = vadd.f32 %v4705, %v5458
        %5460 = vmatprep.mubr.bf16.mxu0 %v4565
        %5461 = vmatmul.mubr.bf16.gmra.mxu0 %v4564
        %v5462 = vpop.f32.mrf.mxu0
        %v5463 = vadd.f32 %v4701, %v5462
        %v5464 = vpop.f32.mrf.mxu0
        %v5465 = vadd.f32 %v4705, %v5464
        %v5466 = vpop.f32.mrf.mxu0
        %v5467 = vadd.f32 %v4701, %v5466
        %v5468 = vpop.f32.mrf.mxu0
        %v5469 = vadd.f32 %v4705, %v5468
        %5470 = vdwg.mxu0
        %5471 = vmatprep.subr.bf16.mxu0 %v5195
        %5472 = vmatpush1.bf16.msra.mxu0 %v5194
        %5473 = vmatprep.subr.bf16.mxu0 %v5191
        %5474 = vmatpush1.bf16.msra.mxu0 %v5190
        %5475 = vmatprep.subr.bf16.mxu0 %v5187
        %5476 = vmatpush1.bf16.msra.mxu0 %v5186
        %5477 = vmatprep.subr.bf16.mxu0 %v5183
        %5478 = vmatpush1.bf16.msra.mxu0 %v5182
        %5479 = vmatprep.subr.bf16.mxu0 %v5179
        %5480 = vmatpush1.bf16.msra.mxu0 %v5178
        %5481 = vmatprep.subr.bf16.mxu0 %v5175
        %5482 = vmatpush1.bf16.msra.mxu0 %v5174
        %5483 = vmatprep.subr.bf16.mxu0 %v5171
        %5484 = vmatpush1.bf16.msra.mxu0 %v5170
        %5485 = vmatprep.subr.bf16.mxu0 %v5167
        %5486 = vmatpush1.bf16.msra.mxu0 %v5166
        %5487 = vmatprep.subr.bf16.mxu0 %v5227
        %5488 = vmatpush2.bf16.msra.mxu0 %v5226
        %5489 = vmatprep.subr.bf16.mxu0 %v5223
        %5490 = vmatpush2.bf16.msra.mxu0 %v5222
        %5491 = vmatprep.subr.bf16.mxu0 %v5219
        %5492 = vmatpush2.bf16.msra.mxu0 %v5218
        %5493 = vmatprep.subr.bf16.mxu0 %v5215
        %5494 = vmatpush2.bf16.msra.mxu0 %v5214
        %5495 = vmatprep.subr.bf16.mxu0 %v5211
        %5496 = vmatpush2.bf16.msra.mxu0 %v5210
        %5497 = vmatprep.subr.bf16.mxu0 %v5207
        %5498 = vmatpush2.bf16.msra.mxu0 %v5206
        %5499 = vmatprep.subr.bf16.mxu0 %v5203
        %5500 = vmatpush2.bf16.msra.mxu0 %v5202
        %5501 = vmatprep.subr.bf16.mxu0 %v5199
        %5502 = vmatpush2.bf16.msra.mxu0 %v5198
        %5503 = vmatprep.mubr.bf16.mxu0 %v4539
        %5504 = vmatmul.mubr.bf16.gmra.mxu0 %v4538
        %v5505 = vpop.f32.mrf.mxu0
        %v5506 = vadd.f32 %v5393, %v5505
        %v5507 = vpop.f32.mrf.mxu0
        %v5508 = vadd.f32 %v5395, %v5507
        %v5509 = vpop.f32.mrf.mxu0
        %v5510 = vadd.f32 %v5397, %v5509
        %v5511 = vpop.f32.mrf.mxu0
        %v5512 = vadd.f32 %v5399, %v5511
        %5513 = vmatprep.mubr.bf16.mxu0 %v4543
        %5514 = vmatmul.mubr.bf16.gmra.mxu0 %v4542
        %v5515 = vpop.f32.mrf.mxu0
        %v5516 = vadd.f32 %v5403, %v5515
        %v5517 = vpop.f32.mrf.mxu0
        %v5518 = vadd.f32 %v5405, %v5517
        %v5519 = vpop.f32.mrf.mxu0
        %v5520 = vadd.f32 %v5407, %v5519
        %v5521 = vpop.f32.mrf.mxu0
        %v5522 = vadd.f32 %v5409, %v5521
        %5523 = vmatprep.mubr.bf16.mxu0 %v4547
        %5524 = vmatmul.mubr.bf16.gmra.mxu0 %v4546
        %v5525 = vpop.f32.mrf.mxu0
        %v5526 = vadd.f32 %v5413, %v5525
        %v5527 = vpop.f32.mrf.mxu0
        %v5528 = vadd.f32 %v5415, %v5527
        %v5529 = vpop.f32.mrf.mxu0
        %v5530 = vadd.f32 %v5417, %v5529
        %v5531 = vpop.f32.mrf.mxu0
        %v5532 = vadd.f32 %v5419, %v5531
        %5533 = vmatprep.mubr.bf16.mxu0 %v4551
        %5534 = vmatmul.mubr.bf16.gmra.mxu0 %v4550
        %v5535 = vpop.f32.mrf.mxu0
        %v5536 = vadd.f32 %v5423, %v5535
        %v5537 = vpop.f32.mrf.mxu0
        %v5538 = vadd.f32 %v5425, %v5537
        %v5539 = vpop.f32.mrf.mxu0
        %v5540 = vadd.f32 %v5427, %v5539
        %v5541 = vpop.f32.mrf.mxu0
        %v5542 = vadd.f32 %v5429, %v5541
        %5543 = vmatprep.mubr.bf16.mxu0 %v4555
        %5544 = vmatmul.mubr.bf16.gmra.mxu0 %v4554
        %v5545 = vpop.f32.mrf.mxu0
        %v5546 = vadd.f32 %v5433, %v5545
        %v5547 = vpop.f32.mrf.mxu0
        %v5548 = vadd.f32 %v5435, %v5547
        %v5549 = vpop.f32.mrf.mxu0
        %v5550 = vadd.f32 %v5437, %v5549
        %v5551 = vpop.f32.mrf.mxu0
        %v5552 = vadd.f32 %v5439, %v5551
        %5553 = vmatprep.mubr.bf16.mxu0 %v4559
        %5554 = vmatmul.mubr.bf16.gmra.mxu0 %v4558
        %v5555 = vpop.f32.mrf.mxu0
        %v5556 = vadd.f32 %v5443, %v5555
        %v5557 = vpop.f32.mrf.mxu0
        %v5558 = vadd.f32 %v5445, %v5557
        %v5559 = vpop.f32.mrf.mxu0
        %v5560 = vadd.f32 %v5447, %v5559
        %v5561 = vpop.f32.mrf.mxu0
        %v5562 = vadd.f32 %v5449, %v5561
        %5563 = vmatprep.mubr.bf16.mxu0 %v4563
        %5564 = vmatmul.mubr.bf16.gmra.mxu0 %v4562
        %v5565 = vpop.f32.mrf.mxu0
        %v5566 = vadd.f32 %v5453, %v5565
        %v5567 = vpop.f32.mrf.mxu0
        %v5568 = vadd.f32 %v5455, %v5567
        %v5569 = vpop.f32.mrf.mxu0
        %v5570 = vadd.f32 %v5457, %v5569
        %v5571 = vpop.f32.mrf.mxu0
        %v5572 = vadd.f32 %v5459, %v5571
        %5573 = vmatprep.mubr.bf16.mxu0 %v4567
        %5574 = vmatmul.mubr.bf16.gmra.mxu0 %v4566
        %v5575 = vpop.f32.mrf.mxu0
        %v5576 = vadd.f32 %v5463, %v5575
        %v5577 = vpop.f32.mrf.mxu0
        %v5578 = vadd.f32 %v5465, %v5577
        %v5579 = vpop.f32.mrf.mxu0
        %v5580 = vadd.f32 %v5467, %v5579
        %v5581 = vpop.f32.mrf.mxu0
        %v5582 = vadd.f32 %v5469, %v5581
        %5583 = vdwg.mxu0
        %5584 = vmatprep.subr.bf16.mxu0 %v5133
        %5585 = vmatpush1.bf16.msra.mxu0 %v5132
        %5586 = vmatprep.subr.bf16.mxu0 %v5129
        %5587 = vmatpush1.bf16.msra.mxu0 %v5128
        %5588 = vmatprep.subr.bf16.mxu0 %v5125
        %5589 = vmatpush1.bf16.msra.mxu0 %v5124
        %5590 = vmatprep.subr.bf16.mxu0 %v5121
        %5591 = vmatpush1.bf16.msra.mxu0 %v5120
        %5592 = vmatprep.subr.bf16.mxu0 %v5117
        %5593 = vmatpush1.bf16.msra.mxu0 %v5116
        %5594 = vmatprep.subr.bf16.mxu0 %v5113
        %5595 = vmatpush1.bf16.msra.mxu0 %v5112
        %5596 = vmatprep.subr.bf16.mxu0 %v5109
        %5597 = vmatpush1.bf16.msra.mxu0 %v5108
        %5598 = vmatprep.subr.bf16.mxu0 %v5105
        %5599 = vmatpush1.bf16.msra.mxu0 %v5104
        %5600 = vmatprep.subr.bf16.mxu0 %v5165
        %5601 = vmatpush2.bf16.msra.mxu0 %v5164
        %5602 = vmatprep.subr.bf16.mxu0 %v5161
        %5603 = vmatpush2.bf16.msra.mxu0 %v5160
        %5604 = vmatprep.subr.bf16.mxu0 %v5157
        %5605 = vmatpush2.bf16.msra.mxu0 %v5156
        %5606 = vmatprep.subr.bf16.mxu0 %v5153
        %5607 = vmatpush2.bf16.msra.mxu0 %v5152
        %5608 = vmatprep.subr.bf16.mxu0 %v5149
        %5609 = vmatpush2.bf16.msra.mxu0 %v5148
        %5610 = vmatprep.subr.bf16.mxu0 %v5145
        %5611 = vmatpush2.bf16.msra.mxu0 %v5144
        %5612 = vmatprep.subr.bf16.mxu0 %v5141
        %5613 = vmatpush2.bf16.msra.mxu0 %v5140
        %5614 = vmatprep.subr.bf16.mxu0 %v5137
        %5615 = vmatpush2.bf16.msra.mxu0 %v5136
        %5616 = vmatprep.mubr.bf16.mxu0 %v4537
        %5617 = vmatmul.mubr.bf16.gmra.mxu0 %v4536
        %v5618 = vpop.f32.mrf.mxu0
        %v5619 = vadd.f32 %v4709, %v5618
        %v5620 = vpop.f32.mrf.mxu0
        %v5621 = vadd.f32 %v4713, %v5620
        %v5622 = vpop.f32.mrf.mxu0
        %v5623 = vadd.f32 %v4709, %v5622
        %v5624 = vpop.f32.mrf.mxu0
        %v5625 = vadd.f32 %v4713, %v5624
        %5626 = vmatprep.mubr.bf16.mxu0 %v4541
        %5627 = vmatmul.mubr.bf16.gmra.mxu0 %v4540
        %v5628 = vpop.f32.mrf.mxu0
        %v5629 = vadd.f32 %v4709, %v5628
        %v5630 = vpop.f32.mrf.mxu0
        %v5631 = vadd.f32 %v4713, %v5630
        %v5632 = vpop.f32.mrf.mxu0
        %v5633 = vadd.f32 %v4709, %v5632
        %v5634 = vpop.f32.mrf.mxu0
        %v5635 = vadd.f32 %v4713, %v5634
        %5636 = vmatprep.mubr.bf16.mxu0 %v4545
        %5637 = vmatmul.mubr.bf16.gmra.mxu0 %v4544
        %v5638 = vpop.f32.mrf.mxu0
        %v5639 = vadd.f32 %v4709, %v5638
        %v5640 = vpop.f32.mrf.mxu0
        %v5641 = vadd.f32 %v4713, %v5640
        %v5642 = vpop.f32.mrf.mxu0
        %v5643 = vadd.f32 %v4709, %v5642
        %v5644 = vpop.f32.mrf.mxu0
        %v5645 = vadd.f32 %v4713, %v5644
        %5646 = vmatprep.mubr.bf16.mxu0 %v4549
        %5647 = vmatmul.mubr.bf16.gmra.mxu0 %v4548
        %v5648 = vpop.f32.mrf.mxu0
        %v5649 = vadd.f32 %v4709, %v5648
        %v5650 = vpop.f32.mrf.mxu0
        %v5651 = vadd.f32 %v4713, %v5650
        %v5652 = vpop.f32.mrf.mxu0
        %v5653 = vadd.f32 %v4709, %v5652
        %v5654 = vpop.f32.mrf.mxu0
        %v5655 = vadd.f32 %v4713, %v5654
        %5656 = vmatprep.mubr.bf16.mxu0 %v4553
        %5657 = vmatmul.mubr.bf16.gmra.mxu0 %v4552
        %v5658 = vpop.f32.mrf.mxu0
        %v5659 = vadd.f32 %v4709, %v5658
        %v5660 = vpop.f32.mrf.mxu0
        %v5661 = vadd.f32 %v4713, %v5660
        %v5662 = vpop.f32.mrf.mxu0
        %v5663 = vadd.f32 %v4709, %v5662
        %v5664 = vpop.f32.mrf.mxu0
        %v5665 = vadd.f32 %v4713, %v5664
        %5666 = vmatprep.mubr.bf16.mxu0 %v4557
        %5667 = vmatmul.mubr.bf16.gmra.mxu0 %v4556
        %v5668 = vpop.f32.mrf.mxu0
        %v5669 = vadd.f32 %v4709, %v5668
        %v5670 = vpop.f32.mrf.mxu0
        %v5671 = vadd.f32 %v4713, %v5670
        %v5672 = vpop.f32.mrf.mxu0
        %v5673 = vadd.f32 %v4709, %v5672
        %v5674 = vpop.f32.mrf.mxu0
        %v5675 = vadd.f32 %v4713, %v5674
        %5676 = vmatprep.mubr.bf16.mxu0 %v4561
        %5677 = vmatmul.mubr.bf16.gmra.mxu0 %v4560
        %v5678 = vpop.f32.mrf.mxu0
        %v5679 = vadd.f32 %v4709, %v5678
        %v5680 = vpop.f32.mrf.mxu0
        %v5681 = vadd.f32 %v4713, %v5680
        %v5682 = vpop.f32.mrf.mxu0
        %v5683 = vadd.f32 %v4709, %v5682
        %v5684 = vpop.f32.mrf.mxu0
        %v5685 = vadd.f32 %v4713, %v5684
        %5686 = vmatprep.mubr.bf16.mxu0 %v4565
        %5687 = vmatmul.mubr.bf16.gmra.mxu0 %v4564
        %v5688 = vpop.f32.mrf.mxu0
        %v5689 = vadd.f32 %v4709, %v5688
        %v5690 = vpop.f32.mrf.mxu0
        %v5691 = vadd.f32 %v4713, %v5690
        %v5692 = vpop.f32.mrf.mxu0
        %v5693 = vadd.f32 %v4709, %v5692
        %v5694 = vpop.f32.mrf.mxu0
        %v5695 = vadd.f32 %v4713, %v5694
        %5696 = vdwg.mxu0
        %5697 = vmatprep.subr.bf16.mxu0 %v5197
        %5698 = vmatpush1.bf16.msra.mxu0 %v5196
        %5699 = vmatprep.subr.bf16.mxu0 %v5193
        %5700 = vmatpush1.bf16.msra.mxu0 %v5192
        %5701 = vmatprep.subr.bf16.mxu0 %v5189
        %5702 = vmatpush1.bf16.msra.mxu0 %v5188
        %5703 = vmatprep.subr.bf16.mxu0 %v5185
        %5704 = vmatpush1.bf16.msra.mxu0 %v5184
        %5705 = vmatprep.subr.bf16.mxu0 %v5181
        %5706 = vmatpush1.bf16.msra.mxu0 %v5180
        %5707 = vmatprep.subr.bf16.mxu0 %v5177
        %5708 = vmatpush1.bf16.msra.mxu0 %v5176
        %5709 = vmatprep.subr.bf16.mxu0 %v5173
        %5710 = vmatpush1.bf16.msra.mxu0 %v5172
        %5711 = vmatprep.subr.bf16.mxu0 %v5169
        %5712 = vmatpush1.bf16.msra.mxu0 %v5168
        %5713 = vmatprep.subr.bf16.mxu0 %v5229
        %5714 = vmatpush2.bf16.msra.mxu0 %v5228
        %5715 = vmatprep.subr.bf16.mxu0 %v5225
        %5716 = vmatpush2.bf16.msra.mxu0 %v5224
        %5717 = vmatprep.subr.bf16.mxu0 %v5221
        %5718 = vmatpush2.bf16.msra.mxu0 %v5220
        %5719 = vmatprep.subr.bf16.mxu0 %v5217
        %5720 = vmatpush2.bf16.msra.mxu0 %v5216
        %5721 = vmatprep.subr.bf16.mxu0 %v5213
        %5722 = vmatpush2.bf16.msra.mxu0 %v5212
        %5723 = vmatprep.subr.bf16.mxu0 %v5209
        %5724 = vmatpush2.bf16.msra.mxu0 %v5208
        %5725 = vmatprep.subr.bf16.mxu0 %v5205
        %5726 = vmatpush2.bf16.msra.mxu0 %v5204
        %5727 = vmatprep.subr.bf16.mxu0 %v5201
        %5728 = vmatpush2.bf16.msra.mxu0 %v5200
        %5729 = vmatprep.mubr.bf16.mxu0 %v4539
        %5730 = vmatmul.mubr.bf16.gmra.mxu0 %v4538
        %v5731 = vpop.f32.mrf.mxu0
        %v5732 = vadd.f32 %v5619, %v5731
        %v5733 = vpop.f32.mrf.mxu0
        %v5734 = vadd.f32 %v5621, %v5733
        %v5735 = vpop.f32.mrf.mxu0
        %v5736 = vadd.f32 %v5623, %v5735
        %v5737 = vpop.f32.mrf.mxu0
        %v5738 = vadd.f32 %v5625, %v5737
        %5739 = vmatprep.mubr.bf16.mxu0 %v4543
        %5740 = vmatmul.mubr.bf16.gmra.mxu0 %v4542
        %v5741 = vpop.f32.mrf.mxu0
        %v5742 = vadd.f32 %v5629, %v5741
        %v5743 = vpop.f32.mrf.mxu0
        %v5744 = vadd.f32 %v5631, %v5743
        %v5745 = vpop.f32.mrf.mxu0
        %v5746 = vadd.f32 %v5633, %v5745
        %v5747 = vpop.f32.mrf.mxu0
        %v5748 = vadd.f32 %v5635, %v5747
        %5749 = vmatprep.mubr.bf16.mxu0 %v4547
        %5750 = vmatmul.mubr.bf16.gmra.mxu0 %v4546
        %v5751 = vpop.f32.mrf.mxu0
        %v5752 = vadd.f32 %v5639, %v5751
        %v5753 = vpop.f32.mrf.mxu0
        %v5754 = vadd.f32 %v5641, %v5753
        %v5755 = vpop.f32.mrf.mxu0
        %v5756 = vadd.f32 %v5643, %v5755
        %v5757 = vpop.f32.mrf.mxu0
        %v5758 = vadd.f32 %v5645, %v5757
        %5759 = vmatprep.mubr.bf16.mxu0 %v4551
        %5760 = vmatmul.mubr.bf16.gmra.mxu0 %v4550
        %v5761 = vpop.f32.mrf.mxu0
        %v5762 = vadd.f32 %v5649, %v5761
        %v5763 = vpop.f32.mrf.mxu0
        %v5764 = vadd.f32 %v5651, %v5763
        %v5765 = vpop.f32.mrf.mxu0
        %v5766 = vadd.f32 %v5653, %v5765
        %v5767 = vpop.f32.mrf.mxu0
        %v5768 = vadd.f32 %v5655, %v5767
        %5769 = vmatprep.mubr.bf16.mxu0 %v4555
        %5770 = vmatmul.mubr.bf16.gmra.mxu0 %v4554
        %v5771 = vpop.f32.mrf.mxu0
        %v5772 = vadd.f32 %v5659, %v5771
        %v5773 = vpop.f32.mrf.mxu0
        %v5774 = vadd.f32 %v5661, %v5773
        %v5775 = vpop.f32.mrf.mxu0
        %v5776 = vadd.f32 %v5663, %v5775
        %v5777 = vpop.f32.mrf.mxu0
        %v5778 = vadd.f32 %v5665, %v5777
        %5779 = vmatprep.mubr.bf16.mxu0 %v4559
        %5780 = vmatmul.mubr.bf16.gmra.mxu0 %v4558
        %v5781 = vpop.f32.mrf.mxu0
        %v5782 = vadd.f32 %v5669, %v5781
        %v5783 = vpop.f32.mrf.mxu0
        %v5784 = vadd.f32 %v5671, %v5783
        %v5785 = vpop.f32.mrf.mxu0
        %v5786 = vadd.f32 %v5673, %v5785
        %v5787 = vpop.f32.mrf.mxu0
        %v5788 = vadd.f32 %v5675, %v5787
        %5789 = vmatprep.mubr.bf16.mxu0 %v4563
        %5790 = vmatmul.mubr.bf16.gmra.mxu0 %v4562
        %v5791 = vpop.f32.mrf.mxu0
        %v5792 = vadd.f32 %v5679, %v5791
        %v5793 = vpop.f32.mrf.mxu0
        %v5794 = vadd.f32 %v5681, %v5793
        %v5795 = vpop.f32.mrf.mxu0
        %v5796 = vadd.f32 %v5683, %v5795
        %v5797 = vpop.f32.mrf.mxu0
        %v5798 = vadd.f32 %v5685, %v5797
        %5799 = vmatprep.mubr.bf16.mxu0 %v4567
        %5800 = vmatmul.mubr.bf16.gmra.mxu0 %v4566
        %v5801 = vpop.f32.mrf.mxu0
        %v5802 = vadd.f32 %v5689, %v5801
        %v5803 = vpop.f32.mrf.mxu0
        %v5804 = vadd.f32 %v5691, %v5803
        %v5805 = vpop.f32.mrf.mxu0
        %v5806 = vadd.f32 %v5693, %v5805
        %v5807 = vpop.f32.mrf.mxu0
        %v5808 = vadd.f32 %v5695, %v5807
        %5809 = vdwg.mxu0
        %5810 = vst [vmem:[%s230] sm:$0xff] %v5506
        %5811 = vst [vmem:[%s230 + $0x8] sm:$0xff] %v5508
        %5812 = vst [vmem:[%s230 + $0x10] sm:$0xff] %v5732
        %5813 = vst [vmem:[%s230 + $0x18] sm:$0xff] %v5734
        %5814 = vst [vmem:[%s230 + $0x20] sm:$0xff] %v5510
        %5815 = vst [vmem:[%s230 + $0x28] sm:$0xff] %v5512
        %5816 = vst [vmem:[%s230 + $0x30] sm:$0xff] %v5736
        %5817 = vst [vmem:[%s230 + $0x38] sm:$0xff] %v5738
        %5818 = vst [vmem:[%s230 + $0x40] sm:$0xff] %v5516
        %5819 = vst [vmem:[%s230 + $0x48] sm:$0xff] %v5518
        %5820 = vst [vmem:[%s230 + $0x50] sm:$0xff] %v5742
        %5821 = vst [vmem:[%s230 + $0x58] sm:$0xff] %v5744
        %5822 = vst [vmem:[%s230 + $0x60] sm:$0xff] %v5520
        %5823 = vst [vmem:[%s230 + $0x68] sm:$0xff] %v5522
        %5824 = vst [vmem:[%s230 + $0x70] sm:$0xff] %v5746
        %5825 = vst [vmem:[%s230 + $0x78] sm:$0xff] %v5748
        %5826 = vst [vmem:[%s230 + $0x80] sm:$0xff] %v5526
        %5827 = vst [vmem:[%s230 + $0x88] sm:$0xff] %v5528
        %5828 = vst [vmem:[%s230 + $0x90] sm:$0xff] %v5752
        %5829 = vst [vmem:[%s230 + $0x98] sm:$0xff] %v5754
        %5830 = vst [vmem:[%s230 + $0xa0] sm:$0xff] %v5530
        %5831 = vst [vmem:[%s230 + $0xa8] sm:$0xff] %v5532
        %5832 = vst [vmem:[%s230 + $0xb0] sm:$0xff] %v5756
        %5833 = vst [vmem:[%s230 + $0xb8] sm:$0xff] %v5758
        %5834 = vst [vmem:[%s230 + $0xc0] sm:$0xff] %v5536
        %5835 = vst [vmem:[%s230 + $0xc8] sm:$0xff] %v5538
        %5836 = vst [vmem:[%s230 + $0xd0] sm:$0xff] %v5762
        %5837 = vst [vmem:[%s230 + $0xd8] sm:$0xff] %v5764
        %5838 = vst [vmem:[%s230 + $0xe0] sm:$0xff] %v5540
        %5839 = vst [vmem:[%s230 + $0xe8] sm:$0xff] %v5542
        %5840 = vst [vmem:[%s230 + $0xf0] sm:$0xff] %v5766
        %5841 = vst [vmem:[%s230 + $0xf8] sm:$0xff] %v5768
        %5842 = vst [vmem:[%s230 + $0x100] sm:$0xff] %v5546
        %5843 = vst [vmem:[%s230 + $0x108] sm:$0xff] %v5548
        %5844 = vst [vmem:[%s230 + $0x110] sm:$0xff] %v5772
        %5845 = vst [vmem:[%s230 + $0x118] sm:$0xff] %v5774
        %5846 = vst [vmem:[%s230 + $0x120] sm:$0xff] %v5550
        %5847 = vst [vmem:[%s230 + $0x128] sm:$0xff] %v5552
        %5848 = vst [vmem:[%s230 + $0x130] sm:$0xff] %v5776
        %5849 = vst [vmem:[%s230 + $0x138] sm:$0xff] %v5778
        %5850 = vst [vmem:[%s230 + $0x140] sm:$0xff] %v5556
        %5851 = vst [vmem:[%s230 + $0x148] sm:$0xff] %v5558
        %5852 = vst [vmem:[%s230 + $0x150] sm:$0xff] %v5782
        %5853 = vst [vmem:[%s230 + $0x158] sm:$0xff] %v5784
        %5854 = vst [vmem:[%s230 + $0x160] sm:$0xff] %v5560
        %5855 = vst [vmem:[%s230 + $0x168] sm:$0xff] %v5562
        %5856 = vst [vmem:[%s230 + $0x170] sm:$0xff] %v5786
        %5857 = vst [vmem:[%s230 + $0x178] sm:$0xff] %v5788
        %5858 = vst [vmem:[%s230 + $0x180] sm:$0xff] %v5566
        %5859 = vst [vmem:[%s230 + $0x188] sm:$0xff] %v5568
        %5860 = vst [vmem:[%s230 + $0x190] sm:$0xff] %v5792
        %5861 = vst [vmem:[%s230 + $0x198] sm:$0xff] %v5794
        %5862 = vst [vmem:[%s230 + $0x1a0] sm:$0xff] %v5570
        %5863 = vst [vmem:[%s230 + $0x1a8] sm:$0xff] %v5572
        %5864 = vst [vmem:[%s230 + $0x1b0] sm:$0xff] %v5796
        %5865 = vst [vmem:[%s230 + $0x1b8] sm:$0xff] %v5798
        %5866 = vst [vmem:[%s230 + $0x1c0] sm:$0xff] %v5576
        %5867 = vst [vmem:[%s230 + $0x1c8] sm:$0xff] %v5578
        %5868 = vst [vmem:[%s230 + $0x1d0] sm:$0xff] %v5802
        %5869 = vst [vmem:[%s230 + $0x1d8] sm:$0xff] %v5804
        %5870 = vst [vmem:[%s230 + $0x1e0] sm:$0xff] %v5580
        %5871 = vst [vmem:[%s230 + $0x1e8] sm:$0xff] %v5582
        %5872 = vst [vmem:[%s230 + $0x1f0] sm:$0xff] %v5806
        %5873 = vst [vmem:[%s230 + $0x1f8] sm:$0xff] %v5808
        %s5874 = sand.u32 %s113, 1
        %s5875 = scalar_lea.sflag [#allocation4], %s5874
        %s5876 = sand.u32 %s113, 1
        %s5877 = smul.addr %s5876, 512
        %s5878 = scalar_lea.vmem [#allocation10], %s5877
        // Predicated region
        $region53: #{tpu_custom_call.1} parent=35 // pred_check
          %p5879 = pneg %p123
        $region54: #{tpu_custom_call.1} parent=35 // pred_check_branch
          %5881 = sbr.rel (%p5879) target = $region56
        $region55: #{tpu_custom_call.1} parent=35 // pred_region
          %s5882 = smul.u32 16, %s21
          %s5884 = ssub.s32 8192, 8192
          %5885 = vsyncadd %s5875, %s5884
          %s5886 = smul.addr %s5882, 4
          %s5887 = smul.addr %s5886, 128
          %s5888 = scalar_lea.hbm %s4, %s5887
          %s5889 = sshll.u32 %s5878, 4
          %s5890 = int_to_ptr.vmem [resolvable:$true] %s5889
          %5895 = dma.vmem_to_hbm [thread:$0]  %s5890, 8192, %s5888, %s5875, 512, 512, 32
        $region56: #{tpu_custom_call.1} parent=35 // pred_fallthru
          _
      $region36: #{tpu_custom_call.1} parent=5 // pred_fallthru
        _
      %p5896 = scmp.le.s32.totalorder 2, %s16
      // Predicated region
      $region57: #{tpu_custom_call.1} parent=5 // pred_check
        %p5897 = pneg %p5896
      $region58: #{tpu_custom_call.1} parent=5 // pred_check_branch
        %5899 = sbr.rel (%p5897) target = $region60
      $region59: #{tpu_custom_call.1} parent=5 // pred_region
        %s5900 = ssub.s32 %s16, 2
        // Predicated region
        $region61: #{tpu_custom_call.1} parent=59 // pred_check
          %p5901 = pneg %p129
        $region62: #{tpu_custom_call.1} parent=59 // pred_check_branch
          %5903 = sbr.rel (%p5901) target = $region64
        $region63: #{tpu_custom_call.1} parent=59 // pred_region
          %s5904 = sand.u32 %s114, 1
          %s5905 = scalar_lea.sflag [#allocation4], %s5904
          %s5906 = sand.u32 %s114, 1
          %s5907 = smul.addr %s5906, 512
          %s5908 = scalar_lea.vmem [#allocation10], %s5907
          %5909 = dma.done %s5905, 8192
        $region64: #{tpu_custom_call.1} parent=59 // pred_fallthru
          _
      $region60: #{tpu_custom_call.1} parent=5 // pred_fallthru
        _
    $region6: #{tpu_custom_call.1} parent=1 // loop_footer
      %s20 = sadd.s32 1, %s16
    $region7: #{tpu_custom_call.1} parent=1 // loop_footer_branch
      %15 = sbr.rel target = $region3
    $region8: #{tpu_custom_call.1} parent=1 // loop_exit
      _
    %5910 = vsyncpa [#allocation3], 1
    %s5911 = scalar_lea.sflag [#allocation3], 1
    %5912 = vsyncpa %s5911, 1
    %5913 = vsyncpa [#allocation6], 1
    %5914 = vsyncpa [#allocation9], 1
    %5915 = vsyncpa [#allocation4], 1
    %s5916 = scalar_lea.sflag [#allocation4], 1
    %5917 = vsyncpa %s5916, 1

</llo_original>
